<compile_context>
chip_gen: v6e
topology: v6e:2x2x1
jax: 0.10.0
libtpu: 0.0.40
codegen_flags: <defaults>
</compile_context>

<pallas_src>
import functools

import jax
import jax.numpy as jnp
from jax.experimental import pallas as pl
from jax.experimental.pallas import tpu as pltpu

_VMEM_LIMIT = 64 * 1024 * 1024


# ----------------------------------------------------------------------------
# Kernels
# ----------------------------------------------------------------------------
def _mlp_normalize_kernel(x_ref, w1_ref, b1_ref, w2_ref, b2_ref, w3_ref, b3_ref,
                          z_ref, *, approx_gelu):
    """Linear -> GELU -> Linear -> GELU -> Linear -> L2-normalize per batch tile.

    x / weights are bf16 (f32 MXU accumulation); GELU and normalize run in f32.
    """
    bf16, f32 = jnp.bfloat16, jnp.float32

    h = jnp.dot(x_ref[...], w1_ref[...], preferred_element_type=f32) + b1_ref[...]
    h = jax.nn.gelu(h, approximate=approx_gelu)
    h = jnp.dot(h.astype(bf16), w2_ref[...], preferred_element_type=f32) + b2_ref[...]
    h = jax.nn.gelu(h, approximate=approx_gelu)
    z = jnp.dot(h.astype(bf16), w3_ref[...], preferred_element_type=f32) + b3_ref[...]

    # F.normalize(z, dim=-1, p=2): z / max(||z||, 1e-12) == z * rsqrt(max(||z||^2, 1e-24))
    inv = jax.lax.rsqrt(jnp.maximum(jnp.sum(z * z, axis=-1, keepdims=True), 1e-24))
    z_ref[...] = (z * inv).astype(z_ref.dtype)


def _last_layer_kernel(z_ref, w_ref, o_ref):
    """out tile = z tile @ w_last tile (weight_norm already folded into w_last)."""
    o_ref[...] = jnp.dot(z_ref[...], w_ref[...],
                         preferred_element_type=jnp.float32).astype(o_ref.dtype)


# ----------------------------------------------------------------------------
# Wrappers
# ----------------------------------------------------------------------------
def _pick_tile(dim, candidates, min_grid=1):
    """Largest candidate dividing dim, preferring >= min_grid grid steps.

    If no candidate divides dim, returns the smallest candidate and relies on
    caller-side padding (batch axis) -- never silently returns the full dim.
    """
    divisors = [c for c in candidates if dim % c == 0]
    for c in divisors:
        if dim // c >= min_grid:
            return c
    if divisors:
        return divisors[0]
    return min(candidates)


def prepare_params(params):
    """Fold weight_norm into w_last and cast weights to bf16.

    weight_norm: w = g * v / ||v||_col.  norm_last_layer=True fixes g == 1
    (weight_g.data.fill_(1), requires_grad=False); if a trained g is present
    pass it as params["g"] (shape [out_dim]) and it is folded in here.
    """
    bf16, f32 = jnp.bfloat16, jnp.float32
    v = params["v"].astype(f32)                       # [bottleneck, out] (pre-transposed)
    vnorm = jnp.sqrt(jnp.sum(v * v, axis=0, keepdims=True))
    g = params.get("g")
    g = jnp.float32(1.0) if g is None else params["g"].astype(f32).reshape(1, -1)
    w_last = (g * v / jnp.maximum(vnorm, 1e-12)).astype(bf16)
    return {
        "w1": params["w1"].astype(bf16), "b1": params["b1"].astype(f32),
        "w2": params["w2"].astype(bf16), "b2": params["b2"].astype(f32),
        "w3": params["w3"].astype(bf16), "b3": params["b3"].astype(f32),
        "w_last": w_last,
    }


def dino_head_forward(x, prep, *, batch_tile=None, out_tile=None,
                      out_dtype=jnp.bfloat16, approx_gelu=True):
    """x: [B, in_dim].  prep: output of prepare_params (bf16 weights).

    out_dtype defaults to bf16: the B x out_dim output write dominates stage-2
    HBM traffic; pass jnp.float32 if downstream needs full-precision logits.
    approx_gelu=True uses the tanh GELU (EUP); False gives exact nn.GELU().
    """
    B0, in_dim = x.shape
    hidden = prep["w1"].shape[1]
    bneck = prep["w3"].shape[1]
    out_dim = prep["w_last"].shape[1]
    if out_dim % 128 != 0:
        # TODO(synk): pad/mask the out axis to support out_dim not divisible by 128.
        raise ValueError(f"out_dim ({out_dim}) must be a multiple of 128")

    tb = batch_tile or _pick_tile(B0, (256, 128), min_grid=2)
    tn = out_tile or _pick_tile(out_dim, (4096, 2048, 1024, 512, 256, 128))
    assert out_dim % tn == 0 and tn % 128 == 0, (out_dim, tn)

    # bf16 activations end-to-end (matmuls accumulate in f32 on the MXU); pad
    # the batch so every grid divides exactly (handles arbitrary B).
    x = x.astype(jnp.bfloat16)
    Bp = pl.cdiv(B0, tb) * tb
    if Bp != B0:
        x = jnp.pad(x, ((0, Bp - B0), (0, 0)))

    # ---- Stage 1: MLP + L2-normalize, tiled over batch only. ---------------
    # MLP weights use a constant block index (resident in VMEM across the
    # grid); request single buffering so they don't pay the 2x VMEM cost.
    def build_stage1(single_buffer_weights):
        if single_buffer_weights:
            res = lambda shape: pl.BlockSpec(shape, lambda i: (0, 0),
                                             pipeline_mode=pl.Buffered(1))
        else:
            res = lambda shape: pl.BlockSpec(shape, lambda i: (0, 0))
        return pl.pallas_call(
            functools.partial(_mlp_normalize_kernel, approx_gelu=approx_gelu),
            out_shape=jax.ShapeDtypeStruct((Bp, bneck), jnp.bfloat16),
            grid=(Bp // tb,),
            in_specs=[
                pl.BlockSpec((tb, in_dim), lambda i: (i, 0)),
                res((in_dim, hidden)),
                res((1, hidden)),
                res((hidden, hidden)),
                res((1, hidden)),
                res((hidden, bneck)),
                res((1, bneck)),
            ],
            out_specs=pl.BlockSpec((tb, bneck), lambda i: (i, 0)),
            compiler_params=pltpu.CompilerParams(
                dimension_semantics=("parallel",),
                vmem_limit_bytes=_VMEM_LIMIT),
        )

    stage1_args = (x, prep["w1"], prep["b1"], prep["w2"], prep["b2"],
                   prep["w3"], prep["b3"])
    try:
        z = build_stage1(True)(*stage1_args)
    except Exception:
        # TODO(synk): pl.Buffered(1) single-buffering unsupported on this jax
        # build; fall back to default double-buffered resident weights.
        z = build_stage1(False)(*stage1_args)

    # ---- Stage 2: last layer, tiled over (out, batch). ----------------------
    # Batch is the innermost grid axis, so the w_last block (index depends only
    # on the outer axis) is fetched once per out tile and reused across every
    # batch tile; the tiny z tile is what gets re-streamed.  Output is a
    # lane-dense bf16 slab (this kernel is HBM-write bound).
    out = pl.pallas_call(
        _last_layer_kernel,
        out_shape=jax.ShapeDtypeStruct((Bp, out_dim), out_dtype),
        grid=(out_dim // tn, Bp // tb),
        in_specs=[
            pl.BlockSpec((tb, bneck), lambda j, i: (i, 0)),
            pl.BlockSpec((bneck, tn), lambda j, i: (0, j)),
        ],
        out_specs=pl.BlockSpec((tb, tn), lambda j, i: (i, j)),
        compiler_params=pltpu.CompilerParams(
            dimension_semantics=("parallel", "arbitrary"),
            vmem_limit_bytes=_VMEM_LIMIT),
    )(z, prep["w_last"])

    return out[:B0] if Bp != B0 else out


# ----------------------------------------------------------------------------
# Init (mirrors DINOHead.__init__: trunc_normal std=0.02, zero bias,
# weight_norm v ~ default Linear init, g = 1).  Weights stored pre-transposed
# as [in_features, out_features] so every matmul is x @ W on the MXU.
# ----------------------------------------------------------------------------
def init_params(key, in_dim, hidden_dim, bottleneck_dim, out_dim):
    ks = jax.random.split(key, 4)

    def trunc_normal(k, shape, std=0.02):
        return std * jax.random.truncated_normal(k, -2.0, 2.0, shape, jnp.float32)

    w1 = trunc_normal(ks[0], (in_dim, hidden_dim))
    w2 = trunc_normal(ks[1], (hidden_dim, hidden_dim))
    w3 = trunc_normal(ks[2], (hidden_dim, bottleneck_dim))
    b1 = jnp.zeros((1, hidden_dim), jnp.float32)
    b2 = jnp.zeros((1, hidden_dim), jnp.float32)
    b3 = jnp.zeros((1, bottleneck_dim), jnp.float32)
    bound = 1.0 / jnp.sqrt(bottleneck_dim)
    v = jax.random.uniform(ks[3], (bottleneck_dim, out_dim), jnp.float32,
                           -bound, bound)
    return {"w1": w1, "b1": b1, "w2": w2, "b2": b2, "w3": w3, "b3": b3, "v": v}


if __name__ == "__main__":
    key = jax.random.PRNGKey(0)
    k_x, k_p = jax.random.split(key)

    # Small but lane-dense shapes (multiples of 128) consistent with the
    # module's forward: x is [B, in_dim].
    B, in_dim, hidden_dim, bottleneck_dim, out_dim = 256, 128, 256, 128, 512

    x = jax.random.normal(k_x, (B, in_dim), jnp.float32)
    params = init_params(k_p, in_dim, hidden_dim, bottleneck_dim, out_dim)
    prep = prepare_params(params)

    out = dino_head_forward(x, prep)
    jax.block_until_ready(out)

    # Pure-JAX reference with identical numerics (bf16 matmul operands, f32
    # accumulation, tanh GELU, same prenormalized last-layer weight).
    def ref(x, prep):
        bf16, f32 = jnp.bfloat16, jnp.float32
        h = jnp.dot(x.astype(bf16), prep["w1"], preferred_element_type=f32) + prep["b1"]
        h = jax.nn.gelu(h, approximate=True)
        h = jnp.dot(h.astype(bf16), prep["w2"], preferred_element_type=f32) + prep["b2"]
        h = jax.nn.gelu(h, approximate=True)
        z = jnp.dot(h.astype(bf16), prep["w3"], preferred_element_type=f32) + prep["b3"]
        z = z * jax.lax.rsqrt(jnp.maximum(jnp.sum(z * z, axis=-1, keepdims=True), 1e-24))
        z = z.astype(bf16)
        return jnp.dot(z, prep["w_last"], preferred_element_type=f32)

    expected = ref(x, prep).astype(out.dtype)
    assert out.shape == (B, out_dim)
    assert out.dtype == jnp.bfloat16
    max_err = float(jnp.max(jnp.abs(out.astype(jnp.float32)
                                    - expected.astype(jnp.float32))))
    assert max_err < 2e-2, max_err
    print("KERNEL_OK")
</pallas_src>

<mosaic_0001>
module attributes {stable_mosaic.version = 11 : i64} {
  func.func @_mlp_normalize_kernel(%arg0: i32, %arg1: memref<128x128xbf16, #tpu.memory_space<vmem>>, %arg2: memref<128x256xbf16, #tpu.memory_space<vmem>>, %arg3: memref<1x256xf32, #tpu.memory_space<vmem>>, %arg4: memref<256x256xbf16, #tpu.memory_space<vmem>>, %arg5: memref<1x256xf32, #tpu.memory_space<vmem>>, %arg6: memref<256x128xbf16, #tpu.memory_space<vmem>>, %arg7: memref<1x128xf32, #tpu.memory_space<vmem>>, %arg8: memref<128x128xbf16, #tpu.memory_space<vmem>>) attributes {dimension_semantics = [#tpu.dimension_semantics<parallel>], iteration_bounds = array<i64: 2>, scalar_prefetch = 0 : i64, scratch_operands = 0 : i64, tpu.core_type = #tpu.core_type<tc>, window_params = [{transform_indices = @transform_0, window_bounds = array<i64: 128, 128>}, {pipeline_mode = #tpu.pipeline_mode<synchronous>, transform_indices = @transform_1, window_bounds = array<i64: 128, 256>}, {pipeline_mode = #tpu.pipeline_mode<synchronous>, transform_indices = @transform_2, window_bounds = array<i64: 1, 256>}, {pipeline_mode = #tpu.pipeline_mode<synchronous>, transform_indices = @transform_3, window_bounds = array<i64: 256, 256>}, {pipeline_mode = #tpu.pipeline_mode<synchronous>, transform_indices = @transform_4, window_bounds = array<i64: 1, 256>}, {pipeline_mode = #tpu.pipeline_mode<synchronous>, transform_indices = @transform_5, window_bounds = array<i64: 256, 128>}, {pipeline_mode = #tpu.pipeline_mode<synchronous>, transform_indices = @transform_6, window_bounds = array<i64: 1, 128>}, {transform_indices = @transform_7, window_bounds = array<i64: 128, 128>}]} {
    %c0 = arith.constant 0 : index
    %c0_0 = arith.constant 0 : index
    %0 = vector.load %arg1[%c0, %c0_0] : memref<128x128xbf16, #tpu.memory_space<vmem>>, vector<128x128xbf16>
    %c0_1 = arith.constant 0 : index
    %c0_2 = arith.constant 0 : index
    %1 = vector.load %arg2[%c0_1, %c0_2] : memref<128x256xbf16, #tpu.memory_space<vmem>>, vector<128x256xbf16>
    %cst = arith.constant dense<0.000000e+00> : vector<128x256xf32>
    %2 = tpu.matmul %0, %1, %cst {dimension_numbers = #tpu.dot_dimension_numbers<[1], [0], [0], [1], [0, 0, 1, 1], [], []>} : vector<128x128xbf16>, vector<128x256xbf16>, vector<128x256xf32> -> vector<128x256xf32>
    %c0_3 = arith.constant 0 : index
    %c0_4 = arith.constant 0 : index
    %3 = vector.load %arg3[%c0_3, %c0_4] : memref<1x256xf32, #tpu.memory_space<vmem>>, vector<1x256xf32>
    %4 = vector.broadcast %3 : vector<1x256xf32> to vector<128x256xf32>
    %5 = arith.addf %2, %4 : vector<128x256xf32>
    %6 = arith.mulf %5, %5 : vector<128x256xf32>
    %7 = arith.mulf %5, %6 : vector<128x256xf32>
    %cst_5 = arith.constant 4.471500e-02 : f32
    %8 = vector.broadcast %cst_5 : f32 to vector<128x256xf32>
    %9 = arith.mulf %8, %7 : vector<128x256xf32>
    %10 = arith.addf %5, %9 : vector<128x256xf32>
    %cst_6 = arith.constant 0.797884583 : f32
    %11 = vector.broadcast %cst_6 : f32 to vector<128x256xf32>
    %12 = arith.mulf %11, %10 : vector<128x256xf32>
    %13 = math.tanh %12 : vector<128x256xf32>
    %cst_7 = arith.constant 1.000000e+00 : f32
    %14 = vector.broadcast %cst_7 : f32 to vector<128x256xf32>
    %15 = arith.addf %14, %13 : vector<128x256xf32>
    %cst_8 = arith.constant 5.000000e-01 : f32
    %16 = vector.broadcast %cst_8 : f32 to vector<128x256xf32>
    %17 = arith.mulf %16, %15 : vector<128x256xf32>
    %18 = arith.mulf %5, %17 : vector<128x256xf32>
    %19 = arith.truncf %18 : vector<128x256xf32> to vector<128x256xbf16>
    %c0_9 = arith.constant 0 : index
    %c0_10 = arith.constant 0 : index
    %20 = vector.load %arg4[%c0_9, %c0_10] : memref<256x256xbf16, #tpu.memory_space<vmem>>, vector<256x256xbf16>
    %cst_11 = arith.constant dense<0.000000e+00> : vector<128x256xf32>
    %21 = tpu.matmul %19, %20, %cst_11 {dimension_numbers = #tpu.dot_dimension_numbers<[1], [0], [0], [1], [0, 0, 1, 1], [], []>} : vector<128x256xbf16>, vector<256x256xbf16>, vector<128x256xf32> -> vector<128x256xf32>
    %c0_12 = arith.constant 0 : index
    %c0_13 = arith.constant 0 : index
    %22 = vector.load %arg5[%c0_12, %c0_13] : memref<1x256xf32, #tpu.memory_space<vmem>>, vector<1x256xf32>
    %23 = vector.broadcast %22 : vector<1x256xf32> to vector<128x256xf32>
    %24 = arith.addf %21, %23 : vector<128x256xf32>
    %25 = arith.mulf %24, %24 : vector<128x256xf32>
    %26 = arith.mulf %24, %25 : vector<128x256xf32>
    %cst_14 = arith.constant 4.471500e-02 : f32
    %27 = vector.broadcast %cst_14 : f32 to vector<128x256xf32>
    %28 = arith.mulf %27, %26 : vector<128x256xf32>
    %29 = arith.addf %24, %28 : vector<128x256xf32>
    %cst_15 = arith.constant 0.797884583 : f32
    %30 = vector.broadcast %cst_15 : f32 to vector<128x256xf32>
    %31 = arith.mulf %30, %29 : vector<128x256xf32>
    %32 = math.tanh %31 : vector<128x256xf32>
    %cst_16 = arith.constant 1.000000e+00 : f32
    %33 = vector.broadcast %cst_16 : f32 to vector<128x256xf32>
    %34 = arith.addf %33, %32 : vector<128x256xf32>
    %cst_17 = arith.constant 5.000000e-01 : f32
    %35 = vector.broadcast %cst_17 : f32 to vector<128x256xf32>
    %36 = arith.mulf %35, %34 : vector<128x256xf32>
    %37 = arith.mulf %24, %36 : vector<128x256xf32>
    %38 = arith.truncf %37 : vector<128x256xf32> to vector<128x256xbf16>
    %c0_18 = arith.constant 0 : index
    %c0_19 = arith.constant 0 : index
    %39 = vector.load %arg6[%c0_18, %c0_19] : memref<256x128xbf16, #tpu.memory_space<vmem>>, vector<256x128xbf16>
    %cst_20 = arith.constant dense<0.000000e+00> : vector<128x128xf32>
    %40 = tpu.matmul %38, %39, %cst_20 {dimension_numbers = #tpu.dot_dimension_numbers<[1], [0], [0], [1], [0, 0, 1, 1], [], []>} : vector<128x256xbf16>, vector<256x128xbf16>, vector<128x128xf32> -> vector<128x128xf32>
    %c0_21 = arith.constant 0 : index
    %c0_22 = arith.constant 0 : index
    %41 = vector.load %arg7[%c0_21, %c0_22] : memref<1x128xf32, #tpu.memory_space<vmem>>, vector<1x128xf32>
    %42 = vector.broadcast %41 : vector<1x128xf32> to vector<128x128xf32>
    %43 = arith.addf %40, %42 : vector<128x128xf32>
    %44 = arith.mulf %43, %43 : vector<128x128xf32>
    %cst_23 = arith.constant dense<0.000000e+00> : vector<128xf32>
    %45 = vector.multi_reduction <add>, %44, %cst_23 [1] : vector<128x128xf32> to vector<128xf32>
    %46 = vector.shape_cast %45 : vector<128xf32> to vector<128x1xf32>
    %cst_24 = arith.constant 1.000000e-24 : f32
    %47 = vector.broadcast %cst_24 : f32 to vector<128x1xf32>
    %48 = arith.maximumf %46, %47 : vector<128x1xf32>
    %49 = math.rsqrt %48 : vector<128x1xf32>
    %50 = vector.broadcast %49 : vector<128x1xf32> to vector<128x128xf32>
    %51 = arith.mulf %43, %50 : vector<128x128xf32>
    %52 = arith.truncf %51 : vector<128x128xf32> to vector<128x128xbf16>
    %c0_25 = arith.constant 0 : index
    %c0_26 = arith.constant 0 : index
    %53 = vector.load %arg8[%c0_25, %c0_26] : memref<128x128xbf16, #tpu.memory_space<vmem>>, vector<128x128xbf16>
    tpu.vector_store %arg8[%c0_25, %c0_26], %52 {strides = array<i32>} : memref<128x128xbf16, #tpu.memory_space<vmem>>, vector<128x128xbf16>,
    return
  }
  func.func @transform_0(%arg0: i32) -> (i32, i32) {
    %c0_i32 = arith.constant 0 : i32
    %c0_i32_0 = arith.constant 0 : i32
    return %arg0, %c0_i32 : i32, i32
  }
  func.func @transform_1(%arg0: i32) -> (i32, i32) {
    %c0_i32 = arith.constant 0 : i32
    %c0_i32_0 = arith.constant 0 : i32
    %c0_i32_1 = arith.constant 0 : i32
    return %c0_i32, %c0_i32_0 : i32, i32
  }
  func.func @transform_2(%arg0: i32) -> (i32, i32) {
    %c0_i32 = arith.constant 0 : i32
    %c0_i32_0 = arith.constant 0 : i32
    %c0_i32_1 = arith.constant 0 : i32
    return %c0_i32, %c0_i32_0 : i32, i32
  }
  func.func @transform_3(%arg0: i32) -> (i32, i32) {
    %c0_i32 = arith.constant 0 : i32
    %c0_i32_0 = arith.constant 0 : i32
    %c0_i32_1 = arith.constant 0 : i32
    return %c0_i32, %c0_i32_0 : i32, i32
  }
  func.func @transform_4(%arg0: i32) -> (i32, i32) {
    %c0_i32 = arith.constant 0 : i32
    %c0_i32_0 = arith.constant 0 : i32
    %c0_i32_1 = arith.constant 0 : i32
    return %c0_i32, %c0_i32_0 : i32, i32
  }
  func.func @transform_5(%arg0: i32) -> (i32, i32) {
    %c0_i32 = arith.constant 0 : i32
    %c0_i32_0 = arith.constant 0 : i32
    %c0_i32_1 = arith.constant 0 : i32
    return %c0_i32, %c0_i32_0 : i32, i32
  }
  func.func @transform_6(%arg0: i32) -> (i32, i32) {
    %c0_i32 = arith.constant 0 : i32
    %c0_i32_0 = arith.constant 0 : i32
    %c0_i32_1 = arith.constant 0 : i32
    return %c0_i32, %c0_i32_0 : i32, i32
  }
  func.func @transform_7(%arg0: i32) -> (i32, i32) {
    %c0_i32 = arith.constant 0 : i32
    %c0_i32_0 = arith.constant 0 : i32
    return %arg0, %c0_i32 : i32, i32
  }
}

module attributes {stable_mosaic.version = 11 : i64} {
  func.func @_mlp_normalize_kernel(%arg0: i32, %arg1: memref<128x128xbf16, #tpu.memory_space<vmem>>, %arg2: memref<128x256xbf16, #tpu.memory_space<vmem>>, %arg3: memref<1x256xf32, #tpu.memory_space<vmem>>, %arg4: memref<256x256xbf16, #tpu.memory_space<vmem>>, %arg5: memref<1x256xf32, #tpu.memory_space<vmem>>, %arg6: memref<256x128xbf16, #tpu.memory_space<vmem>>, %arg7: memref<1x128xf32, #tpu.memory_space<vmem>>, %arg8: memref<128x128xbf16, #tpu.memory_space<vmem>>) attributes {dimension_semantics = [#tpu.dimension_semantics<parallel>], iteration_bounds = array<i64: 2>, scalar_prefetch = 0 : i64, scratch_operands = 0 : i64, tpu.core_type = #tpu.core_type<tc>, window_params = [{transform_indices = @transform_0, window_bounds = array<i64: 128, 128>}, {pipeline_mode = #tpu.pipeline_mode<synchronous>, transform_indices = @transform_1, window_bounds = array<i64: 128, 256>}, {pipeline_mode = #tpu.pipeline_mode<synchronous>, transform_indices = @transform_2, window_bounds = array<i64: 1, 256>}, {pipeline_mode = #tpu.pipeline_mode<synchronous>, transform_indices = @transform_3, window_bounds = array<i64: 256, 256>}, {pipeline_mode = #tpu.pipeline_mode<synchronous>, transform_indices = @transform_4, window_bounds = array<i64: 1, 256>}, {pipeline_mode = #tpu.pipeline_mode<synchronous>, transform_indices = @transform_5, window_bounds = array<i64: 256, 128>}, {pipeline_mode = #tpu.pipeline_mode<synchronous>, transform_indices = @transform_6, window_bounds = array<i64: 1, 128>}, {transform_indices = @transform_7, window_bounds = array<i64: 128, 128>}]} {
    %c0 = arith.constant 0 : index
    %c0_0 = arith.constant 0 : index
    %0 = vector.load %arg1[%c0, %c0_0] : memref<128x128xbf16, #tpu.memory_space<vmem>>, vector<128x128xbf16>
    %c0_1 = arith.constant 0 : index
    %c0_2 = arith.constant 0 : index
    %1 = vector.load %arg2[%c0_1, %c0_2] : memref<128x256xbf16, #tpu.memory_space<vmem>>, vector<128x256xbf16>
    %cst = arith.constant dense<0.000000e+00> : vector<128x256xf32>
    %2 = tpu.matmul %0, %1, %cst {dimension_numbers = #tpu.dot_dimension_numbers<[1], [0], [0], [1], [0, 0, 1, 1], [], []>} : vector<128x128xbf16>, vector<128x256xbf16>, vector<128x256xf32> -> vector<128x256xf32>
    %c0_3 = arith.constant 0 : index
    %c0_4 = arith.constant 0 : index
    %3 = vector.load %arg3[%c0_3, %c0_4] : memref<1x256xf32, #tpu.memory_space<vmem>>, vector<1x256xf32>
    %4 = vector.broadcast %3 : vector<1x256xf32> to vector<128x256xf32>
    %5 = arith.addf %2, %4 : vector<128x256xf32>
    %6 = arith.mulf %5, %5 : vector<128x256xf32>
    %7 = arith.mulf %5, %6 : vector<128x256xf32>
    %cst_5 = arith.constant 4.471500e-02 : f32
    %8 = vector.broadcast %cst_5 : f32 to vector<128x256xf32>
    %9 = arith.mulf %8, %7 : vector<128x256xf32>
    %10 = arith.addf %5, %9 : vector<128x256xf32>
    %cst_6 = arith.constant 0.797884583 : f32
    %11 = vector.broadcast %cst_6 : f32 to vector<128x256xf32>
    %12 = arith.mulf %11, %10 : vector<128x256xf32>
    %13 = math.tanh %12 : vector<128x256xf32>
    %cst_7 = arith.constant 1.000000e+00 : f32
    %14 = vector.broadcast %cst_7 : f32 to vector<128x256xf32>
    %15 = arith.addf %14, %13 : vector<128x256xf32>
    %cst_8 = arith.constant 5.000000e-01 : f32
    %16 = vector.broadcast %cst_8 : f32 to vector<128x256xf32>
    %17 = arith.mulf %16, %15 : vector<128x256xf32>
    %18 = arith.mulf %5, %17 : vector<128x256xf32>
    %19 = arith.truncf %18 : vector<128x256xf32> to vector<128x256xbf16>
    %c0_9 = arith.constant 0 : index
    %c0_10 = arith.constant 0 : index
    %20 = vector.load %arg4[%c0_9, %c0_10] : memref<256x256xbf16, #tpu.memory_space<vmem>>, vector<256x256xbf16>
    %cst_11 = arith.constant dense<0.000000e+00> : vector<128x256xf32>
    %21 = tpu.matmul %19, %20, %cst_11 {dimension_numbers = #tpu.dot_dimension_numbers<[1], [0], [0], [1], [0, 0, 1, 1], [], []>} : vector<128x256xbf16>, vector<256x256xbf16>, vector<128x256xf32> -> vector<128x256xf32>
    %c0_12 = arith.constant 0 : index
    %c0_13 = arith.constant 0 : index
    %22 = vector.load %arg5[%c0_12, %c0_13] : memref<1x256xf32, #tpu.memory_space<vmem>>, vector<1x256xf32>
    %23 = vector.broadcast %22 : vector<1x256xf32> to vector<128x256xf32>
    %24 = arith.addf %21, %23 : vector<128x256xf32>
    %25 = arith.mulf %24, %24 : vector<128x256xf32>
    %26 = arith.mulf %24, %25 : vector<128x256xf32>
    %cst_14 = arith.constant 4.471500e-02 : f32
    %27 = vector.broadcast %cst_14 : f32 to vector<128x256xf32>
    %28 = arith.mulf %27, %26 : vector<128x256xf32>
    %29 = arith.addf %24, %28 : vector<128x256xf32>
    %cst_15 = arith.constant 0.797884583 : f32
    %30 = vector.broadcast %cst_15 : f32 to vector<128x256xf32>
    %31 = arith.mulf %30, %29 : vector<128x256xf32>
    %32 = math.tanh %31 : vector<128x256xf32>
    %cst_16 = arith.constant 1.000000e+00 : f32
    %33 = vector.broadcast %cst_16 : f32 to vector<128x256xf32>
    %34 = arith.addf %33, %32 : vector<128x256xf32>
    %cst_17 = arith.constant 5.000000e-01 : f32
    %35 = vector.broadcast %cst_17 : f32 to vector<128x256xf32>
    %36 = arith.mulf %35, %34 : vector<128x256xf32>
    %37 = arith.mulf %24, %36 : vector<128x256xf32>
    %38 = arith.truncf %37 : vector<128x256xf32> to vector<128x256xbf16>
    %c0_18 = arith.constant 0 : index
    %c0_19 = arith.constant 0 : index
    %39 = vector.load %arg6[%c0_18, %c0_19] : memref<256x128xbf16, #tpu.memory_space<vmem>>, vector<256x128xbf16>
    %cst_20 = arith.constant dense<0.000000e+00> : vector<128x128xf32>
    %40 = tpu.matmul %38, %39, %cst_20 {dimension_numbers = #tpu.dot_dimension_numbers<[1], [0], [0], [1], [0, 0, 1, 1], [], []>} : vector<128x256xbf16>, vector<256x128xbf16>, vector<128x128xf32> -> vector<128x128xf32>
    %c0_21 = arith.constant 0 : index
    %c0_22 = arith.constant 0 : index
    %41 = vector.load %arg7[%c0_21, %c0_22] : memref<1x128xf32, #tpu.memory_space<vmem>>, vector<1x128xf32>
    %42 = vector.broadcast %41 : vector<1x128xf32> to vector<128x128xf32>
    %43 = arith.addf %40, %42 : vector<128x128xf32>
    %44 = arith.mulf %43, %43 : vector<128x128xf32>
    %cst_23 = arith.constant dense<0.000000e+00> : vector<128xf32>
    %45 = vector.multi_reduction <add>, %44, %cst_23 [1] : vector<128x128xf32> to vector<128xf32>
    %46 = vector.shape_cast %45 : vector<128xf32> to vector<128x1xf32>
    %cst_24 = arith.constant 1.000000e-24 : f32
    %47 = vector.broadcast %cst_24 : f32 to vector<128x1xf32>
    %48 = arith.maximumf %46, %47 : vector<128x1xf32>
    %49 = math.rsqrt %48 : vector<128x1xf32>
    %50 = vector.broadcast %49 : vector<128x1xf32> to vector<128x128xf32>
    %51 = arith.mulf %43, %50 : vector<128x128xf32>
    %52 = arith.truncf %51 : vector<128x128xf32> to vector<128x128xbf16>
    %c0_25 = arith.constant 0 : index
    %c0_26 = arith.constant 0 : index
    %53 = vector.load %arg8[%c0_25, %c0_26] : memref<128x128xbf16, #tpu.memory_space<vmem>>, vector<128x128xbf16>
    tpu.vector_store %arg8[%c0_25, %c0_26], %52 {strides = array<i32>} : memref<128x128xbf16, #tpu.memory_space<vmem>>, vector<128x128xbf16>,
    return
  }
  func.func @transform_0(%arg0: i32) -> (i32, i32) {
    %c0_i32 = arith.constant 0 : i32
    %c0_i32_0 = arith.constant 0 : i32
    return %arg0, %c0_i32 : i32, i32
  }
  func.func @transform_1(%arg0: i32) -> (i32, i32) {
    %c0_i32 = arith.constant 0 : i32
    %c0_i32_0 = arith.constant 0 : i32
    %c0_i32_1 = arith.constant 0 : i32
    return %c0_i32, %c0_i32_0 : i32, i32
  }
  func.func @transform_2(%arg0: i32) -> (i32, i32) {
    %c0_i32 = arith.constant 0 : i32
    %c0_i32_0 = arith.constant 0 : i32
    %c0_i32_1 = arith.constant 0 : i32
    return %c0_i32, %c0_i32_0 : i32, i32
  }
  func.func @transform_3(%arg0: i32) -> (i32, i32) {
    %c0_i32 = arith.constant 0 : i32
    %c0_i32_0 = arith.constant 0 : i32
    %c0_i32_1 = arith.constant 0 : i32
    return %c0_i32, %c0_i32_0 : i32, i32
  }
  func.func @transform_4(%arg0: i32) -> (i32, i32) {
    %c0_i32 = arith.constant 0 : i32
    %c0_i32_0 = arith.constant 0 : i32
    %c0_i32_1 = arith.constant 0 : i32
    return %c0_i32, %c0_i32_0 : i32, i32
  }
  func.func @transform_5(%arg0: i32) -> (i32, i32) {
    %c0_i32 = arith.constant 0 : i32
    %c0_i32_0 = arith.constant 0 : i32
    %c0_i32_1 = arith.constant 0 : i32
    return %c0_i32, %c0_i32_0 : i32, i32
  }
  func.func @transform_6(%arg0: i32) -> (i32, i32) {
    %c0_i32 = arith.constant 0 : i32
    %c0_i32_0 = arith.constant 0 : i32
    %c0_i32_1 = arith.constant 0 : i32
    return %c0_i32, %c0_i32_0 : i32, i32
  }
  func.func @transform_7(%arg0: i32) -> (i32, i32) {
    %c0_i32 = arith.constant 0 : i32
    %c0_i32_0 = arith.constant 0 : i32
    return %arg0, %c0_i32 : i32, i32
  }
}

</mosaic_0001>

<llo_original>
// kernel: tpu_custom_call.1
$region0: #{tpu_custom_call.1}
  #allocation0 [shape = 'u32[]', space=smem, size = 0x4, offset = 0x4, fixed_abs, tag = 'smem constant byte address 0x4 - core index']
  #allocation1 [shape = 'u32[144,128]{1,0:T(1,128)}', space=vmem, size = 0x12000, scoped, tag = 'internal scratch']
  %s0 = inlined_call_operand.hbm [shape: bf16[256,128], index: 0, kind: input, shape index: {}]
  %s1 = inlined_call_operand.hbm [shape: bf16[128,256], index: 1, kind: input, shape index: {}]
  %s2 = inlined_call_operand.vmem [shape: f32[1,256], index: 2, kind: input, shape index: {}]
  %s3 = inlined_call_operand.hbm [shape: bf16[256,256], index: 3, kind: input, shape index: {}]
  %s4 = inlined_call_operand.vmem [shape: f32[1,256], index: 4, kind: input, shape index: {}]
  %s5 = inlined_call_operand.hbm [shape: bf16[256,128], index: 5, kind: input, shape index: {}]
  %s6 = inlined_call_operand.vmem [shape: f32[1,128], index: 6, kind: input, shape index: {}]
  %s7 = inlined_call_operand.hbm [shape: bf16[256,128], index: 7, kind: output, shape index: {}]
  %s8 = sld [smem:[#allocation0]]
  $region77: #{tpu_custom_call.1} parent=0
    _
  %s10 = ssub.s32 1, %s8
  %s11 = scalar_select 0, %s10, %s8
  $region1: #{tpu_custom_call.1} parent=0
    #allocation2 [shape = 'u8[65536]{0}', space=vmem, size = 0x10000, scoped, tag = 'input window, operand 0']
    #allocation3 [shape = 's32[2]{0}', space=sflag, size = 0x8, scoped, tag = 'scoped memory for tpu_custom_call.1']
    #allocation4 [shape = 's32[2]{0}', space=sflag, size = 0x8, scoped, tag = 'scoped memory for tpu_custom_call.1']
    #allocation5 [shape = 'u8[65536]{0}', space=vmem, size = 0x10000, scoped, tag = 'input window, operand 1, single buffered']
    #allocation6 [shape = 's32[1]{0}', space=sflag, size = 0x4, scoped, tag = 'scoped memory for tpu_custom_call.1']
    #allocation7 [shape = 'u8[131072]{0}', space=vmem, size = 0x20000, scoped, tag = 'input window, operand 3, single buffered']
    #allocation8 [shape = 'u8[65536]{0}', space=vmem, size = 0x10000, scoped, tag = 'input window, operand 5, single buffered']
    #allocation9 [shape = 's32[1]{0}', space=sflag, size = 0x4, scoped, tag = 'scoped memory for tpu_custom_call.1']
    #allocation10 [shape = 'u8[65536]{0}', space=vmem, size = 0x10000, scoped, tag = 'output window, operand 0']
    %12 = vsyncpa [#allocation3], 0
    %s13 = scalar_lea.sflag [#allocation3], 1
    %14 = vsyncpa %s13, 0
    %15 = vsyncpa [#allocation6], 0
    %16 = vsyncpa [#allocation9], 0
    %17 = vsyncpa [#allocation4], 0
    %s18 = scalar_lea.sflag [#allocation4], 1
    %19 = vsyncpa %s18, 0
    loop: start=0, step=1, limit=4
    $region2: #{tpu_custom_call.1} parent=1 // loop_pre_header
      _
    $region3: #{tpu_custom_call.1} parent=1 // loop_header
      %s21 = sphi 0, %s25
      %p22 = scmp.ge.s32.totalorder %s21, 4
      %s31 = sphi 0, %s33
      %s34 = sphi 0, %s31
      %s35 = sphi 0, %s34
      %s51 = sphi 0, %s35
      %s55 = sphi 0, %s55
      %s57 = sphi 0, %s55
      %s58 = sphi 0, %s57
      %s72 = sphi 0, %s58
      %s76 = sphi 0, %s76
      %s78 = sphi 0, %s76
      %s79 = sphi 0, %s78
      %s93 = sphi 0, %s79
      %s97 = sphi 0, %s97
      %s99 = sphi 0, %s97
      %s100 = sphi 0, %s99
      %s114 = sphi 0, %s100
      %s118 = sphi 0, %s118
      %s120 = sphi 0, %s118
      %s121 = sphi 0, %s120
      %s135 = sphi 0, %s121
      %s139 = sphi 0, %s139
      %s141 = sphi 0, %s139
      %s142 = sphi 0, %s141
      %s156 = sphi 0, %s142
      %s160 = sphi 0, %s160
      %s162 = sphi 0, %s160
      %s163 = sphi 0, %s162
      %s177 = sphi 0, %s163
      %s183 = sphi 0, %s185
      %s186 = sphi 0, %s183
      %s187 = sphi 0, %s186
      %s203 = sphi 0, %s187
    $region4: #{tpu_custom_call.1} parent=1 // loop_header_branch
      %24 = sbr.rel (%p22) target = $region8
    $region5: #{tpu_custom_call.1} parent=1 // loop_body
      %s26 = ssub.s32 %s21, 1
      %s27 = ssub.s32 %s21, 2
      %s28 = sadd.s32 %s21, 1
      %s29 = ssub.s32 %s21, %s28
      %p30 = scmp.eq.s32.totalorder %s29, 0
      %s32 = sadd.s32 %s31, 1
      %s33 = scalar_select %p30, %s31, %s32
      %p36 = pneg %p30
      %p37 = scmp.eq.s32.totalorder %s21, 1
      %p38 = por %p36, %p37
      %p39 = scmp.ne.s32.totalorder %s31, %s34
      %p40 = scmp.eq.s32.totalorder %s21, 0
      %p41 = por %p39, %p40
      %p42 = scmp.ne.s32.totalorder %s31, %s34
      %p43 = scmp.eq.s32.totalorder %s26, 1
      %p44 = por %p42, %p43
      %p45 = scmp.ne.s32.totalorder %s34, %s35
      %p46 = scmp.eq.s32.totalorder %s26, 0
      %p47 = por %p45, %p46
      %p48 = scmp.ne.s32.totalorder %s34, %s35
      %p49 = scmp.eq.s32.totalorder %s27, 1
      %p50 = por %p48, %p49
      %p52 = scmp.ne.s32.totalorder %s35, %s51
      %p53 = scmp.eq.s32.totalorder %s27, 0
      %p54 = por %p52, %p53
      %s56 = sadd.s32 %s55, 1
      %p59 = scmp.eq.s32.totalorder %s21, 1
      %p60 = scmp.ne.s32.totalorder %s55, %s57
      %p61 = scmp.eq.s32.totalorder %s21, 0
      %p62 = por %p60, %p61
      %p63 = scmp.ne.s32.totalorder %s55, %s57
      %p64 = scmp.eq.s32.totalorder %s26, 1
      %p65 = por %p63, %p64
      %p66 = scmp.ne.s32.totalorder %s57, %s58
      %p67 = scmp.eq.s32.totalorder %s26, 0
      %p68 = por %p66, %p67
      %p69 = scmp.ne.s32.totalorder %s57, %s58
      %p70 = scmp.eq.s32.totalorder %s27, 1
      %p71 = por %p69, %p70
      %p73 = scmp.ne.s32.totalorder %s58, %s72
      %p74 = scmp.eq.s32.totalorder %s27, 0
      %p75 = por %p73, %p74
      %s77 = sadd.s32 %s76, 1
      %p80 = scmp.eq.s32.totalorder %s21, 1
      %p81 = scmp.ne.s32.totalorder %s76, %s78
      %p82 = scmp.eq.s32.totalorder %s21, 0
      %p83 = por %p81, %p82
      %p84 = scmp.ne.s32.totalorder %s76, %s78
      %p85 = scmp.eq.s32.totalorder %s26, 1
      %p86 = por %p84, %p85
      %p87 = scmp.ne.s32.totalorder %s78, %s79
      %p88 = scmp.eq.s32.totalorder %s26, 0
      %p89 = por %p87, %p88
      %p90 = scmp.ne.s32.totalorder %s78, %s79
      %p91 = scmp.eq.s32.totalorder %s27, 1
      %p92 = por %p90, %p91
      %p94 = scmp.ne.s32.totalorder %s79, %s93
      %p95 = scmp.eq.s32.totalorder %s27, 0
      %p96 = por %p94, %p95
      %s98 = sadd.s32 %s97, 1
      %p101 = scmp.eq.s32.totalorder %s21, 1
      %p102 = scmp.ne.s32.totalorder %s97, %s99
      %p103 = scmp.eq.s32.totalorder %s21, 0
      %p104 = por %p102, %p103
      %p105 = scmp.ne.s32.totalorder %s97, %s99
      %p106 = scmp.eq.s32.totalorder %s26, 1
      %p107 = por %p105, %p106
      %p108 = scmp.ne.s32.totalorder %s99, %s100
      %p109 = scmp.eq.s32.totalorder %s26, 0
      %p110 = por %p108, %p109
      %p111 = scmp.ne.s32.totalorder %s99, %s100
      %p112 = scmp.eq.s32.totalorder %s27, 1
      %p113 = por %p111, %p112
      %p115 = scmp.ne.s32.totalorder %s100, %s114
      %p116 = scmp.eq.s32.totalorder %s27, 0
      %p117 = por %p115, %p116
      %s119 = sadd.s32 %s118, 1
      %p122 = scmp.eq.s32.totalorder %s21, 1
      %p123 = scmp.ne.s32.totalorder %s118, %s120
      %p124 = scmp.eq.s32.totalorder %s21, 0
      %p125 = por %p123, %p124
      %p126 = scmp.ne.s32.totalorder %s118, %s120
      %p127 = scmp.eq.s32.totalorder %s26, 1
      %p128 = por %p126, %p127
      %p129 = scmp.ne.s32.totalorder %s120, %s121
      %p130 = scmp.eq.s32.totalorder %s26, 0
      %p131 = por %p129, %p130
      %p132 = scmp.ne.s32.totalorder %s120, %s121
      %p133 = scmp.eq.s32.totalorder %s27, 1
      %p134 = por %p132, %p133
      %p136 = scmp.ne.s32.totalorder %s121, %s135
      %p137 = scmp.eq.s32.totalorder %s27, 0
      %p138 = por %p136, %p137
      %s140 = sadd.s32 %s139, 1
      %p143 = scmp.eq.s32.totalorder %s21, 1
      %p144 = scmp.ne.s32.totalorder %s139, %s141
      %p145 = scmp.eq.s32.totalorder %s21, 0
      %p146 = por %p144, %p145
      %p147 = scmp.ne.s32.totalorder %s139, %s141
      %p148 = scmp.eq.s32.totalorder %s26, 1
      %p149 = por %p147, %p148
      %p150 = scmp.ne.s32.totalorder %s141, %s142
      %p151 = scmp.eq.s32.totalorder %s26, 0
      %p152 = por %p150, %p151
      %p153 = scmp.ne.s32.totalorder %s141, %s142
      %p154 = scmp.eq.s32.totalorder %s27, 1
      %p155 = por %p153, %p154
      %p157 = scmp.ne.s32.totalorder %s142, %s156
      %p158 = scmp.eq.s32.totalorder %s27, 0
      %p159 = por %p157, %p158
      %s161 = sadd.s32 %s160, 1
      %p164 = scmp.eq.s32.totalorder %s21, 1
      %p165 = scmp.ne.s32.totalorder %s160, %s162
      %p166 = scmp.eq.s32.totalorder %s21, 0
      %p167 = por %p165, %p166
      %p168 = scmp.ne.s32.totalorder %s160, %s162
      %p169 = scmp.eq.s32.totalorder %s26, 1
      %p170 = por %p168, %p169
      %p171 = scmp.ne.s32.totalorder %s162, %s163
      %p172 = scmp.eq.s32.totalorder %s26, 0
      %p173 = por %p171, %p172
      %p174 = scmp.ne.s32.totalorder %s162, %s163
      %p175 = scmp.eq.s32.totalorder %s27, 1
      %p176 = por %p174, %p175
      %p178 = scmp.ne.s32.totalorder %s163, %s177
      %p179 = scmp.eq.s32.totalorder %s27, 0
      %p180 = por %p178, %p179
      %s181 = ssub.s32 %s21, %s28
      %p182 = scmp.eq.s32.totalorder %s181, 0
      %s184 = sadd.s32 %s183, 1
      %s185 = scalar_select %p182, %s183, %s184
      %p188 = pneg %p182
      %p189 = scmp.eq.s32.totalorder %s21, 1
      %p190 = por %p188, %p189
      %p191 = scmp.ne.s32.totalorder %s183, %s186
      %p192 = scmp.eq.s32.totalorder %s21, 0
      %p193 = por %p191, %p192
      %p194 = scmp.ne.s32.totalorder %s183, %s186
      %p195 = scmp.eq.s32.totalorder %s26, 1
      %p196 = por %p194, %p195
      %p197 = scmp.ne.s32.totalorder %s186, %s187
      %p198 = scmp.eq.s32.totalorder %s26, 0
      %p199 = por %p197, %p198
      %p200 = scmp.ne.s32.totalorder %s186, %s187
      %p201 = scmp.eq.s32.totalorder %s27, 1
      %p202 = por %p200, %p201
      %p204 = scmp.ne.s32.totalorder %s187, %s203
      %p205 = scmp.eq.s32.totalorder %s27, 0
      %p206 = por %p204, %p205
      %p207 = scmp.le.s32.totalorder 1, %s21
      %p208 = scmp.lt.s32.totalorder %s21, 3
      %p209 = pnand %p207, %p208
      %p210 = pneg %p209
      // Predicated region
      $region9: #{tpu_custom_call.1} parent=5 // pred_check
        _
      $region10: #{tpu_custom_call.1} parent=5 // pred_check_branch
        %212 = sbr.rel (%p209) target = $region12
      $region11: #{tpu_custom_call.1} parent=5 // pred_region
        %s213 = ssub.s32 %s21, 1
        // Predicated region
        $region13: #{tpu_custom_call.1} parent=11 // pred_check
          %p214 = pneg %p68
        $region14: #{tpu_custom_call.1} parent=11 // pred_check_branch
          %216 = sbr.rel (%p214) target = $region16
        $region15: #{tpu_custom_call.1} parent=11 // pred_region
          %s218 = ssub.s32 2048, 2048
          %219 = vsyncadd [#allocation6], %s218
          %s220 = sshll.u32 [#allocation5], 4
          %s221 = int_to_ptr.vmem [resolvable:$true] %s220
          %226 = dma.hbm_to_vmem [thread:$0]  %s1, 2048, %s221, [#allocation6], 128, 128, 8
        $region16: #{tpu_custom_call.1} parent=11 // pred_fallthru
          _
        // Predicated region
        $region17: #{tpu_custom_call.1} parent=11 // pred_check
          %p227 = pneg %p89
        $region18: #{tpu_custom_call.1} parent=11 // pred_check_branch
          %229 = sbr.rel (%p227) target = $region20
        $region19: #{tpu_custom_call.1} parent=11 // pred_region
          _
        $region20: #{tpu_custom_call.1} parent=11 // pred_fallthru
          _
        // Predicated region
        $region21: #{tpu_custom_call.1} parent=11 // pred_check
          %p230 = pneg %p110
        $region22: #{tpu_custom_call.1} parent=11 // pred_check_branch
          %232 = sbr.rel (%p230) target = $region24
        $region23: #{tpu_custom_call.1} parent=11 // pred_region
          %s234 = ssub.s32 4096, 4096
          %235 = vsyncadd [#allocation6], %s234
          %s236 = sshll.u32 [#allocation7], 4
          %s237 = int_to_ptr.vmem [resolvable:$true] %s236
          %242 = dma.hbm_to_vmem [thread:$0]  %s3, 4096, %s237, [#allocation6], 128, 128, 8
        $region24: #{tpu_custom_call.1} parent=11 // pred_fallthru
          _
        // Predicated region
        $region25: #{tpu_custom_call.1} parent=11 // pred_check
          %p243 = pneg %p131
        $region26: #{tpu_custom_call.1} parent=11 // pred_check_branch
          %245 = sbr.rel (%p243) target = $region28
        $region27: #{tpu_custom_call.1} parent=11 // pred_region
          _
        $region28: #{tpu_custom_call.1} parent=11 // pred_fallthru
          _
        // Predicated region
        $region29: #{tpu_custom_call.1} parent=11 // pred_check
          %p246 = pneg %p152
        $region30: #{tpu_custom_call.1} parent=11 // pred_check_branch
          %248 = sbr.rel (%p246) target = $region32
        $region31: #{tpu_custom_call.1} parent=11 // pred_region
          %s250 = ssub.s32 2048, 2048
          %251 = vsyncadd [#allocation9], %s250
          %s252 = sshll.u32 [#allocation8], 4
          %s253 = int_to_ptr.vmem [resolvable:$true] %s252
          %258 = dma.hbm_to_vmem [thread:$0]  %s5, 2048, %s253, [#allocation9], 64, 64, 4
        $region32: #{tpu_custom_call.1} parent=11 // pred_fallthru
          _
        // Predicated region
        $region33: #{tpu_custom_call.1} parent=11 // pred_check
          %p259 = pneg %p173
        $region34: #{tpu_custom_call.1} parent=11 // pred_check_branch
          %261 = sbr.rel (%p259) target = $region36
        $region35: #{tpu_custom_call.1} parent=11 // pred_region
          _
        $region36: #{tpu_custom_call.1} parent=11 // pred_fallthru
          _
      $region12: #{tpu_custom_call.1} parent=5 // pred_fallthru
        _
      %p262 = scmp.lt.s32.totalorder %s21, 2
      // Predicated region
      $region37: #{tpu_custom_call.1} parent=5 // pred_check
        %p263 = pneg %p262
      $region38: #{tpu_custom_call.1} parent=5 // pred_check_branch
        %265 = sbr.rel (%p263) target = $region40
      $region39: #{tpu_custom_call.1} parent=5 // pred_region
        // Predicated region
        $region41: #{tpu_custom_call.1} parent=39 // pred_check
          %p266 = pneg %p41
        $region42: #{tpu_custom_call.1} parent=39 // pred_check_branch
          %268 = sbr.rel (%p266) target = $region44
        $region43: #{tpu_custom_call.1} parent=39 // pred_region
          %s269 = sand.u32 %s31, 1
          %s270 = scalar_lea.sflag [#allocation3], %s269
          %s271 = sand.u32 %s31, 1
          %s272 = smul.addr %s271, 64
          %s273 = scalar_lea.vmem [#allocation2], %s272
          %s274 = smul.u32 16, %s21
          %s276 = ssub.s32 1024, 1024
          %277 = vsyncadd %s270, %s276
          %s278 = smul.addr %s274, 64
          %s279 = scalar_lea.hbm %s0, %s278
          %s280 = sshll.u32 %s273, 4
          %s281 = int_to_ptr.vmem [resolvable:$true] %s280
          %286 = dma.hbm_to_vmem [thread:$0]  %s279, 1024, %s281, %s270, 64, 64, 4
        $region44: #{tpu_custom_call.1} parent=39 // pred_fallthru
          _
      $region40: #{tpu_custom_call.1} parent=5 // pred_fallthru
        _
      %p287 = scmp.le.s32.totalorder 1, %s21
      %p288 = scmp.lt.s32.totalorder %s21, 3
      %p289 = pnand %p287, %p288
      %p290 = pneg %p289
      // Predicated region
      $region45: #{tpu_custom_call.1} parent=5 // pred_check
        _
      $region46: #{tpu_custom_call.1} parent=5 // pred_check_branch
        %292 = sbr.rel (%p289) target = $region48
      $region47: #{tpu_custom_call.1} parent=5 // pred_region
        %s293 = ssub.s32 %s21, 1
        %s294 = sand.u32 %s34, 1
        %s295 = scalar_lea.sflag [#allocation3], %s294
        %s296 = sand.u32 %s34, 1
        %s297 = smul.addr %s296, 64
        %s298 = scalar_lea.vmem [#allocation2], %s297
        // Predicated region
        $region49: #{tpu_custom_call.1} parent=47 // pred_check
          %p299 = pneg %p47
        $region50: #{tpu_custom_call.1} parent=47 // pred_check_branch
          %301 = sbr.rel (%p299) target = $region52
        $region51: #{tpu_custom_call.1} parent=47 // pred_region
          %302 = dma.done %s295, 1024
        $region52: #{tpu_custom_call.1} parent=47 // pred_fallthru
          _
        // Predicated region
        $region53: #{tpu_custom_call.1} parent=47 // pred_check
          %p303 = pneg %p68
        $region54: #{tpu_custom_call.1} parent=47 // pred_check_branch
          %305 = sbr.rel (%p303) target = $region56
        $region55: #{tpu_custom_call.1} parent=47 // pred_region
          %306 = dma.done [#allocation6], 2048
        $region56: #{tpu_custom_call.1} parent=47 // pred_fallthru
          _
        // Predicated region
        $region57: #{tpu_custom_call.1} parent=47 // pred_check
          %p307 = pneg %p110
        $region58: #{tpu_custom_call.1} parent=47 // pred_check_branch
          %309 = sbr.rel (%p307) target = $region60
        $region59: #{tpu_custom_call.1} parent=47 // pred_region
          %310 = dma.done [#allocation6], 4096
        $region60: #{tpu_custom_call.1} parent=47 // pred_fallthru
          _
        // Predicated region
        $region61: #{tpu_custom_call.1} parent=47 // pred_check
          %p311 = pneg %p152
        $region62: #{tpu_custom_call.1} parent=47 // pred_check_branch
          %313 = sbr.rel (%p311) target = $region64
        $region63: #{tpu_custom_call.1} parent=47 // pred_region
          %314 = dma.done [#allocation9], 2048
        $region64: #{tpu_custom_call.1} parent=47 // pred_fallthru
          _
        %s315 = sand.u32 %s34, 1
        %s316 = scalar_lea.sflag [#allocation3], %s315
        %s317 = sand.u32 %s34, 1
        %s318 = smul.addr %s317, 64
        %s319 = scalar_lea.vmem [#allocation2], %s318
        %p320 = pneg %p47
        %p321 = pneg %p44
        %p322 = pneg %p68
        %p323 = pneg %p65
        %p324 = pneg %p89
        %p325 = pneg %p86
        %p326 = pneg %p110
        %p327 = pneg %p107
        %p328 = pneg %p131
        %p329 = pneg %p128
        %p330 = pneg %p152
        %p331 = pneg %p149
        %p332 = pneg %p173
        %p333 = pneg %p170
        %p334 = pneg %p199
        %p335 = pneg %p196
        %s336 = sand.u32 %s186, 1
        %s337 = scalar_lea.sflag [#allocation4], %s336
        %s338 = sand.u32 %s186, 1
        %s339 = smul.addr %s338, 64
        %s340 = scalar_lea.vmem [#allocation10], %s339
        %s341 = smul.u32 16, %s26
        %s342 = smul.u32 16, %s26
        %v344 = vld [vmem:[%s298] sm:$0xf]
        %v345 = vld [vmem:[%s298 + $0x4] sm:$0xf]
        %v346 = vld [vmem:[%s298 + $0x8] sm:$0xf]
        %v347 = vld [vmem:[%s298 + $0xc] sm:$0xf]
        %v348 = vld [vmem:[%s298 + $0x10] sm:$0xf]
        %v349 = vld [vmem:[%s298 + $0x14] sm:$0xf]
        %v350 = vld [vmem:[%s298 + $0x18] sm:$0xf]
        %v351 = vld [vmem:[%s298 + $0x1c] sm:$0xf]
        %v352 = vld [vmem:[%s298 + $0x20] sm:$0xf]
        %v353 = vld [vmem:[%s298 + $0x24] sm:$0xf]
        %v354 = vld [vmem:[%s298 + $0x28] sm:$0xf]
        %v355 = vld [vmem:[%s298 + $0x2c] sm:$0xf]
        %v356 = vld [vmem:[%s298 + $0x30] sm:$0xf]
        %v357 = vld [vmem:[%s298 + $0x34] sm:$0xf]
        %v358 = vld [vmem:[%s298 + $0x38] sm:$0xf]
        %v359 = vld [vmem:[%s298 + $0x3c] sm:$0xf]
        %v360 = vld [vmem:[#allocation5] sm:$0xff]
        %v361 = vld [vmem:[#allocation5 + $0x8] sm:$0xff]
        %v362 = vld [vmem:[#allocation5 + $0x10] sm:$0xff]
        %v363 = vld [vmem:[#allocation5 + $0x18] sm:$0xff]
        %v364 = vld [vmem:[#allocation5 + $0x20] sm:$0xff]
        %v365 = vld [vmem:[#allocation5 + $0x28] sm:$0xff]
        %v366 = vld [vmem:[#allocation5 + $0x30] sm:$0xff]
        %v367 = vld [vmem:[#allocation5 + $0x38] sm:$0xff]
        %v368 = vld [vmem:[#allocation5 + $0x40] sm:$0xff]
        %v369 = vld [vmem:[#allocation5 + $0x48] sm:$0xff]
        %v370 = vld [vmem:[#allocation5 + $0x50] sm:$0xff]
        %v371 = vld [vmem:[#allocation5 + $0x58] sm:$0xff]
        %v372 = vld [vmem:[#allocation5 + $0x60] sm:$0xff]
        %v373 = vld [vmem:[#allocation5 + $0x68] sm:$0xff]
        %v374 = vld [vmem:[#allocation5 + $0x70] sm:$0xff]
        %v375 = vld [vmem:[#allocation5 + $0x78] sm:$0xff]
        %v376 = vld [vmem:[%s2] sm:$0x3]
        %v378 = vlaneseq
        %v379 = vshrl.u32 %v378, 7
        %v380 = vsub.s32 0, %v379
        %v381 = vrot.slane %v376, %v380
        %v382 = vlaneseq
        %v383 = vshrl.u32 %v382, 7
        %v384 = vsub.s32 1, %v383
        %v385 = vrot.slane %v376, %v384
        %v404 = vunpack.c.l.b16 %v344
        %v405 = vunpack.c.l.b16 %v345
        %v406 = vunpack.c.l.b16 %v346
        %v407 = vunpack.c.l.b16 %v347
        %v408 = vunpack.c.l.b16 %v348
        %v409 = vunpack.c.l.b16 %v349
        %v410 = vunpack.c.l.b16 %v350
        %v411 = vunpack.c.l.b16 %v351
        %v412 = vunpack.c.l.b16 %v352
        %v413 = vunpack.c.l.b16 %v353
        %v414 = vunpack.c.l.b16 %v354
        %v415 = vunpack.c.l.b16 %v355
        %v416 = vunpack.c.l.b16 %v356
        %v417 = vunpack.c.l.b16 %v357
        %v418 = vunpack.c.l.b16 %v358
        %v419 = vunpack.c.l.b16 %v359
        %v420 = vpack.c.b16 %v405, %v404
        %v421 = vpack.c.b16 %v407, %v406
        %v422 = vpack.c.b16 %v409, %v408
        %v423 = vpack.c.b16 %v411, %v410
        %v424 = vpack.c.b16 %v413, %v412
        %v425 = vpack.c.b16 %v415, %v414
        %v426 = vpack.c.b16 %v417, %v416
        %v427 = vpack.c.b16 %v419, %v418
        %v452 = vunpack.c.l.b16 %v360
        %v453 = vunpack.c.h.b16 %v360
        %v454 = vunpack.c.l.b16 %v361
        %v455 = vunpack.c.h.b16 %v361
        %v456 = vunpack.c.l.b16 %v362
        %v457 = vunpack.c.h.b16 %v362
        %v458 = vunpack.c.l.b16 %v363
        %v459 = vunpack.c.h.b16 %v363
        %v460 = vunpack.c.l.b16 %v364
        %v461 = vunpack.c.h.b16 %v364
        %v462 = vunpack.c.l.b16 %v365
        %v463 = vunpack.c.h.b16 %v365
        %v464 = vunpack.c.l.b16 %v366
        %v465 = vunpack.c.h.b16 %v366
        %v466 = vunpack.c.l.b16 %v367
        %v467 = vunpack.c.h.b16 %v367
        %v468 = vunpack.c.l.b16 %v368
        %v469 = vunpack.c.h.b16 %v368
        %v470 = vunpack.c.l.b16 %v369
        %v471 = vunpack.c.h.b16 %v369
        %v472 = vunpack.c.l.b16 %v370
        %v473 = vunpack.c.h.b16 %v370
        %v474 = vunpack.c.l.b16 %v371
        %v475 = vunpack.c.h.b16 %v371
        %v476 = vunpack.c.l.b16 %v372
        %v477 = vunpack.c.h.b16 %v372
        %v478 = vunpack.c.l.b16 %v373
        %v479 = vunpack.c.h.b16 %v373
        %v480 = vunpack.c.l.b16 %v374
        %v481 = vunpack.c.h.b16 %v374
        %v482 = vunpack.c.l.b16 %v375
        %v483 = vunpack.c.h.b16 %v375
        %v484 = vpack.c.b16 %v454, %v452
        %v485 = vpack.c.b16 %v455, %v453
        %v486 = vpack.c.b16 %v458, %v456
        %v487 = vpack.c.b16 %v459, %v457
        %v488 = vpack.c.b16 %v462, %v460
        %v489 = vpack.c.b16 %v463, %v461
        %v490 = vpack.c.b16 %v466, %v464
        %v491 = vpack.c.b16 %v467, %v465
        %v492 = vpack.c.b16 %v470, %v468
        %v493 = vpack.c.b16 %v471, %v469
        %v494 = vpack.c.b16 %v474, %v472
        %v495 = vpack.c.b16 %v475, %v473
        %v496 = vpack.c.b16 %v478, %v476
        %v497 = vpack.c.b16 %v479, %v477
        %v498 = vpack.c.b16 %v482, %v480
        %v499 = vpack.c.b16 %v483, %v481
        %516 = vmatprep.subr.bf16.mxu0 %v499
        %517 = vmatpush1.bf16.msra.mxu0 %v498
        %518 = vmatprep.subr.bf16.mxu0 %v497
        %519 = vmatpush1.bf16.msra.mxu0 %v496
        %520 = vmatprep.subr.bf16.mxu0 %v495
        %521 = vmatpush1.bf16.msra.mxu0 %v494
        %522 = vmatprep.subr.bf16.mxu0 %v493
        %523 = vmatpush1.bf16.msra.mxu0 %v492
        %524 = vmatprep.subr.bf16.mxu0 %v491
        %525 = vmatpush1.bf16.msra.mxu0 %v490
        %526 = vmatprep.subr.bf16.mxu0 %v489
        %527 = vmatpush1.bf16.msra.mxu0 %v488
        %528 = vmatprep.subr.bf16.mxu0 %v487
        %529 = vmatpush1.bf16.msra.mxu0 %v486
        %530 = vmatprep.subr.bf16.mxu0 %v485
        %531 = vmatpush1.bf16.msra.mxu0 %v484
        %532 = vmatprep.subr.bf16.mxu0 0
        %533 = vmatpush2.bf16.msra.mxu0 0
        %534 = vmatprep.subr.bf16.mxu0 0
        %535 = vmatpush2.bf16.msra.mxu0 0
        %536 = vmatprep.subr.bf16.mxu0 0
        %537 = vmatpush2.bf16.msra.mxu0 0
        %538 = vmatprep.subr.bf16.mxu0 0
        %539 = vmatpush2.bf16.msra.mxu0 0
        %540 = vmatprep.subr.bf16.mxu0 0
        %541 = vmatpush2.bf16.msra.mxu0 0
        %542 = vmatprep.subr.bf16.mxu0 0
        %543 = vmatpush2.bf16.msra.mxu0 0
        %544 = vmatprep.subr.bf16.mxu0 0
        %545 = vmatpush2.bf16.msra.mxu0 0
        %546 = vmatprep.subr.bf16.mxu0 0
        %547 = vmatpush2.bf16.msra.mxu0 0
        %548 = vmatprep.mubr.bf16.mxu0 0
        %549 = vmatmul.mubr.bf16.gmra.mxu0 %v420
        %v550 = vpop.f32.mrf.mxu0
        %v551 = vadd.f32 %v381, %v550
        %v552 = vpop.f32.mrf.mxu0
        %v553 = vadd.f32 %v385, %v552
        %v554 = vpop.f32.mrf.mxu0
        %v555 = vadd.f32 %v381, %v554
        %v556 = vpop.f32.mrf.mxu0
        %v557 = vadd.f32 %v385, %v556
        %558 = vmatprep.mubr.bf16.mxu0 0
        %559 = vmatmul.mubr.bf16.gmra.mxu0 %v421
        %v560 = vpop.f32.mrf.mxu0
        %v561 = vadd.f32 %v381, %v560
        %v562 = vpop.f32.mrf.mxu0
        %v563 = vadd.f32 %v385, %v562
        %v564 = vpop.f32.mrf.mxu0
        %v565 = vadd.f32 %v381, %v564
        %v566 = vpop.f32.mrf.mxu0
        %v567 = vadd.f32 %v385, %v566
        %568 = vmatprep.mubr.bf16.mxu0 0
        %569 = vmatmul.mubr.bf16.gmra.mxu0 %v422
        %v570 = vpop.f32.mrf.mxu0
        %v571 = vadd.f32 %v381, %v570
        %v572 = vpop.f32.mrf.mxu0
        %v573 = vadd.f32 %v385, %v572
        %v574 = vpop.f32.mrf.mxu0
        %v575 = vadd.f32 %v381, %v574
        %v576 = vpop.f32.mrf.mxu0
        %v577 = vadd.f32 %v385, %v576
        %578 = vmatprep.mubr.bf16.mxu0 0
        %579 = vmatmul.mubr.bf16.gmra.mxu0 %v423
        %v580 = vpop.f32.mrf.mxu0
        %v581 = vadd.f32 %v381, %v580
        %v582 = vpop.f32.mrf.mxu0
        %v583 = vadd.f32 %v385, %v582
        %v584 = vpop.f32.mrf.mxu0
        %v585 = vadd.f32 %v381, %v584
        %v586 = vpop.f32.mrf.mxu0
        %v587 = vadd.f32 %v385, %v586
        %588 = vmatprep.mubr.bf16.mxu0 0
        %589 = vmatmul.mubr.bf16.gmra.mxu0 %v424
        %v590 = vpop.f32.mrf.mxu0
        %v591 = vadd.f32 %v381, %v590
        %v592 = vpop.f32.mrf.mxu0
        %v593 = vadd.f32 %v385, %v592
        %v594 = vpop.f32.mrf.mxu0
        %v595 = vadd.f32 %v381, %v594
        %v596 = vpop.f32.mrf.mxu0
        %v597 = vadd.f32 %v385, %v596
        %598 = vmatprep.mubr.bf16.mxu0 0
        %599 = vmatmul.mubr.bf16.gmra.mxu0 %v425
        %v600 = vpop.f32.mrf.mxu0
        %v601 = vadd.f32 %v381, %v600
        %v602 = vpop.f32.mrf.mxu0
        %v603 = vadd.f32 %v385, %v602
        %v604 = vpop.f32.mrf.mxu0
        %v605 = vadd.f32 %v381, %v604
        %v606 = vpop.f32.mrf.mxu0
        %v607 = vadd.f32 %v385, %v606
        %608 = vmatprep.mubr.bf16.mxu0 0
        %609 = vmatmul.mubr.bf16.gmra.mxu0 %v426
        %v610 = vpop.f32.mrf.mxu0
        %v611 = vadd.f32 %v381, %v610
        %v612 = vpop.f32.mrf.mxu0
        %v613 = vadd.f32 %v385, %v612
        %v614 = vpop.f32.mrf.mxu0
        %v615 = vadd.f32 %v381, %v614
        %v616 = vpop.f32.mrf.mxu0
        %v617 = vadd.f32 %v385, %v616
        %618 = vmatprep.mubr.bf16.mxu0 0
        %619 = vmatmul.mubr.bf16.gmra.mxu0 %v427
        %v620 = vpop.f32.mrf.mxu0
        %v621 = vadd.f32 %v381, %v620
        %v622 = vpop.f32.mrf.mxu0
        %v623 = vadd.f32 %v385, %v622
        %v624 = vpop.f32.mrf.mxu0
        %v625 = vadd.f32 %v381, %v624
        %v626 = vpop.f32.mrf.mxu0
        %v627 = vadd.f32 %v385, %v626
        %628 = vdwg.mxu0
        %v629 = vmul.f32 %v551, %v551
        %v630 = vmul.f32 %v553, %v553
        %v631 = vmul.f32 %v555, %v555
        %v632 = vmul.f32 %v557, %v557
        %v633 = vmul.f32 %v561, %v561
        %v634 = vmul.f32 %v563, %v563
        %v635 = vmul.f32 %v565, %v565
        %v636 = vmul.f32 %v567, %v567
        %v637 = vmul.f32 %v571, %v571
        %v638 = vmul.f32 %v573, %v573
        %v639 = vmul.f32 %v575, %v575
        %v640 = vmul.f32 %v577, %v577
        %v641 = vmul.f32 %v581, %v581
        %v642 = vmul.f32 %v583, %v583
        %v643 = vmul.f32 %v585, %v585
        %v644 = vmul.f32 %v587, %v587
        %v645 = vmul.f32 %v591, %v591
        %v646 = vmul.f32 %v593, %v593
        %v647 = vmul.f32 %v595, %v595
        %v648 = vmul.f32 %v597, %v597
        %v649 = vmul.f32 %v601, %v601
        %v650 = vmul.f32 %v603, %v603
        %v651 = vmul.f32 %v605, %v605
        %v652 = vmul.f32 %v607, %v607
        %v653 = vmul.f32 %v611, %v611
        %v654 = vmul.f32 %v613, %v613
        %v655 = vmul.f32 %v615, %v615
        %v656 = vmul.f32 %v617, %v617
        %v657 = vmul.f32 %v621, %v621
        %v658 = vmul.f32 %v623, %v623
        %v659 = vmul.f32 %v625, %v625
        %v660 = vmul.f32 %v627, %v627
        %v661 = vmul.f32 %v551, %v629
        %v662 = vmul.f32 %v553, %v630
        %v663 = vmul.f32 %v555, %v631
        %v664 = vmul.f32 %v557, %v632
        %v665 = vmul.f32 %v561, %v633
        %v666 = vmul.f32 %v563, %v634
        %v667 = vmul.f32 %v565, %v635
        %v668 = vmul.f32 %v567, %v636
        %v669 = vmul.f32 %v571, %v637
        %v670 = vmul.f32 %v573, %v638
        %v671 = vmul.f32 %v575, %v639
        %v672 = vmul.f32 %v577, %v640
        %v673 = vmul.f32 %v581, %v641
        %v674 = vmul.f32 %v583, %v642
        %v675 = vmul.f32 %v585, %v643
        %v676 = vmul.f32 %v587, %v644
        %v677 = vmul.f32 %v591, %v645
        %v678 = vmul.f32 %v593, %v646
        %v679 = vmul.f32 %v595, %v647
        %v680 = vmul.f32 %v597, %v648
        %v681 = vmul.f32 %v601, %v649
        %v682 = vmul.f32 %v603, %v650
        %v683 = vmul.f32 %v605, %v651
        %v684 = vmul.f32 %v607, %v652
        %v685 = vmul.f32 %v611, %v653
        %v686 = vmul.f32 %v613, %v654
        %v687 = vmul.f32 %v615, %v655
        %v688 = vmul.f32 %v617, %v656
        %v689 = vmul.f32 %v621, %v657
        %v690 = vmul.f32 %v623, %v658
        %v691 = vmul.f32 %v625, %v659
        %v692 = vmul.f32 %v627, %v660
        %v693 = vmul.f32 %v661, 0.044715
        %v694 = vmul.f32 %v662, 0.044715
        %v695 = vmul.f32 %v663, 0.044715
        %v696 = vmul.f32 %v664, 0.044715
        %v697 = vmul.f32 %v665, 0.044715
        %v698 = vmul.f32 %v666, 0.044715
        %v699 = vmul.f32 %v667, 0.044715
        %v700 = vmul.f32 %v668, 0.044715
        %v701 = vmul.f32 %v669, 0.044715
        %v702 = vmul.f32 %v670, 0.044715
        %v703 = vmul.f32 %v671, 0.044715
        %v704 = vmul.f32 %v672, 0.044715
        %v705 = vmul.f32 %v673, 0.044715
        %v706 = vmul.f32 %v674, 0.044715
        %v707 = vmul.f32 %v675, 0.044715
        %v708 = vmul.f32 %v676, 0.044715
        %v709 = vmul.f32 %v677, 0.044715
        %v710 = vmul.f32 %v678, 0.044715
        %v711 = vmul.f32 %v679, 0.044715
        %v712 = vmul.f32 %v680, 0.044715
        %v713 = vmul.f32 %v681, 0.044715
        %v714 = vmul.f32 %v682, 0.044715
        %v715 = vmul.f32 %v683, 0.044715
        %v716 = vmul.f32 %v684, 0.044715
        %v717 = vmul.f32 %v685, 0.044715
        %v718 = vmul.f32 %v686, 0.044715
        %v719 = vmul.f32 %v687, 0.044715
        %v720 = vmul.f32 %v688, 0.044715
        %v721 = vmul.f32 %v689, 0.044715
        %v722 = vmul.f32 %v690, 0.044715
        %v723 = vmul.f32 %v691, 0.044715
        %v724 = vmul.f32 %v692, 0.044715
        %v725 = vadd.f32 %v551, %v693
        %v726 = vadd.f32 %v553, %v694
        %v727 = vadd.f32 %v555, %v695
        %v728 = vadd.f32 %v557, %v696
        %v729 = vadd.f32 %v561, %v697
        %v730 = vadd.f32 %v563, %v698
        %v731 = vadd.f32 %v565, %v699
        %v732 = vadd.f32 %v567, %v700
        %v733 = vadd.f32 %v571, %v701
        %v734 = vadd.f32 %v573, %v702
        %v735 = vadd.f32 %v575, %v703
        %v736 = vadd.f32 %v577, %v704
        %v737 = vadd.f32 %v581, %v705
        %v738 = vadd.f32 %v583, %v706
        %v739 = vadd.f32 %v585, %v707
        %v740 = vadd.f32 %v587, %v708
        %v741 = vadd.f32 %v591, %v709
        %v742 = vadd.f32 %v593, %v710
        %v743 = vadd.f32 %v595, %v711
        %v744 = vadd.f32 %v597, %v712
        %v745 = vadd.f32 %v601, %v713
        %v746 = vadd.f32 %v603, %v714
        %v747 = vadd.f32 %v605, %v715
        %v748 = vadd.f32 %v607, %v716
        %v749 = vadd.f32 %v611, %v717
        %v750 = vadd.f32 %v613, %v718
        %v751 = vadd.f32 %v615, %v719
        %v752 = vadd.f32 %v617, %v720
        %v753 = vadd.f32 %v621, %v721
        %v754 = vadd.f32 %v623, %v722
        %v755 = vadd.f32 %v625, %v723
        %v756 = vadd.f32 %v627, %v724
        %v757 = vmul.f32 %v725, 0.7978846
        %v758 = vmul.f32 %v726, 0.7978846
        %v759 = vmul.f32 %v727, 0.7978846
        %v760 = vmul.f32 %v728, 0.7978846
        %v761 = vmul.f32 %v729, 0.7978846
        %v762 = vmul.f32 %v730, 0.7978846
        %v763 = vmul.f32 %v731, 0.7978846
        %v764 = vmul.f32 %v732, 0.7978846
        %v765 = vmul.f32 %v733, 0.7978846
        %v766 = vmul.f32 %v734, 0.7978846
        %v767 = vmul.f32 %v735, 0.7978846
        %v768 = vmul.f32 %v736, 0.7978846
        %v769 = vmul.f32 %v737, 0.7978846
        %v770 = vmul.f32 %v738, 0.7978846
        %v771 = vmul.f32 %v739, 0.7978846
        %v772 = vmul.f32 %v740, 0.7978846
        %v773 = vmul.f32 %v741, 0.7978846
        %v774 = vmul.f32 %v742, 0.7978846
        %v775 = vmul.f32 %v743, 0.7978846
        %v776 = vmul.f32 %v744, 0.7978846
        %v777 = vmul.f32 %v745, 0.7978846
        %v778 = vmul.f32 %v746, 0.7978846
        %v779 = vmul.f32 %v747, 0.7978846
        %v780 = vmul.f32 %v748, 0.7978846
        %v781 = vmul.f32 %v749, 0.7978846
        %v782 = vmul.f32 %v750, 0.7978846
        %v783 = vmul.f32 %v751, 0.7978846
        %v784 = vmul.f32 %v752, 0.7978846
        %v785 = vmul.f32 %v753, 0.7978846
        %v786 = vmul.f32 %v754, 0.7978846
        %v787 = vmul.f32 %v755, 0.7978846
        %v788 = vmul.f32 %v756, 0.7978846
        %v789 = vtanh.pop %v757
        %v790 = vtanh.pop %v758
        %v791 = vtanh.pop %v759
        %v792 = vtanh.pop %v760
        %v793 = vtanh.pop %v761
        %v794 = vtanh.pop %v762
        %v795 = vtanh.pop %v763
        %v796 = vtanh.pop %v764
        %v797 = vtanh.pop %v765
        %v798 = vtanh.pop %v766
        %v799 = vtanh.pop %v767
        %v800 = vtanh.pop %v768
        %v801 = vtanh.pop %v769
        %v802 = vtanh.pop %v770
        %v803 = vtanh.pop %v771
        %v804 = vtanh.pop %v772
        %v805 = vtanh.pop %v773
        %v806 = vtanh.pop %v774
        %v807 = vtanh.pop %v775
        %v808 = vtanh.pop %v776
        %v809 = vtanh.pop %v777
        %v810 = vtanh.pop %v778
        %v811 = vtanh.pop %v779
        %v812 = vtanh.pop %v780
        %v813 = vtanh.pop %v781
        %v814 = vtanh.pop %v782
        %v815 = vtanh.pop %v783
        %v816 = vtanh.pop %v784
        %v817 = vtanh.pop %v785
        %v818 = vtanh.pop %v786
        %v819 = vtanh.pop %v787
        %v820 = vtanh.pop %v788
        %v821 = vadd.f32 %v789, 1.0
        %v822 = vadd.f32 %v790, 1.0
        %v823 = vadd.f32 %v791, 1.0
        %v824 = vadd.f32 %v792, 1.0
        %v825 = vadd.f32 %v793, 1.0
        %v826 = vadd.f32 %v794, 1.0
        %v827 = vadd.f32 %v795, 1.0
        %v828 = vadd.f32 %v796, 1.0
        %v829 = vadd.f32 %v797, 1.0
        %v830 = vadd.f32 %v798, 1.0
        %v831 = vadd.f32 %v799, 1.0
        %v832 = vadd.f32 %v800, 1.0
        %v833 = vadd.f32 %v801, 1.0
        %v834 = vadd.f32 %v802, 1.0
        %v835 = vadd.f32 %v803, 1.0
        %v836 = vadd.f32 %v804, 1.0
        %v837 = vadd.f32 %v805, 1.0
        %v838 = vadd.f32 %v806, 1.0
        %v839 = vadd.f32 %v807, 1.0
        %v840 = vadd.f32 %v808, 1.0
        %v841 = vadd.f32 %v809, 1.0
        %v842 = vadd.f32 %v810, 1.0
        %v843 = vadd.f32 %v811, 1.0
        %v844 = vadd.f32 %v812, 1.0
        %v845 = vadd.f32 %v813, 1.0
        %v846 = vadd.f32 %v814, 1.0
        %v847 = vadd.f32 %v815, 1.0
        %v848 = vadd.f32 %v816, 1.0
        %v849 = vadd.f32 %v817, 1.0
        %v850 = vadd.f32 %v818, 1.0
        %v851 = vadd.f32 %v819, 1.0
        %v852 = vadd.f32 %v820, 1.0
        %v853 = vmul.f32 %v821, 0.5
        %v854 = vmul.f32 %v822, 0.5
        %v855 = vmul.f32 %v823, 0.5
        %v856 = vmul.f32 %v824, 0.5
        %v857 = vmul.f32 %v825, 0.5
        %v858 = vmul.f32 %v826, 0.5
        %v859 = vmul.f32 %v827, 0.5
        %v860 = vmul.f32 %v828, 0.5
        %v861 = vmul.f32 %v829, 0.5
        %v862 = vmul.f32 %v830, 0.5
        %v863 = vmul.f32 %v831, 0.5
        %v864 = vmul.f32 %v832, 0.5
        %v865 = vmul.f32 %v833, 0.5
        %v866 = vmul.f32 %v834, 0.5
        %v867 = vmul.f32 %v835, 0.5
        %v868 = vmul.f32 %v836, 0.5
        %v869 = vmul.f32 %v837, 0.5
        %v870 = vmul.f32 %v838, 0.5
        %v871 = vmul.f32 %v839, 0.5
        %v872 = vmul.f32 %v840, 0.5
        %v873 = vmul.f32 %v841, 0.5
        %v874 = vmul.f32 %v842, 0.5
        %v875 = vmul.f32 %v843, 0.5
        %v876 = vmul.f32 %v844, 0.5
        %v877 = vmul.f32 %v845, 0.5
        %v878 = vmul.f32 %v846, 0.5
        %v879 = vmul.f32 %v847, 0.5
        %v880 = vmul.f32 %v848, 0.5
        %v881 = vmul.f32 %v849, 0.5
        %v882 = vmul.f32 %v850, 0.5
        %v883 = vmul.f32 %v851, 0.5
        %v884 = vmul.f32 %v852, 0.5
        %v885 = vmul.f32 %v551, %v853
        %v886 = vmul.f32 %v553, %v854
        %v887 = vmul.f32 %v555, %v855
        %v888 = vmul.f32 %v557, %v856
        %v889 = vmul.f32 %v561, %v857
        %v890 = vmul.f32 %v563, %v858
        %v891 = vmul.f32 %v565, %v859
        %v892 = vmul.f32 %v567, %v860
        %v893 = vmul.f32 %v571, %v861
        %v894 = vmul.f32 %v573, %v862
        %v895 = vmul.f32 %v575, %v863
        %v896 = vmul.f32 %v577, %v864
        %v897 = vmul.f32 %v581, %v865
        %v898 = vmul.f32 %v583, %v866
        %v899 = vmul.f32 %v585, %v867
        %v900 = vmul.f32 %v587, %v868
        %v901 = vmul.f32 %v591, %v869
        %v902 = vmul.f32 %v593, %v870
        %v903 = vmul.f32 %v595, %v871
        %v904 = vmul.f32 %v597, %v872
        %v905 = vmul.f32 %v601, %v873
        %v906 = vmul.f32 %v603, %v874
        %v907 = vmul.f32 %v605, %v875
        %v908 = vmul.f32 %v607, %v876
        %v909 = vmul.f32 %v611, %v877
        %v910 = vmul.f32 %v613, %v878
        %v911 = vmul.f32 %v615, %v879
        %v912 = vmul.f32 %v617, %v880
        %v913 = vmul.f32 %v621, %v881
        %v914 = vmul.f32 %v623, %v882
        %v915 = vmul.f32 %v625, %v883
        %v916 = vmul.f32 %v627, %v884
        %v917 = vpack.c.bf16 %v887, %v885
        %v918 = vpack.c.bf16 %v888, %v886
        %v919 = vpack.c.bf16 %v891, %v889
        %v920 = vpack.c.bf16 %v892, %v890
        %v921 = vpack.c.bf16 %v895, %v893
        %v922 = vpack.c.bf16 %v896, %v894
        %v923 = vpack.c.bf16 %v899, %v897
        %v924 = vpack.c.bf16 %v900, %v898
        %v925 = vpack.c.bf16 %v903, %v901
        %v926 = vpack.c.bf16 %v904, %v902
        %v927 = vpack.c.bf16 %v907, %v905
        %v928 = vpack.c.bf16 %v908, %v906
        %v929 = vpack.c.bf16 %v911, %v909
        %v930 = vpack.c.bf16 %v912, %v910
        %v931 = vpack.c.bf16 %v915, %v913
        %v932 = vpack.c.bf16 %v916, %v914
        %v933 = vld [vmem:[#allocation7] sm:$0xff]
        %v934 = vld [vmem:[#allocation7 + $0x8] sm:$0xff]
        %v935 = vld [vmem:[#allocation7 + $0x10] sm:$0xff]
        %v936 = vld [vmem:[#allocation7 + $0x18] sm:$0xff]
        %v937 = vld [vmem:[#allocation7 + $0x20] sm:$0xff]
        %v938 = vld [vmem:[#allocation7 + $0x28] sm:$0xff]
        %v939 = vld [vmem:[#allocation7 + $0x30] sm:$0xff]
        %v940 = vld [vmem:[#allocation7 + $0x38] sm:$0xff]
        %v941 = vld [vmem:[#allocation7 + $0x40] sm:$0xff]
        %v942 = vld [vmem:[#allocation7 + $0x48] sm:$0xff]
        %v943 = vld [vmem:[#allocation7 + $0x50] sm:$0xff]
        %v944 = vld [vmem:[#allocation7 + $0x58] sm:$0xff]
        %v945 = vld [vmem:[#allocation7 + $0x60] sm:$0xff]
        %v946 = vld [vmem:[#allocation7 + $0x68] sm:$0xff]
        %v947 = vld [vmem:[#allocation7 + $0x70] sm:$0xff]
        %v948 = vld [vmem:[#allocation7 + $0x78] sm:$0xff]
        %v949 = vld [vmem:[#allocation7 + $0x80] sm:$0xff]
        %v950 = vld [vmem:[#allocation7 + $0x88] sm:$0xff]
        %v951 = vld [vmem:[#allocation7 + $0x90] sm:$0xff]
        %v952 = vld [vmem:[#allocation7 + $0x98] sm:$0xff]
        %v953 = vld [vmem:[#allocation7 + $0xa0] sm:$0xff]
        %v954 = vld [vmem:[#allocation7 + $0xa8] sm:$0xff]
        %v955 = vld [vmem:[#allocation7 + $0xb0] sm:$0xff]
        %v956 = vld [vmem:[#allocation7 + $0xb8] sm:$0xff]
        %v957 = vld [vmem:[#allocation7 + $0xc0] sm:$0xff]
        %v958 = vld [vmem:[#allocation7 + $0xc8] sm:$0xff]
        %v959 = vld [vmem:[#allocation7 + $0xd0] sm:$0xff]
        %v960 = vld [vmem:[#allocation7 + $0xd8] sm:$0xff]
        %v961 = vld [vmem:[#allocation7 + $0xe0] sm:$0xff]
        %v962 = vld [vmem:[#allocation7 + $0xe8] sm:$0xff]
        %v963 = vld [vmem:[#allocation7 + $0xf0] sm:$0xff]
        %v964 = vld [vmem:[#allocation7 + $0xf8] sm:$0xff]
        %v965 = vld [vmem:[%s4] sm:$0x3]
        %v967 = vlaneseq
        %v968 = vshrl.u32 %v967, 7
        %v969 = vsub.s32 0, %v968
        %v970 = vrot.slane %v965, %v969
        %v971 = vlaneseq
        %v972 = vshrl.u32 %v971, 7
        %v973 = vsub.s32 1, %v972
        %v974 = vrot.slane %v965, %v973
        %v1009 = vunpack.c.l.b16 %v933
        %v1010 = vunpack.c.h.b16 %v933
        %v1011 = vunpack.c.l.b16 %v934
        %v1012 = vunpack.c.h.b16 %v934
        %v1013 = vunpack.c.l.b16 %v935
        %v1014 = vunpack.c.h.b16 %v935
        %v1015 = vunpack.c.l.b16 %v936
        %v1016 = vunpack.c.h.b16 %v936
        %v1017 = vunpack.c.l.b16 %v937
        %v1018 = vunpack.c.h.b16 %v937
        %v1019 = vunpack.c.l.b16 %v938
        %v1020 = vunpack.c.h.b16 %v938
        %v1021 = vunpack.c.l.b16 %v939
        %v1022 = vunpack.c.h.b16 %v939
        %v1023 = vunpack.c.l.b16 %v940
        %v1024 = vunpack.c.h.b16 %v940
        %v1025 = vunpack.c.l.b16 %v941
        %v1026 = vunpack.c.h.b16 %v941
        %v1027 = vunpack.c.l.b16 %v942
        %v1028 = vunpack.c.h.b16 %v942
        %v1029 = vunpack.c.l.b16 %v943
        %v1030 = vunpack.c.h.b16 %v943
        %v1031 = vunpack.c.l.b16 %v944
        %v1032 = vunpack.c.h.b16 %v944
        %v1033 = vunpack.c.l.b16 %v945
        %v1034 = vunpack.c.h.b16 %v945
        %v1035 = vunpack.c.l.b16 %v946
        %v1036 = vunpack.c.h.b16 %v946
        %v1037 = vunpack.c.l.b16 %v947
        %v1038 = vunpack.c.h.b16 %v947
        %v1039 = vunpack.c.l.b16 %v948
        %v1040 = vunpack.c.h.b16 %v948
        %v1041 = vunpack.c.l.b16 %v949
        %v1042 = vunpack.c.h.b16 %v949
        %v1043 = vunpack.c.l.b16 %v950
        %v1044 = vunpack.c.h.b16 %v950
        %v1045 = vunpack.c.l.b16 %v951
        %v1046 = vunpack.c.h.b16 %v951
        %v1047 = vunpack.c.l.b16 %v952
        %v1048 = vunpack.c.h.b16 %v952
        %v1049 = vunpack.c.l.b16 %v953
        %v1050 = vunpack.c.h.b16 %v953
        %v1051 = vunpack.c.l.b16 %v954
        %v1052 = vunpack.c.h.b16 %v954
        %v1053 = vunpack.c.l.b16 %v955
        %v1054 = vunpack.c.h.b16 %v955
        %v1055 = vunpack.c.l.b16 %v956
        %v1056 = vunpack.c.h.b16 %v956
        %v1057 = vunpack.c.l.b16 %v957
        %v1058 = vunpack.c.h.b16 %v957
        %v1059 = vunpack.c.l.b16 %v958
        %v1060 = vunpack.c.h.b16 %v958
        %v1061 = vunpack.c.l.b16 %v959
        %v1062 = vunpack.c.h.b16 %v959
        %v1063 = vunpack.c.l.b16 %v960
        %v1064 = vunpack.c.h.b16 %v960
        %v1065 = vunpack.c.l.b16 %v961
        %v1066 = vunpack.c.h.b16 %v961
        %v1067 = vunpack.c.l.b16 %v962
        %v1068 = vunpack.c.h.b16 %v962
        %v1069 = vunpack.c.l.b16 %v963
        %v1070 = vunpack.c.h.b16 %v963
        %v1071 = vunpack.c.l.b16 %v964
        %v1072 = vunpack.c.h.b16 %v964
        %v1073 = vpack.c.b16 %v1011, %v1009
        %v1074 = vpack.c.b16 %v1012, %v1010
        %v1075 = vpack.c.b16 %v1015, %v1013
        %v1076 = vpack.c.b16 %v1016, %v1014
        %v1077 = vpack.c.b16 %v1019, %v1017
        %v1078 = vpack.c.b16 %v1020, %v1018
        %v1079 = vpack.c.b16 %v1023, %v1021
        %v1080 = vpack.c.b16 %v1024, %v1022
        %v1081 = vpack.c.b16 %v1027, %v1025
        %v1082 = vpack.c.b16 %v1028, %v1026
        %v1083 = vpack.c.b16 %v1031, %v1029
        %v1084 = vpack.c.b16 %v1032, %v1030
        %v1085 = vpack.c.b16 %v1035, %v1033
        %v1086 = vpack.c.b16 %v1036, %v1034
        %v1087 = vpack.c.b16 %v1039, %v1037
        %v1088 = vpack.c.b16 %v1040, %v1038
        %v1089 = vpack.c.b16 %v1043, %v1041
        %v1090 = vpack.c.b16 %v1044, %v1042
        %v1091 = vpack.c.b16 %v1047, %v1045
        %v1092 = vpack.c.b16 %v1048, %v1046
        %v1093 = vpack.c.b16 %v1051, %v1049
        %v1094 = vpack.c.b16 %v1052, %v1050
        %v1095 = vpack.c.b16 %v1055, %v1053
        %v1096 = vpack.c.b16 %v1056, %v1054
        %v1097 = vpack.c.b16 %v1059, %v1057
        %v1098 = vpack.c.b16 %v1060, %v1058
        %v1099 = vpack.c.b16 %v1063, %v1061
        %v1100 = vpack.c.b16 %v1064, %v1062
        %v1101 = vpack.c.b16 %v1067, %v1065
        %v1102 = vpack.c.b16 %v1068, %v1066
        %v1103 = vpack.c.b16 %v1071, %v1069
        %v1104 = vpack.c.b16 %v1072, %v1070
        %1137 = vmatprep.subr.bf16.mxu0 %v1088
        %1138 = vmatpush1.bf16.msra.mxu0 %v1087
        %1139 = vmatprep.subr.bf16.mxu0 %v1086
        %1140 = vmatpush1.bf16.msra.mxu0 %v1085
        %1141 = vmatprep.subr.bf16.mxu0 %v1084
        %1142 = vmatpush1.bf16.msra.mxu0 %v1083
        %1143 = vmatprep.subr.bf16.mxu0 %v1082
        %1144 = vmatpush1.bf16.msra.mxu0 %v1081
        %1145 = vmatprep.subr.bf16.mxu0 %v1080
        %1146 = vmatpush1.bf16.msra.mxu0 %v1079
        %1147 = vmatprep.subr.bf16.mxu0 %v1078
        %1148 = vmatpush1.bf16.msra.mxu0 %v1077
        %1149 = vmatprep.subr.bf16.mxu0 %v1076
        %1150 = vmatpush1.bf16.msra.mxu0 %v1075
        %1151 = vmatprep.subr.bf16.mxu0 %v1074
        %1152 = vmatpush1.bf16.msra.mxu0 %v1073
        %1153 = vmatprep.subr.bf16.mxu0 %v1104
        %1154 = vmatpush2.bf16.msra.mxu0 %v1103
        %1155 = vmatprep.subr.bf16.mxu0 %v1102
        %1156 = vmatpush2.bf16.msra.mxu0 %v1101
        %1157 = vmatprep.subr.bf16.mxu0 %v1100
        %1158 = vmatpush2.bf16.msra.mxu0 %v1099
        %1159 = vmatprep.subr.bf16.mxu0 %v1098
        %1160 = vmatpush2.bf16.msra.mxu0 %v1097
        %1161 = vmatprep.subr.bf16.mxu0 %v1096
        %1162 = vmatpush2.bf16.msra.mxu0 %v1095
        %1163 = vmatprep.subr.bf16.mxu0 %v1094
        %1164 = vmatpush2.bf16.msra.mxu0 %v1093
        %1165 = vmatprep.subr.bf16.mxu0 %v1092
        %1166 = vmatpush2.bf16.msra.mxu0 %v1091
        %1167 = vmatprep.subr.bf16.mxu0 %v1090
        %1168 = vmatpush2.bf16.msra.mxu0 %v1089
        %1169 = vmatprep.mubr.bf16.mxu0 %v918
        %1170 = vmatmul.mubr.bf16.gmra.mxu0 %v917
        %v1171 = vpop.f32.mrf.mxu0
        %v1172 = vadd.f32 %v970, %v1171
        %v1173 = vpop.f32.mrf.mxu0
        %v1174 = vadd.f32 %v974, %v1173
        %v1175 = vpop.f32.mrf.mxu0
        %v1176 = vadd.f32 %v970, %v1175
        %v1177 = vpop.f32.mrf.mxu0
        %v1178 = vadd.f32 %v974, %v1177
        %1179 = vmatprep.mubr.bf16.mxu0 %v920
        %1180 = vmatmul.mubr.bf16.gmra.mxu0 %v919
        %v1181 = vpop.f32.mrf.mxu0
        %v1182 = vadd.f32 %v970, %v1181
        %v1183 = vpop.f32.mrf.mxu0
        %v1184 = vadd.f32 %v974, %v1183
        %v1185 = vpop.f32.mrf.mxu0
        %v1186 = vadd.f32 %v970, %v1185
        %v1187 = vpop.f32.mrf.mxu0
        %v1188 = vadd.f32 %v974, %v1187
        %1189 = vmatprep.mubr.bf16.mxu0 %v922
        %1190 = vmatmul.mubr.bf16.gmra.mxu0 %v921
        %v1191 = vpop.f32.mrf.mxu0
        %v1192 = vadd.f32 %v970, %v1191
        %v1193 = vpop.f32.mrf.mxu0
        %v1194 = vadd.f32 %v974, %v1193
        %v1195 = vpop.f32.mrf.mxu0
        %v1196 = vadd.f32 %v970, %v1195
        %v1197 = vpop.f32.mrf.mxu0
        %v1198 = vadd.f32 %v974, %v1197
        %1199 = vmatprep.mubr.bf16.mxu0 %v924
        %1200 = vmatmul.mubr.bf16.gmra.mxu0 %v923
        %v1201 = vpop.f32.mrf.mxu0
        %v1202 = vadd.f32 %v970, %v1201
        %v1203 = vpop.f32.mrf.mxu0
        %v1204 = vadd.f32 %v974, %v1203
        %v1205 = vpop.f32.mrf.mxu0
        %v1206 = vadd.f32 %v970, %v1205
        %v1207 = vpop.f32.mrf.mxu0
        %v1208 = vadd.f32 %v974, %v1207
        %1209 = vmatprep.mubr.bf16.mxu0 %v926
        %1210 = vmatmul.mubr.bf16.gmra.mxu0 %v925
        %v1211 = vpop.f32.mrf.mxu0
        %v1212 = vadd.f32 %v970, %v1211
        %v1213 = vpop.f32.mrf.mxu0
        %v1214 = vadd.f32 %v974, %v1213
        %v1215 = vpop.f32.mrf.mxu0
        %v1216 = vadd.f32 %v970, %v1215
        %v1217 = vpop.f32.mrf.mxu0
        %v1218 = vadd.f32 %v974, %v1217
        %1219 = vmatprep.mubr.bf16.mxu0 %v928
        %1220 = vmatmul.mubr.bf16.gmra.mxu0 %v927
        %v1221 = vpop.f32.mrf.mxu0
        %v1222 = vadd.f32 %v970, %v1221
        %v1223 = vpop.f32.mrf.mxu0
        %v1224 = vadd.f32 %v974, %v1223
        %v1225 = vpop.f32.mrf.mxu0
        %v1226 = vadd.f32 %v970, %v1225
        %v1227 = vpop.f32.mrf.mxu0
        %v1228 = vadd.f32 %v974, %v1227
        %1229 = vmatprep.mubr.bf16.mxu0 %v930
        %1230 = vmatmul.mubr.bf16.gmra.mxu0 %v929
        %v1231 = vpop.f32.mrf.mxu0
        %v1232 = vadd.f32 %v970, %v1231
        %v1233 = vpop.f32.mrf.mxu0
        %v1234 = vadd.f32 %v974, %v1233
        %v1235 = vpop.f32.mrf.mxu0
        %v1236 = vadd.f32 %v970, %v1235
        %v1237 = vpop.f32.mrf.mxu0
        %v1238 = vadd.f32 %v974, %v1237
        %1239 = vmatprep.mubr.bf16.mxu0 %v932
        %1240 = vmatmul.mubr.bf16.gmra.mxu0 %v931
        %v1241 = vpop.f32.mrf.mxu0
        %v1242 = vadd.f32 %v970, %v1241
        %v1243 = vpop.f32.mrf.mxu0
        %v1244 = vadd.f32 %v974, %v1243
        %v1245 = vpop.f32.mrf.mxu0
        %v1246 = vadd.f32 %v970, %v1245
        %v1247 = vpop.f32.mrf.mxu0
        %v1248 = vadd.f32 %v974, %v1247
        %1249 = vdwg.mxu0
        %v1250 = vmul.f32 %v1172, %v1172
        %v1251 = vmul.f32 %v1174, %v1174
        %v1252 = vmul.f32 %v1176, %v1176
        %v1253 = vmul.f32 %v1178, %v1178
        %v1254 = vmul.f32 %v1182, %v1182
        %v1255 = vmul.f32 %v1184, %v1184
        %v1256 = vmul.f32 %v1186, %v1186
        %v1257 = vmul.f32 %v1188, %v1188
        %v1258 = vmul.f32 %v1192, %v1192
        %v1259 = vmul.f32 %v1194, %v1194
        %v1260 = vmul.f32 %v1196, %v1196
        %v1261 = vmul.f32 %v1198, %v1198
        %v1262 = vmul.f32 %v1202, %v1202
        %v1263 = vmul.f32 %v1204, %v1204
        %v1264 = vmul.f32 %v1206, %v1206
        %v1265 = vmul.f32 %v1208, %v1208
        %v1266 = vmul.f32 %v1212, %v1212
        %v1267 = vmul.f32 %v1214, %v1214
        %v1268 = vmul.f32 %v1216, %v1216
        %v1269 = vmul.f32 %v1218, %v1218
        %v1270 = vmul.f32 %v1222, %v1222
        %v1271 = vmul.f32 %v1224, %v1224
        %v1272 = vmul.f32 %v1226, %v1226
        %v1273 = vmul.f32 %v1228, %v1228
        %v1274 = vmul.f32 %v1232, %v1232
        %v1275 = vmul.f32 %v1234, %v1234
        %v1276 = vmul.f32 %v1236, %v1236
        %v1277 = vmul.f32 %v1238, %v1238
        %v1278 = vmul.f32 %v1242, %v1242
        %v1279 = vmul.f32 %v1244, %v1244
        %v1280 = vmul.f32 %v1246, %v1246
        %v1281 = vmul.f32 %v1248, %v1248
        %v1282 = vmul.f32 %v1172, %v1250
        %v1283 = vmul.f32 %v1174, %v1251
        %v1284 = vmul.f32 %v1176, %v1252
        %v1285 = vmul.f32 %v1178, %v1253
        %v1286 = vmul.f32 %v1182, %v1254
        %v1287 = vmul.f32 %v1184, %v1255
        %v1288 = vmul.f32 %v1186, %v1256
        %v1289 = vmul.f32 %v1188, %v1257
        %v1290 = vmul.f32 %v1192, %v1258
        %v1291 = vmul.f32 %v1194, %v1259
        %v1292 = vmul.f32 %v1196, %v1260
        %v1293 = vmul.f32 %v1198, %v1261
        %v1294 = vmul.f32 %v1202, %v1262
        %v1295 = vmul.f32 %v1204, %v1263
        %v1296 = vmul.f32 %v1206, %v1264
        %v1297 = vmul.f32 %v1208, %v1265
        %v1298 = vmul.f32 %v1212, %v1266
        %v1299 = vmul.f32 %v1214, %v1267
        %v1300 = vmul.f32 %v1216, %v1268
        %v1301 = vmul.f32 %v1218, %v1269
        %v1302 = vmul.f32 %v1222, %v1270
        %v1303 = vmul.f32 %v1224, %v1271
        %v1304 = vmul.f32 %v1226, %v1272
        %v1305 = vmul.f32 %v1228, %v1273
        %v1306 = vmul.f32 %v1232, %v1274
        %v1307 = vmul.f32 %v1234, %v1275
        %v1308 = vmul.f32 %v1236, %v1276
        %v1309 = vmul.f32 %v1238, %v1277
        %v1310 = vmul.f32 %v1242, %v1278
        %v1311 = vmul.f32 %v1244, %v1279
        %v1312 = vmul.f32 %v1246, %v1280
        %v1313 = vmul.f32 %v1248, %v1281
        %v1314 = vmul.f32 %v1282, 0.044715
        %v1315 = vmul.f32 %v1283, 0.044715
        %v1316 = vmul.f32 %v1284, 0.044715
        %v1317 = vmul.f32 %v1285, 0.044715
        %v1318 = vmul.f32 %v1286, 0.044715
        %v1319 = vmul.f32 %v1287, 0.044715
        %v1320 = vmul.f32 %v1288, 0.044715
        %v1321 = vmul.f32 %v1289, 0.044715
        %v1322 = vmul.f32 %v1290, 0.044715
        %v1323 = vmul.f32 %v1291, 0.044715
        %v1324 = vmul.f32 %v1292, 0.044715
        %v1325 = vmul.f32 %v1293, 0.044715
        %v1326 = vmul.f32 %v1294, 0.044715
        %v1327 = vmul.f32 %v1295, 0.044715
        %v1328 = vmul.f32 %v1296, 0.044715
        %v1329 = vmul.f32 %v1297, 0.044715
        %v1330 = vmul.f32 %v1298, 0.044715
        %v1331 = vmul.f32 %v1299, 0.044715
        %v1332 = vmul.f32 %v1300, 0.044715
        %v1333 = vmul.f32 %v1301, 0.044715
        %v1334 = vmul.f32 %v1302, 0.044715
        %v1335 = vmul.f32 %v1303, 0.044715
        %v1336 = vmul.f32 %v1304, 0.044715
        %v1337 = vmul.f32 %v1305, 0.044715
        %v1338 = vmul.f32 %v1306, 0.044715
        %v1339 = vmul.f32 %v1307, 0.044715
        %v1340 = vmul.f32 %v1308, 0.044715
        %v1341 = vmul.f32 %v1309, 0.044715
        %v1342 = vmul.f32 %v1310, 0.044715
        %v1343 = vmul.f32 %v1311, 0.044715
        %v1344 = vmul.f32 %v1312, 0.044715
        %v1345 = vmul.f32 %v1313, 0.044715
        %v1346 = vadd.f32 %v1172, %v1314
        %v1347 = vadd.f32 %v1174, %v1315
        %v1348 = vadd.f32 %v1176, %v1316
        %v1349 = vadd.f32 %v1178, %v1317
        %v1350 = vadd.f32 %v1182, %v1318
        %v1351 = vadd.f32 %v1184, %v1319
        %v1352 = vadd.f32 %v1186, %v1320
        %v1353 = vadd.f32 %v1188, %v1321
        %v1354 = vadd.f32 %v1192, %v1322
        %v1355 = vadd.f32 %v1194, %v1323
        %v1356 = vadd.f32 %v1196, %v1324
        %v1357 = vadd.f32 %v1198, %v1325
        %v1358 = vadd.f32 %v1202, %v1326
        %v1359 = vadd.f32 %v1204, %v1327
        %v1360 = vadd.f32 %v1206, %v1328
        %v1361 = vadd.f32 %v1208, %v1329
        %v1362 = vadd.f32 %v1212, %v1330
        %v1363 = vadd.f32 %v1214, %v1331
        %v1364 = vadd.f32 %v1216, %v1332
        %v1365 = vadd.f32 %v1218, %v1333
        %v1366 = vadd.f32 %v1222, %v1334
        %v1367 = vadd.f32 %v1224, %v1335
        %v1368 = vadd.f32 %v1226, %v1336
        %v1369 = vadd.f32 %v1228, %v1337
        %v1370 = vadd.f32 %v1232, %v1338
        %v1371 = vadd.f32 %v1234, %v1339
        %v1372 = vadd.f32 %v1236, %v1340
        %v1373 = vadd.f32 %v1238, %v1341
        %v1374 = vadd.f32 %v1242, %v1342
        %v1375 = vadd.f32 %v1244, %v1343
        %v1376 = vadd.f32 %v1246, %v1344
        %v1377 = vadd.f32 %v1248, %v1345
        %v1378 = vmul.f32 %v1346, 0.7978846
        %v1379 = vmul.f32 %v1347, 0.7978846
        %v1380 = vmul.f32 %v1348, 0.7978846
        %v1381 = vmul.f32 %v1349, 0.7978846
        %v1382 = vmul.f32 %v1350, 0.7978846
        %v1383 = vmul.f32 %v1351, 0.7978846
        %v1384 = vmul.f32 %v1352, 0.7978846
        %v1385 = vmul.f32 %v1353, 0.7978846
        %v1386 = vmul.f32 %v1354, 0.7978846
        %v1387 = vmul.f32 %v1355, 0.7978846
        %v1388 = vmul.f32 %v1356, 0.7978846
        %v1389 = vmul.f32 %v1357, 0.7978846
        %v1390 = vmul.f32 %v1358, 0.7978846
        %v1391 = vmul.f32 %v1359, 0.7978846
        %v1392 = vmul.f32 %v1360, 0.7978846
        %v1393 = vmul.f32 %v1361, 0.7978846
        %v1394 = vmul.f32 %v1362, 0.7978846
        %v1395 = vmul.f32 %v1363, 0.7978846
        %v1396 = vmul.f32 %v1364, 0.7978846
        %v1397 = vmul.f32 %v1365, 0.7978846
        %v1398 = vmul.f32 %v1366, 0.7978846
        %v1399 = vmul.f32 %v1367, 0.7978846
        %v1400 = vmul.f32 %v1368, 0.7978846
        %v1401 = vmul.f32 %v1369, 0.7978846
        %v1402 = vmul.f32 %v1370, 0.7978846
        %v1403 = vmul.f32 %v1371, 0.7978846
        %v1404 = vmul.f32 %v1372, 0.7978846
        %v1405 = vmul.f32 %v1373, 0.7978846
        %v1406 = vmul.f32 %v1374, 0.7978846
        %v1407 = vmul.f32 %v1375, 0.7978846
        %v1408 = vmul.f32 %v1376, 0.7978846
        %v1409 = vmul.f32 %v1377, 0.7978846
        %v1410 = vtanh.pop %v1378
        %v1411 = vtanh.pop %v1379
        %v1412 = vtanh.pop %v1380
        %v1413 = vtanh.pop %v1381
        %v1414 = vtanh.pop %v1382
        %v1415 = vtanh.pop %v1383
        %v1416 = vtanh.pop %v1384
        %v1417 = vtanh.pop %v1385
        %v1418 = vtanh.pop %v1386
        %v1419 = vtanh.pop %v1387
        %v1420 = vtanh.pop %v1388
        %v1421 = vtanh.pop %v1389
        %v1422 = vtanh.pop %v1390
        %v1423 = vtanh.pop %v1391
        %v1424 = vtanh.pop %v1392
        %v1425 = vtanh.pop %v1393
        %v1426 = vtanh.pop %v1394
        %v1427 = vtanh.pop %v1395
        %v1428 = vtanh.pop %v1396
        %v1429 = vtanh.pop %v1397
        %v1430 = vtanh.pop %v1398
        %v1431 = vtanh.pop %v1399
        %v1432 = vtanh.pop %v1400
        %v1433 = vtanh.pop %v1401
        %v1434 = vtanh.pop %v1402
        %v1435 = vtanh.pop %v1403
        %v1436 = vtanh.pop %v1404
        %v1437 = vtanh.pop %v1405
        %v1438 = vtanh.pop %v1406
        %v1439 = vtanh.pop %v1407
        %v1440 = vtanh.pop %v1408
        %v1441 = vtanh.pop %v1409
        %v1442 = vadd.f32 %v1410, 1.0
        %v1443 = vadd.f32 %v1411, 1.0
        %v1444 = vadd.f32 %v1412, 1.0
        %v1445 = vadd.f32 %v1413, 1.0
        %v1446 = vadd.f32 %v1414, 1.0
        %v1447 = vadd.f32 %v1415, 1.0
        %v1448 = vadd.f32 %v1416, 1.0
        %v1449 = vadd.f32 %v1417, 1.0
        %v1450 = vadd.f32 %v1418, 1.0
        %v1451 = vadd.f32 %v1419, 1.0
        %v1452 = vadd.f32 %v1420, 1.0
        %v1453 = vadd.f32 %v1421, 1.0
        %v1454 = vadd.f32 %v1422, 1.0
        %v1455 = vadd.f32 %v1423, 1.0
        %v1456 = vadd.f32 %v1424, 1.0
        %v1457 = vadd.f32 %v1425, 1.0
        %v1458 = vadd.f32 %v1426, 1.0
        %v1459 = vadd.f32 %v1427, 1.0
        %v1460 = vadd.f32 %v1428, 1.0
        %v1461 = vadd.f32 %v1429, 1.0
        %v1462 = vadd.f32 %v1430, 1.0
        %v1463 = vadd.f32 %v1431, 1.0
        %v1464 = vadd.f32 %v1432, 1.0
        %v1465 = vadd.f32 %v1433, 1.0
        %v1466 = vadd.f32 %v1434, 1.0
        %v1467 = vadd.f32 %v1435, 1.0
        %v1468 = vadd.f32 %v1436, 1.0
        %v1469 = vadd.f32 %v1437, 1.0
        %v1470 = vadd.f32 %v1438, 1.0
        %v1471 = vadd.f32 %v1439, 1.0
        %v1472 = vadd.f32 %v1440, 1.0
        %v1473 = vadd.f32 %v1441, 1.0
        %v1474 = vmul.f32 %v1442, 0.5
        %v1475 = vmul.f32 %v1443, 0.5
        %v1476 = vmul.f32 %v1444, 0.5
        %v1477 = vmul.f32 %v1445, 0.5
        %v1478 = vmul.f32 %v1446, 0.5
        %v1479 = vmul.f32 %v1447, 0.5
        %v1480 = vmul.f32 %v1448, 0.5
        %v1481 = vmul.f32 %v1449, 0.5
        %v1482 = vmul.f32 %v1450, 0.5
        %v1483 = vmul.f32 %v1451, 0.5
        %v1484 = vmul.f32 %v1452, 0.5
        %v1485 = vmul.f32 %v1453, 0.5
        %v1486 = vmul.f32 %v1454, 0.5
        %v1487 = vmul.f32 %v1455, 0.5
        %v1488 = vmul.f32 %v1456, 0.5
        %v1489 = vmul.f32 %v1457, 0.5
        %v1490 = vmul.f32 %v1458, 0.5
        %v1491 = vmul.f32 %v1459, 0.5
        %v1492 = vmul.f32 %v1460, 0.5
        %v1493 = vmul.f32 %v1461, 0.5
        %v1494 = vmul.f32 %v1462, 0.5
        %v1495 = vmul.f32 %v1463, 0.5
        %v1496 = vmul.f32 %v1464, 0.5
        %v1497 = vmul.f32 %v1465, 0.5
        %v1498 = vmul.f32 %v1466, 0.5
        %v1499 = vmul.f32 %v1467, 0.5
        %v1500 = vmul.f32 %v1468, 0.5
        %v1501 = vmul.f32 %v1469, 0.5
        %v1502 = vmul.f32 %v1470, 0.5
        %v1503 = vmul.f32 %v1471, 0.5
        %v1504 = vmul.f32 %v1472, 0.5
        %v1505 = vmul.f32 %v1473, 0.5
        %v1506 = vmul.f32 %v1172, %v1474
        %v1507 = vmul.f32 %v1174, %v1475
        %v1508 = vmul.f32 %v1176, %v1476
        %v1509 = vmul.f32 %v1178, %v1477
        %v1510 = vmul.f32 %v1182, %v1478
        %v1511 = vmul.f32 %v1184, %v1479
        %v1512 = vmul.f32 %v1186, %v1480
        %v1513 = vmul.f32 %v1188, %v1481
        %v1514 = vmul.f32 %v1192, %v1482
        %v1515 = vmul.f32 %v1194, %v1483
        %v1516 = vmul.f32 %v1196, %v1484
        %v1517 = vmul.f32 %v1198, %v1485
        %v1518 = vmul.f32 %v1202, %v1486
        %v1519 = vmul.f32 %v1204, %v1487
        %v1520 = vmul.f32 %v1206, %v1488
        %v1521 = vmul.f32 %v1208, %v1489
        %v1522 = vmul.f32 %v1212, %v1490
        %v1523 = vmul.f32 %v1214, %v1491
        %v1524 = vmul.f32 %v1216, %v1492
        %v1525 = vmul.f32 %v1218, %v1493
        %v1526 = vmul.f32 %v1222, %v1494
        %v1527 = vmul.f32 %v1224, %v1495
        %v1528 = vmul.f32 %v1226, %v1496
        %v1529 = vmul.f32 %v1228, %v1497
        %v1530 = vmul.f32 %v1232, %v1498
        %v1531 = vmul.f32 %v1234, %v1499
        %v1532 = vmul.f32 %v1236, %v1500
        %v1533 = vmul.f32 %v1238, %v1501
        %v1534 = vmul.f32 %v1242, %v1502
        %v1535 = vmul.f32 %v1244, %v1503
        %v1536 = vmul.f32 %v1246, %v1504
        %v1537 = vmul.f32 %v1248, %v1505
        %v1538 = vpack.c.bf16 %v1508, %v1506
        %v1539 = vpack.c.bf16 %v1509, %v1507
        %v1540 = vpack.c.bf16 %v1512, %v1510
        %v1541 = vpack.c.bf16 %v1513, %v1511
        %v1542 = vpack.c.bf16 %v1516, %v1514
        %v1543 = vpack.c.bf16 %v1517, %v1515
        %v1544 = vpack.c.bf16 %v1520, %v1518
        %v1545 = vpack.c.bf16 %v1521, %v1519
        %v1546 = vpack.c.bf16 %v1524, %v1522
        %v1547 = vpack.c.bf16 %v1525, %v1523
        %v1548 = vpack.c.bf16 %v1528, %v1526
        %v1549 = vpack.c.bf16 %v1529, %v1527
        %v1550 = vpack.c.bf16 %v1532, %v1530
        %v1551 = vpack.c.bf16 %v1533, %v1531
        %v1552 = vpack.c.bf16 %v1536, %v1534
        %v1553 = vpack.c.bf16 %v1537, %v1535
        %v1554 = vld [vmem:[#allocation8] sm:$0xf]
        %v1555 = vld [vmem:[#allocation8 + $0x4] sm:$0xf]
        %v1556 = vld [vmem:[#allocation8 + $0x8] sm:$0xf]
        %v1557 = vld [vmem:[#allocation8 + $0xc] sm:$0xf]
        %v1558 = vld [vmem:[#allocation8 + $0x10] sm:$0xf]
        %v1559 = vld [vmem:[#allocation8 + $0x14] sm:$0xf]
        %v1560 = vld [vmem:[#allocation8 + $0x18] sm:$0xf]
        %v1561 = vld [vmem:[#allocation8 + $0x1c] sm:$0xf]
        %v1562 = vld [vmem:[#allocation8 + $0x20] sm:$0xf]
        %v1563 = vld [vmem:[#allocation8 + $0x24] sm:$0xf]
        %v1564 = vld [vmem:[#allocation8 + $0x28] sm:$0xf]
        %v1565 = vld [vmem:[#allocation8 + $0x2c] sm:$0xf]
        %v1566 = vld [vmem:[#allocation8 + $0x30] sm:$0xf]
        %v1567 = vld [vmem:[#allocation8 + $0x34] sm:$0xf]
        %v1568 = vld [vmem:[#allocation8 + $0x38] sm:$0xf]
        %v1569 = vld [vmem:[#allocation8 + $0x3c] sm:$0xf]
        %v1570 = vld [vmem:[#allocation8 + $0x40] sm:$0xf]
        %v1571 = vld [vmem:[#allocation8 + $0x44] sm:$0xf]
        %v1572 = vld [vmem:[#allocation8 + $0x48] sm:$0xf]
        %v1573 = vld [vmem:[#allocation8 + $0x4c] sm:$0xf]
        %v1574 = vld [vmem:[#allocation8 + $0x50] sm:$0xf]
        %v1575 = vld [vmem:[#allocation8 + $0x54] sm:$0xf]
        %v1576 = vld [vmem:[#allocation8 + $0x58] sm:$0xf]
        %v1577 = vld [vmem:[#allocation8 + $0x5c] sm:$0xf]
        %v1578 = vld [vmem:[#allocation8 + $0x60] sm:$0xf]
        %v1579 = vld [vmem:[#allocation8 + $0x64] sm:$0xf]
        %v1580 = vld [vmem:[#allocation8 + $0x68] sm:$0xf]
        %v1581 = vld [vmem:[#allocation8 + $0x6c] sm:$0xf]
        %v1582 = vld [vmem:[#allocation8 + $0x70] sm:$0xf]
        %v1583 = vld [vmem:[#allocation8 + $0x74] sm:$0xf]
        %v1584 = vld [vmem:[#allocation8 + $0x78] sm:$0xf]
        %v1585 = vld [vmem:[#allocation8 + $0x7c] sm:$0xf]
        %v1586 = vld [vmem:[%s6] sm:$0x1]
        %v1588 = vlaneseq
        %v1589 = vshrl.u32 %v1588, 7
        %v1590 = vsub.s32 0, %v1589
        %v1591 = vrot.slane %v1586, %v1590
        %v1625 = vunpack.c.l.b16 %v1554
        %v1626 = vunpack.c.l.b16 %v1555
        %v1627 = vunpack.c.l.b16 %v1556
        %v1628 = vunpack.c.l.b16 %v1557
        %v1629 = vunpack.c.l.b16 %v1558
        %v1630 = vunpack.c.l.b16 %v1559
        %v1631 = vunpack.c.l.b16 %v1560
        %v1632 = vunpack.c.l.b16 %v1561
        %v1633 = vunpack.c.l.b16 %v1562
        %v1634 = vunpack.c.l.b16 %v1563
        %v1635 = vunpack.c.l.b16 %v1564
        %v1636 = vunpack.c.l.b16 %v1565
        %v1637 = vunpack.c.l.b16 %v1566
        %v1638 = vunpack.c.l.b16 %v1567
        %v1639 = vunpack.c.l.b16 %v1568
        %v1640 = vunpack.c.l.b16 %v1569
        %v1641 = vunpack.c.l.b16 %v1570
        %v1642 = vunpack.c.l.b16 %v1571
        %v1643 = vunpack.c.l.b16 %v1572
        %v1644 = vunpack.c.l.b16 %v1573
        %v1645 = vunpack.c.l.b16 %v1574
        %v1646 = vunpack.c.l.b16 %v1575
        %v1647 = vunpack.c.l.b16 %v1576
        %v1648 = vunpack.c.l.b16 %v1577
        %v1649 = vunpack.c.l.b16 %v1578
        %v1650 = vunpack.c.l.b16 %v1579
        %v1651 = vunpack.c.l.b16 %v1580
        %v1652 = vunpack.c.l.b16 %v1581
        %v1653 = vunpack.c.l.b16 %v1582
        %v1654 = vunpack.c.l.b16 %v1583
        %v1655 = vunpack.c.l.b16 %v1584
        %v1656 = vunpack.c.l.b16 %v1585
        %v1657 = vpack.c.b16 %v1626, %v1625
        %v1658 = vpack.c.b16 %v1628, %v1627
        %v1659 = vpack.c.b16 %v1630, %v1629
        %v1660 = vpack.c.b16 %v1632, %v1631
        %v1661 = vpack.c.b16 %v1634, %v1633
        %v1662 = vpack.c.b16 %v1636, %v1635
        %v1663 = vpack.c.b16 %v1638, %v1637
        %v1664 = vpack.c.b16 %v1640, %v1639
        %v1665 = vpack.c.b16 %v1642, %v1641
        %v1666 = vpack.c.b16 %v1644, %v1643
        %v1667 = vpack.c.b16 %v1646, %v1645
        %v1668 = vpack.c.b16 %v1648, %v1647
        %v1669 = vpack.c.b16 %v1650, %v1649
        %v1670 = vpack.c.b16 %v1652, %v1651
        %v1671 = vpack.c.b16 %v1654, %v1653
        %v1672 = vpack.c.b16 %v1656, %v1655
        %1689 = vmatprep.subr.bf16.mxu0 0
        %1690 = vmatpush1.bf16.msra.mxu0 %v1664
        %1691 = vmatprep.subr.bf16.mxu0 0
        %1692 = vmatpush1.bf16.msra.mxu0 %v1663
        %1693 = vmatprep.subr.bf16.mxu0 0
        %1694 = vmatpush1.bf16.msra.mxu0 %v1662
        %1695 = vmatprep.subr.bf16.mxu0 0
        %1696 = vmatpush1.bf16.msra.mxu0 %v1661
        %1697 = vmatprep.subr.bf16.mxu0 0
        %1698 = vmatpush1.bf16.msra.mxu0 %v1660
        %1699 = vmatprep.subr.bf16.mxu0 0
        %1700 = vmatpush1.bf16.msra.mxu0 %v1659
        %1701 = vmatprep.subr.bf16.mxu0 0
        %1702 = vmatpush1.bf16.msra.mxu0 %v1658
        %1703 = vmatprep.subr.bf16.mxu0 0
        %1704 = vmatpush1.bf16.msra.mxu0 %v1657
        %1705 = vmatprep.subr.bf16.mxu0 0
        %1706 = vmatpush2.bf16.msra.mxu0 %v1672
        %1707 = vmatprep.subr.bf16.mxu0 0
        %1708 = vmatpush2.bf16.msra.mxu0 %v1671
        %1709 = vmatprep.subr.bf16.mxu0 0
        %1710 = vmatpush2.bf16.msra.mxu0 %v1670
        %1711 = vmatprep.subr.bf16.mxu0 0
        %1712 = vmatpush2.bf16.msra.mxu0 %v1669
        %1713 = vmatprep.subr.bf16.mxu0 0
        %1714 = vmatpush2.bf16.msra.mxu0 %v1668
        %1715 = vmatprep.subr.bf16.mxu0 0
        %1716 = vmatpush2.bf16.msra.mxu0 %v1667
        %1717 = vmatprep.subr.bf16.mxu0 0
        %1718 = vmatpush2.bf16.msra.mxu0 %v1666
        %1719 = vmatprep.subr.bf16.mxu0 0
        %1720 = vmatpush2.bf16.msra.mxu0 %v1665
        %1721 = vmatprep.mubr.bf16.mxu0 %v1539
        %1722 = vmatmul.mubr.bf16.gmra.mxu0 %v1538
        %v1723 = vpop.f32.mrf.mxu0
        %v1724 = vadd.f32 %v1591, %v1723
        %v1725 = vpop.f32.mrf.mxu0
        %v1726 = vpop.f32.mrf.mxu0
        %v1727 = vadd.f32 %v1591, %v1726
        %v1728 = vpop.f32.mrf.mxu0
        %1729 = vmatprep.mubr.bf16.mxu0 %v1541
        %1730 = vmatmul.mubr.bf16.gmra.mxu0 %v1540
        %v1731 = vpop.f32.mrf.mxu0
        %v1732 = vadd.f32 %v1591, %v1731
        %v1733 = vpop.f32.mrf.mxu0
        %v1734 = vpop.f32.mrf.mxu0
        %v1735 = vadd.f32 %v1591, %v1734
        %v1736 = vpop.f32.mrf.mxu0
        %1737 = vmatprep.mubr.bf16.mxu0 %v1543
        %1738 = vmatmul.mubr.bf16.gmra.mxu0 %v1542
        %v1739 = vpop.f32.mrf.mxu0
        %v1740 = vadd.f32 %v1591, %v1739
        %v1741 = vpop.f32.mrf.mxu0
        %v1742 = vpop.f32.mrf.mxu0
        %v1743 = vadd.f32 %v1591, %v1742
        %v1744 = vpop.f32.mrf.mxu0
        %1745 = vmatprep.mubr.bf16.mxu0 %v1545
        %1746 = vmatmul.mubr.bf16.gmra.mxu0 %v1544
        %v1747 = vpop.f32.mrf.mxu0
        %v1748 = vadd.f32 %v1591, %v1747
        %v1749 = vpop.f32.mrf.mxu0
        %v1750 = vpop.f32.mrf.mxu0
        %v1751 = vadd.f32 %v1591, %v1750
        %v1752 = vpop.f32.mrf.mxu0
        %1753 = vmatprep.mubr.bf16.mxu0 %v1547
        %1754 = vmatmul.mubr.bf16.gmra.mxu0 %v1546
        %v1755 = vpop.f32.mrf.mxu0
        %v1756 = vadd.f32 %v1591, %v1755
        %v1757 = vpop.f32.mrf.mxu0
        %v1758 = vpop.f32.mrf.mxu0
        %v1759 = vadd.f32 %v1591, %v1758
        %v1760 = vpop.f32.mrf.mxu0
        %1761 = vmatprep.mubr.bf16.mxu0 %v1549
        %1762 = vmatmul.mubr.bf16.gmra.mxu0 %v1548
        %v1763 = vpop.f32.mrf.mxu0
        %v1764 = vadd.f32 %v1591, %v1763
        %v1765 = vpop.f32.mrf.mxu0
        %v1766 = vpop.f32.mrf.mxu0
        %v1767 = vadd.f32 %v1591, %v1766
        %v1768 = vpop.f32.mrf.mxu0
        %1769 = vmatprep.mubr.bf16.mxu0 %v1551
        %1770 = vmatmul.mubr.bf16.gmra.mxu0 %v1550
        %v1771 = vpop.f32.mrf.mxu0
        %v1772 = vadd.f32 %v1591, %v1771
        %v1773 = vpop.f32.mrf.mxu0
        %v1774 = vpop.f32.mrf.mxu0
        %v1775 = vadd.f32 %v1591, %v1774
        %v1776 = vpop.f32.mrf.mxu0
        %1777 = vmatprep.mubr.bf16.mxu0 %v1553
        %1778 = vmatmul.mubr.bf16.gmra.mxu0 %v1552
        %v1779 = vpop.f32.mrf.mxu0
        %v1780 = vadd.f32 %v1591, %v1779
        %v1781 = vpop.f32.mrf.mxu0
        %v1782 = vpop.f32.mrf.mxu0
        %v1783 = vadd.f32 %v1591, %v1782
        %v1784 = vpop.f32.mrf.mxu0
        %1785 = vdwg.mxu0
        %v1786 = vmul.f32 %v1724, %v1724
        %v1787 = vmul.f32 %v1727, %v1727
        %v1788 = vmul.f32 %v1732, %v1732
        %v1789 = vmul.f32 %v1735, %v1735
        %v1790 = vmul.f32 %v1740, %v1740
        %v1791 = vmul.f32 %v1743, %v1743
        %v1792 = vmul.f32 %v1748, %v1748
        %v1793 = vmul.f32 %v1751, %v1751
        %v1794 = vmul.f32 %v1756, %v1756
        %v1795 = vmul.f32 %v1759, %v1759
        %v1796 = vmul.f32 %v1764, %v1764
        %v1797 = vmul.f32 %v1767, %v1767
        %v1798 = vmul.f32 %v1772, %v1772
        %v1799 = vmul.f32 %v1775, %v1775
        %v1800 = vmul.f32 %v1780, %v1780
        %v1801 = vmul.f32 %v1783, %v1783
        %1802 = vadd.xlane.f32.xlu0 %v1786
        %v1803 = vpop.xlane.xlu0 %1802
        %1804 = vadd.xlane.f32.xlu0 %v1787
        %v1805 = vpop.xlane.xlu0 %1804
        %1806 = vadd.xlane.f32.xlu0 %v1788
        %v1807 = vpop.xlane.xlu0 %1806
        %1808 = vadd.xlane.f32.xlu0 %v1789
        %v1809 = vpop.xlane.xlu0 %1808
        %1810 = vadd.xlane.f32.xlu0 %v1790
        %v1811 = vpop.xlane.xlu0 %1810
        %1812 = vadd.xlane.f32.xlu0 %v1791
        %v1813 = vpop.xlane.xlu0 %1812
        %1814 = vadd.xlane.f32.xlu0 %v1792
        %v1815 = vpop.xlane.xlu0 %1814
        %1816 = vadd.xlane.f32.xlu0 %v1793
        %v1817 = vpop.xlane.xlu0 %1816
        %1818 = vadd.xlane.f32.xlu0 %v1794
        %v1819 = vpop.xlane.xlu0 %1818
        %1820 = vadd.xlane.f32.xlu0 %v1795
        %v1821 = vpop.xlane.xlu0 %1820
        %1822 = vadd.xlane.f32.xlu0 %v1796
        %v1823 = vpop.xlane.xlu0 %1822
        %1824 = vadd.xlane.f32.xlu0 %v1797
        %v1825 = vpop.xlane.xlu0 %1824
        %1826 = vadd.xlane.f32.xlu0 %v1798
        %v1827 = vpop.xlane.xlu0 %1826
        %1828 = vadd.xlane.f32.xlu0 %v1799
        %v1829 = vpop.xlane.xlu0 %1828
        %1830 = vadd.xlane.f32.xlu0 %v1800
        %v1831 = vpop.xlane.xlu0 %1830
        %1832 = vadd.xlane.f32.xlu0 %v1801
        %v1833 = vpop.xlane.xlu0 %1832
        %v1834 = vmax.f32 %v1803, 1e-24
        %v1835 = vmax.f32 %v1805, 1e-24
        %v1836 = vmax.f32 %v1807, 1e-24
        %v1837 = vmax.f32 %v1809, 1e-24
        %v1838 = vmax.f32 %v1811, 1e-24
        %v1839 = vmax.f32 %v1813, 1e-24
        %v1840 = vmax.f32 %v1815, 1e-24
        %v1841 = vmax.f32 %v1817, 1e-24
        %v1842 = vmax.f32 %v1819, 1e-24
        %v1843 = vmax.f32 %v1821, 1e-24
        %v1844 = vmax.f32 %v1823, 1e-24
        %v1845 = vmax.f32 %v1825, 1e-24
        %v1846 = vmax.f32 %v1827, 1e-24
        %v1847 = vmax.f32 %v1829, 1e-24
        %v1848 = vmax.f32 %v1831, 1e-24
        %v1849 = vmax.f32 %v1833, 1e-24
        %v1850 = vrsqrt.pop %v1834
        %v1851 = vrsqrt.pop %v1835
        %v1852 = vrsqrt.pop %v1836
        %v1853 = vrsqrt.pop %v1837
        %v1854 = vrsqrt.pop %v1838
        %v1855 = vrsqrt.pop %v1839
        %v1856 = vrsqrt.pop %v1840
        %v1857 = vrsqrt.pop %v1841
        %v1858 = vrsqrt.pop %v1842
        %v1859 = vrsqrt.pop %v1843
        %v1860 = vrsqrt.pop %v1844
        %v1861 = vrsqrt.pop %v1845
        %v1862 = vrsqrt.pop %v1846
        %v1863 = vrsqrt.pop %v1847
        %v1864 = vrsqrt.pop %v1848
        %v1865 = vrsqrt.pop %v1849
        %v1866 = vmul.f32 %v1724, %v1850
        %v1867 = vmul.f32 %v1727, %v1851
        %v1868 = vmul.f32 %v1732, %v1852
        %v1869 = vmul.f32 %v1735, %v1853
        %v1870 = vmul.f32 %v1740, %v1854
        %v1871 = vmul.f32 %v1743, %v1855
        %v1872 = vmul.f32 %v1748, %v1856
        %v1873 = vmul.f32 %v1751, %v1857
        %v1874 = vmul.f32 %v1756, %v1858
        %v1875 = vmul.f32 %v1759, %v1859
        %v1876 = vmul.f32 %v1764, %v1860
        %v1877 = vmul.f32 %v1767, %v1861
        %v1878 = vmul.f32 %v1772, %v1862
        %v1879 = vmul.f32 %v1775, %v1863
        %v1880 = vmul.f32 %v1780, %v1864
        %v1881 = vmul.f32 %v1783, %v1865
        %v1882 = vpack.c.bf16 %v1867, %v1866
        %v1883 = vpack.c.bf16 %v1869, %v1868
        %v1884 = vpack.c.bf16 %v1871, %v1870
        %v1885 = vpack.c.bf16 %v1873, %v1872
        %v1886 = vpack.c.bf16 %v1875, %v1874
        %v1887 = vpack.c.bf16 %v1877, %v1876
        %v1888 = vpack.c.bf16 %v1879, %v1878
        %v1889 = vpack.c.bf16 %v1881, %v1880
        %v1898 = vunpack.c.l.b16 %v1882
        %v1899 = vunpack.c.h.b16 %v1882
        %v1900 = vunpack.c.l.b16 %v1883
        %v1901 = vunpack.c.h.b16 %v1883
        %v1902 = vunpack.c.l.b16 %v1884
        %v1903 = vunpack.c.h.b16 %v1884
        %v1904 = vunpack.c.l.b16 %v1885
        %v1905 = vunpack.c.h.b16 %v1885
        %v1906 = vunpack.c.l.b16 %v1886
        %v1907 = vunpack.c.h.b16 %v1886
        %v1908 = vunpack.c.l.b16 %v1887
        %v1909 = vunpack.c.h.b16 %v1887
        %v1910 = vunpack.c.l.b16 %v1888
        %v1911 = vunpack.c.h.b16 %v1888
        %v1912 = vunpack.c.l.b16 %v1889
        %v1913 = vunpack.c.h.b16 %v1889
        %v1914 = vpack.c.b16 %v1898, %v1898
        %v1915 = vpack.c.b16 %v1899, %v1899
        %v1916 = vpack.c.b16 %v1900, %v1900
        %v1917 = vpack.c.b16 %v1901, %v1901
        %v1918 = vpack.c.b16 %v1902, %v1902
        %v1919 = vpack.c.b16 %v1903, %v1903
        %v1920 = vpack.c.b16 %v1904, %v1904
        %v1921 = vpack.c.b16 %v1905, %v1905
        %v1922 = vpack.c.b16 %v1906, %v1906
        %v1923 = vpack.c.b16 %v1907, %v1907
        %v1924 = vpack.c.b16 %v1908, %v1908
        %v1925 = vpack.c.b16 %v1909, %v1909
        %v1926 = vpack.c.b16 %v1910, %v1910
        %v1927 = vpack.c.b16 %v1911, %v1911
        %v1928 = vpack.c.b16 %v1912, %v1912
        %v1929 = vpack.c.b16 %v1913, %v1913
        %1946 = vst [vmem:[%s340] sm:$0xf] %v1914
        %1947 = vst [vmem:[%s340 + $0x4] sm:$0xf] %v1915
        %1948 = vst [vmem:[%s340 + $0x8] sm:$0xf] %v1916
        %1949 = vst [vmem:[%s340 + $0xc] sm:$0xf] %v1917
        %1950 = vst [vmem:[%s340 + $0x10] sm:$0xf] %v1918
        %1951 = vst [vmem:[%s340 + $0x14] sm:$0xf] %v1919
        %1952 = vst [vmem:[%s340 + $0x18] sm:$0xf] %v1920
        %1953 = vst [vmem:[%s340 + $0x1c] sm:$0xf] %v1921
        %1954 = vst [vmem:[%s340 + $0x20] sm:$0xf] %v1922
        %1955 = vst [vmem:[%s340 + $0x24] sm:$0xf] %v1923
        %1956 = vst [vmem:[%s340 + $0x28] sm:$0xf] %v1924
        %1957 = vst [vmem:[%s340 + $0x2c] sm:$0xf] %v1925
        %1958 = vst [vmem:[%s340 + $0x30] sm:$0xf] %v1926
        %1959 = vst [vmem:[%s340 + $0x34] sm:$0xf] %v1927
        %1960 = vst [vmem:[%s340 + $0x38] sm:$0xf] %v1928
        %1961 = vst [vmem:[%s340 + $0x3c] sm:$0xf] %v1929
        %s1962 = sand.u32 %s186, 1
        %s1963 = scalar_lea.sflag [#allocation4], %s1962
        %s1964 = sand.u32 %s186, 1
        %s1965 = smul.addr %s1964, 64
        %s1966 = scalar_lea.vmem [#allocation10], %s1965
        // Predicated region
        $region65: #{tpu_custom_call.1} parent=47 // pred_check
          %p1967 = pneg %p196
        $region66: #{tpu_custom_call.1} parent=47 // pred_check_branch
          %1969 = sbr.rel (%p1967) target = $region68
        $region67: #{tpu_custom_call.1} parent=47 // pred_region
          %s1970 = smul.u32 16, %s26
          %s1972 = ssub.s32 1024, 1024
          %1973 = vsyncadd %s1963, %s1972
          %s1974 = smul.addr %s1970, 64
          %s1975 = scalar_lea.hbm %s7, %s1974
          %s1976 = sshll.u32 %s1966, 4
          %s1977 = int_to_ptr.vmem [resolvable:$true] %s1976
          %1982 = dma.vmem_to_hbm [thread:$0]  %s1977, 1024, %s1975, %s1963, 64, 64, 4
        $region68: #{tpu_custom_call.1} parent=47 // pred_fallthru
          _
      $region48: #{tpu_custom_call.1} parent=5 // pred_fallthru
        _
      %p1983 = scmp.le.s32.totalorder 2, %s21
      // Predicated region
      $region69: #{tpu_custom_call.1} parent=5 // pred_check
        %p1984 = pneg %p1983
      $region70: #{tpu_custom_call.1} parent=5 // pred_check_branch
        %1986 = sbr.rel (%p1984) target = $region72
      $region71: #{tpu_custom_call.1} parent=5 // pred_region
        %s1987 = ssub.s32 %s21, 2
        // Predicated region
        $region73: #{tpu_custom_call.1} parent=71 // pred_check
          %p1988 = pneg %p202
        $region74: #{tpu_custom_call.1} parent=71 // pred_check_branch
          %1990 = sbr.rel (%p1988) target = $region76
        $region75: #{tpu_custom_call.1} parent=71 // pred_region
          %s1991 = sand.u32 %s187, 1
          %s1992 = scalar_lea.sflag [#allocation4], %s1991
          %s1993 = sand.u32 %s187, 1
          %s1994 = smul.addr %s1993, 64
          %s1995 = scalar_lea.vmem [#allocation10], %s1994
          %1996 = dma.done %s1992, 1024
        $region76: #{tpu_custom_call.1} parent=71 // pred_fallthru
          _
      $region72: #{tpu_custom_call.1} parent=5 // pred_fallthru
        _
    $region6: #{tpu_custom_call.1} parent=1 // loop_footer
      %s25 = sadd.s32 1, %s21
    $region7: #{tpu_custom_call.1} parent=1 // loop_footer_branch
      %20 = sbr.rel target = $region3
    $region8: #{tpu_custom_call.1} parent=1 // loop_exit
      _
    %1997 = vsyncpa [#allocation3], 1
    %s1998 = scalar_lea.sflag [#allocation3], 1
    %1999 = vsyncpa %s1998, 1
    %2000 = vsyncpa [#allocation6], 1
    %2001 = vsyncpa [#allocation9], 1
    %2002 = vsyncpa [#allocation4], 1
    %s2003 = scalar_lea.sflag [#allocation4], 1
    %2004 = vsyncpa %s2003, 1

// kernel: tpu_custom_call.1
$region0: #{tpu_custom_call.1}
  #allocation0 [shape = 'u32[]', space=smem, size = 0x4, offset = 0x4, fixed_abs, tag = 'smem constant byte address 0x4 - core index']
  #allocation1 [shape = 'u32[144,128]{1,0:T(1,128)}', space=vmem, size = 0x12000, scoped, tag = 'internal scratch']
  %s0 = inlined_call_operand.hbm [shape: bf16[256,128], index: 0, kind: input, shape index: {}]
  %s1 = inlined_call_operand.hbm [shape: bf16[128,256], index: 1, kind: input, shape index: {}]
  %s2 = inlined_call_operand.vmem [shape: f32[1,256], index: 2, kind: input, shape index: {}]
  %s3 = inlined_call_operand.hbm [shape: bf16[256,256], index: 3, kind: input, shape index: {}]
  %s4 = inlined_call_operand.vmem [shape: f32[1,256], index: 4, kind: input, shape index: {}]
  %s5 = inlined_call_operand.hbm [shape: bf16[256,128], index: 5, kind: input, shape index: {}]
  %s6 = inlined_call_operand.vmem [shape: f32[1,128], index: 6, kind: input, shape index: {}]
  %s7 = inlined_call_operand.hbm [shape: bf16[256,128], index: 7, kind: output, shape index: {}]
  %s8 = sld [smem:[#allocation0]]
  $region77: #{tpu_custom_call.1} parent=0
    _
  %s10 = ssub.s32 1, %s8
  %s11 = scalar_select 0, %s10, %s8
  $region1: #{tpu_custom_call.1} parent=0
    #allocation2 [shape = 'u8[65536]{0}', space=vmem, size = 0x10000, scoped, tag = 'input window, operand 0']
    #allocation3 [shape = 's32[2]{0}', space=sflag, size = 0x8, scoped, tag = 'scoped memory for tpu_custom_call.1']
    #allocation4 [shape = 's32[2]{0}', space=sflag, size = 0x8, scoped, tag = 'scoped memory for tpu_custom_call.1']
    #allocation5 [shape = 'u8[65536]{0}', space=vmem, size = 0x10000, scoped, tag = 'input window, operand 1, single buffered']
    #allocation6 [shape = 's32[1]{0}', space=sflag, size = 0x4, scoped, tag = 'scoped memory for tpu_custom_call.1']
    #allocation7 [shape = 'u8[131072]{0}', space=vmem, size = 0x20000, scoped, tag = 'input window, operand 3, single buffered']
    #allocation8 [shape = 'u8[65536]{0}', space=vmem, size = 0x10000, scoped, tag = 'input window, operand 5, single buffered']
    #allocation9 [shape = 's32[1]{0}', space=sflag, size = 0x4, scoped, tag = 'scoped memory for tpu_custom_call.1']
    #allocation10 [shape = 'u8[65536]{0}', space=vmem, size = 0x10000, scoped, tag = 'output window, operand 0']
    %12 = vsyncpa [#allocation3], 0
    %s13 = scalar_lea.sflag [#allocation3], 1
    %14 = vsyncpa %s13, 0
    %15 = vsyncpa [#allocation6], 0
    %16 = vsyncpa [#allocation9], 0
    %17 = vsyncpa [#allocation4], 0
    %s18 = scalar_lea.sflag [#allocation4], 1
    %19 = vsyncpa %s18, 0
    loop: start=0, step=1, limit=4
    $region2: #{tpu_custom_call.1} parent=1 // loop_pre_header
      _
    $region3: #{tpu_custom_call.1} parent=1 // loop_header
      %s21 = sphi 0, %s25
      %p22 = scmp.ge.s32.totalorder %s21, 4
      %s31 = sphi 0, %s33
      %s34 = sphi 0, %s31
      %s35 = sphi 0, %s34
      %s51 = sphi 0, %s35
      %s55 = sphi 0, %s55
      %s57 = sphi 0, %s55
      %s58 = sphi 0, %s57
      %s72 = sphi 0, %s58
      %s76 = sphi 0, %s76
      %s78 = sphi 0, %s76
      %s79 = sphi 0, %s78
      %s93 = sphi 0, %s79
      %s97 = sphi 0, %s97
      %s99 = sphi 0, %s97
      %s100 = sphi 0, %s99
      %s114 = sphi 0, %s100
      %s118 = sphi 0, %s118
      %s120 = sphi 0, %s118
      %s121 = sphi 0, %s120
      %s135 = sphi 0, %s121
      %s139 = sphi 0, %s139
      %s141 = sphi 0, %s139
      %s142 = sphi 0, %s141
      %s156 = sphi 0, %s142
      %s160 = sphi 0, %s160
      %s162 = sphi 0, %s160
      %s163 = sphi 0, %s162
      %s177 = sphi 0, %s163
      %s183 = sphi 0, %s185
      %s186 = sphi 0, %s183
      %s187 = sphi 0, %s186
      %s203 = sphi 0, %s187
    $region4: #{tpu_custom_call.1} parent=1 // loop_header_branch
      %24 = sbr.rel (%p22) target = $region8
    $region5: #{tpu_custom_call.1} parent=1 // loop_body
      %s26 = ssub.s32 %s21, 1
      %s27 = ssub.s32 %s21, 2
      %s28 = sadd.s32 %s21, 1
      %s29 = ssub.s32 %s21, %s28
      %p30 = scmp.eq.s32.totalorder %s29, 0
      %s32 = sadd.s32 %s31, 1
      %s33 = scalar_select %p30, %s31, %s32
      %p36 = pneg %p30
      %p37 = scmp.eq.s32.totalorder %s21, 1
      %p38 = por %p36, %p37
      %p39 = scmp.ne.s32.totalorder %s31, %s34
      %p40 = scmp.eq.s32.totalorder %s21, 0
      %p41 = por %p39, %p40
      %p42 = scmp.ne.s32.totalorder %s31, %s34
      %p43 = scmp.eq.s32.totalorder %s26, 1
      %p44 = por %p42, %p43
      %p45 = scmp.ne.s32.totalorder %s34, %s35
      %p46 = scmp.eq.s32.totalorder %s26, 0
      %p47 = por %p45, %p46
      %p48 = scmp.ne.s32.totalorder %s34, %s35
      %p49 = scmp.eq.s32.totalorder %s27, 1
      %p50 = por %p48, %p49
      %p52 = scmp.ne.s32.totalorder %s35, %s51
      %p53 = scmp.eq.s32.totalorder %s27, 0
      %p54 = por %p52, %p53
      %s56 = sadd.s32 %s55, 1
      %p59 = scmp.eq.s32.totalorder %s21, 1
      %p60 = scmp.ne.s32.totalorder %s55, %s57
      %p61 = scmp.eq.s32.totalorder %s21, 0
      %p62 = por %p60, %p61
      %p63 = scmp.ne.s32.totalorder %s55, %s57
      %p64 = scmp.eq.s32.totalorder %s26, 1
      %p65 = por %p63, %p64
      %p66 = scmp.ne.s32.totalorder %s57, %s58
      %p67 = scmp.eq.s32.totalorder %s26, 0
      %p68 = por %p66, %p67
      %p69 = scmp.ne.s32.totalorder %s57, %s58
      %p70 = scmp.eq.s32.totalorder %s27, 1
      %p71 = por %p69, %p70
      %p73 = scmp.ne.s32.totalorder %s58, %s72
      %p74 = scmp.eq.s32.totalorder %s27, 0
      %p75 = por %p73, %p74
      %s77 = sadd.s32 %s76, 1
      %p80 = scmp.eq.s32.totalorder %s21, 1
      %p81 = scmp.ne.s32.totalorder %s76, %s78
      %p82 = scmp.eq.s32.totalorder %s21, 0
      %p83 = por %p81, %p82
      %p84 = scmp.ne.s32.totalorder %s76, %s78
      %p85 = scmp.eq.s32.totalorder %s26, 1
      %p86 = por %p84, %p85
      %p87 = scmp.ne.s32.totalorder %s78, %s79
      %p88 = scmp.eq.s32.totalorder %s26, 0
      %p89 = por %p87, %p88
      %p90 = scmp.ne.s32.totalorder %s78, %s79
      %p91 = scmp.eq.s32.totalorder %s27, 1
      %p92 = por %p90, %p91
      %p94 = scmp.ne.s32.totalorder %s79, %s93
      %p95 = scmp.eq.s32.totalorder %s27, 0
      %p96 = por %p94, %p95
      %s98 = sadd.s32 %s97, 1
      %p101 = scmp.eq.s32.totalorder %s21, 1
      %p102 = scmp.ne.s32.totalorder %s97, %s99
      %p103 = scmp.eq.s32.totalorder %s21, 0
      %p104 = por %p102, %p103
      %p105 = scmp.ne.s32.totalorder %s97, %s99
      %p106 = scmp.eq.s32.totalorder %s26, 1
      %p107 = por %p105, %p106
      %p108 = scmp.ne.s32.totalorder %s99, %s100
      %p109 = scmp.eq.s32.totalorder %s26, 0
      %p110 = por %p108, %p109
      %p111 = scmp.ne.s32.totalorder %s99, %s100
      %p112 = scmp.eq.s32.totalorder %s27, 1
      %p113 = por %p111, %p112
      %p115 = scmp.ne.s32.totalorder %s100, %s114
      %p116 = scmp.eq.s32.totalorder %s27, 0
      %p117 = por %p115, %p116
      %s119 = sadd.s32 %s118, 1
      %p122 = scmp.eq.s32.totalorder %s21, 1
      %p123 = scmp.ne.s32.totalorder %s118, %s120
      %p124 = scmp.eq.s32.totalorder %s21, 0
      %p125 = por %p123, %p124
      %p126 = scmp.ne.s32.totalorder %s118, %s120
      %p127 = scmp.eq.s32.totalorder %s26, 1
      %p128 = por %p126, %p127
      %p129 = scmp.ne.s32.totalorder %s120, %s121
      %p130 = scmp.eq.s32.totalorder %s26, 0
      %p131 = por %p129, %p130
      %p132 = scmp.ne.s32.totalorder %s120, %s121
      %p133 = scmp.eq.s32.totalorder %s27, 1
      %p134 = por %p132, %p133
      %p136 = scmp.ne.s32.totalorder %s121, %s135
      %p137 = scmp.eq.s32.totalorder %s27, 0
      %p138 = por %p136, %p137
      %s140 = sadd.s32 %s139, 1
      %p143 = scmp.eq.s32.totalorder %s21, 1
      %p144 = scmp.ne.s32.totalorder %s139, %s141
      %p145 = scmp.eq.s32.totalorder %s21, 0
      %p146 = por %p144, %p145
      %p147 = scmp.ne.s32.totalorder %s139, %s141
      %p148 = scmp.eq.s32.totalorder %s26, 1
      %p149 = por %p147, %p148
      %p150 = scmp.ne.s32.totalorder %s141, %s142
      %p151 = scmp.eq.s32.totalorder %s26, 0
      %p152 = por %p150, %p151
      %p153 = scmp.ne.s32.totalorder %s141, %s142
      %p154 = scmp.eq.s32.totalorder %s27, 1
      %p155 = por %p153, %p154
      %p157 = scmp.ne.s32.totalorder %s142, %s156
      %p158 = scmp.eq.s32.totalorder %s27, 0
      %p159 = por %p157, %p158
      %s161 = sadd.s32 %s160, 1
      %p164 = scmp.eq.s32.totalorder %s21, 1
      %p165 = scmp.ne.s32.totalorder %s160, %s162
      %p166 = scmp.eq.s32.totalorder %s21, 0
      %p167 = por %p165, %p166
      %p168 = scmp.ne.s32.totalorder %s160, %s162
      %p169 = scmp.eq.s32.totalorder %s26, 1
      %p170 = por %p168, %p169
      %p171 = scmp.ne.s32.totalorder %s162, %s163
      %p172 = scmp.eq.s32.totalorder %s26, 0
      %p173 = por %p171, %p172
      %p174 = scmp.ne.s32.totalorder %s162, %s163
      %p175 = scmp.eq.s32.totalorder %s27, 1
      %p176 = por %p174, %p175
      %p178 = scmp.ne.s32.totalorder %s163, %s177
      %p179 = scmp.eq.s32.totalorder %s27, 0
      %p180 = por %p178, %p179
      %s181 = ssub.s32 %s21, %s28
      %p182 = scmp.eq.s32.totalorder %s181, 0
      %s184 = sadd.s32 %s183, 1
      %s185 = scalar_select %p182, %s183, %s184
      %p188 = pneg %p182
      %p189 = scmp.eq.s32.totalorder %s21, 1
      %p190 = por %p188, %p189
      %p191 = scmp.ne.s32.totalorder %s183, %s186
      %p192 = scmp.eq.s32.totalorder %s21, 0
      %p193 = por %p191, %p192
      %p194 = scmp.ne.s32.totalorder %s183, %s186
      %p195 = scmp.eq.s32.totalorder %s26, 1
      %p196 = por %p194, %p195
      %p197 = scmp.ne.s32.totalorder %s186, %s187
      %p198 = scmp.eq.s32.totalorder %s26, 0
      %p199 = por %p197, %p198
      %p200 = scmp.ne.s32.totalorder %s186, %s187
      %p201 = scmp.eq.s32.totalorder %s27, 1
      %p202 = por %p200, %p201
      %p204 = scmp.ne.s32.totalorder %s187, %s203
      %p205 = scmp.eq.s32.totalorder %s27, 0
      %p206 = por %p204, %p205
      %p207 = scmp.le.s32.totalorder 1, %s21
      %p208 = scmp.lt.s32.totalorder %s21, 3
      %p209 = pnand %p207, %p208
      %p210 = pneg %p209
      // Predicated region
      $region9: #{tpu_custom_call.1} parent=5 // pred_check
        _
      $region10: #{tpu_custom_call.1} parent=5 // pred_check_branch
        %212 = sbr.rel (%p209) target = $region12
      $region11: #{tpu_custom_call.1} parent=5 // pred_region
        %s213 = ssub.s32 %s21, 1
        // Predicated region
        $region13: #{tpu_custom_call.1} parent=11 // pred_check
          %p214 = pneg %p68
        $region14: #{tpu_custom_call.1} parent=11 // pred_check_branch
          %216 = sbr.rel (%p214) target = $region16
        $region15: #{tpu_custom_call.1} parent=11 // pred_region
          %s218 = ssub.s32 2048, 2048
          %219 = vsyncadd [#allocation6], %s218
          %s220 = sshll.u32 [#allocation5], 4
          %s221 = int_to_ptr.vmem [resolvable:$true] %s220
          %226 = dma.hbm_to_vmem [thread:$0]  %s1, 2048, %s221, [#allocation6], 128, 128, 8
        $region16: #{tpu_custom_call.1} parent=11 // pred_fallthru
          _
        // Predicated region
        $region17: #{tpu_custom_call.1} parent=11 // pred_check
          %p227 = pneg %p89
        $region18: #{tpu_custom_call.1} parent=11 // pred_check_branch
          %229 = sbr.rel (%p227) target = $region20
        $region19: #{tpu_custom_call.1} parent=11 // pred_region
          _
        $region20: #{tpu_custom_call.1} parent=11 // pred_fallthru
          _
        // Predicated region
        $region21: #{tpu_custom_call.1} parent=11 // pred_check
          %p230 = pneg %p110
        $region22: #{tpu_custom_call.1} parent=11 // pred_check_branch
          %232 = sbr.rel (%p230) target = $region24
        $region23: #{tpu_custom_call.1} parent=11 // pred_region
          %s234 = ssub.s32 4096, 4096
          %235 = vsyncadd [#allocation6], %s234
          %s236 = sshll.u32 [#allocation7], 4
          %s237 = int_to_ptr.vmem [resolvable:$true] %s236
          %242 = dma.hbm_to_vmem [thread:$0]  %s3, 4096, %s237, [#allocation6], 128, 128, 8
        $region24: #{tpu_custom_call.1} parent=11 // pred_fallthru
          _
        // Predicated region
        $region25: #{tpu_custom_call.1} parent=11 // pred_check
          %p243 = pneg %p131
        $region26: #{tpu_custom_call.1} parent=11 // pred_check_branch
          %245 = sbr.rel (%p243) target = $region28
        $region27: #{tpu_custom_call.1} parent=11 // pred_region
          _
        $region28: #{tpu_custom_call.1} parent=11 // pred_fallthru
          _
        // Predicated region
        $region29: #{tpu_custom_call.1} parent=11 // pred_check
          %p246 = pneg %p152
        $region30: #{tpu_custom_call.1} parent=11 // pred_check_branch
          %248 = sbr.rel (%p246) target = $region32
        $region31: #{tpu_custom_call.1} parent=11 // pred_region
          %s250 = ssub.s32 2048, 2048
          %251 = vsyncadd [#allocation9], %s250
          %s252 = sshll.u32 [#allocation8], 4
          %s253 = int_to_ptr.vmem [resolvable:$true] %s252
          %258 = dma.hbm_to_vmem [thread:$0]  %s5, 2048, %s253, [#allocation9], 64, 64, 4
        $region32: #{tpu_custom_call.1} parent=11 // pred_fallthru
          _
        // Predicated region
        $region33: #{tpu_custom_call.1} parent=11 // pred_check
          %p259 = pneg %p173
        $region34: #{tpu_custom_call.1} parent=11 // pred_check_branch
          %261 = sbr.rel (%p259) target = $region36
        $region35: #{tpu_custom_call.1} parent=11 // pred_region
          _
        $region36: #{tpu_custom_call.1} parent=11 // pred_fallthru
          _
      $region12: #{tpu_custom_call.1} parent=5 // pred_fallthru
        _
      %p262 = scmp.lt.s32.totalorder %s21, 2
      // Predicated region
      $region37: #{tpu_custom_call.1} parent=5 // pred_check
        %p263 = pneg %p262
      $region38: #{tpu_custom_call.1} parent=5 // pred_check_branch
        %265 = sbr.rel (%p263) target = $region40
      $region39: #{tpu_custom_call.1} parent=5 // pred_region
        // Predicated region
        $region41: #{tpu_custom_call.1} parent=39 // pred_check
          %p266 = pneg %p41
        $region42: #{tpu_custom_call.1} parent=39 // pred_check_branch
          %268 = sbr.rel (%p266) target = $region44
        $region43: #{tpu_custom_call.1} parent=39 // pred_region
          %s269 = sand.u32 %s31, 1
          %s270 = scalar_lea.sflag [#allocation3], %s269
          %s271 = sand.u32 %s31, 1
          %s272 = smul.addr %s271, 64
          %s273 = scalar_lea.vmem [#allocation2], %s272
          %s274 = smul.u32 16, %s21
          %s276 = ssub.s32 1024, 1024
          %277 = vsyncadd %s270, %s276
          %s278 = smul.addr %s274, 64
          %s279 = scalar_lea.hbm %s0, %s278
          %s280 = sshll.u32 %s273, 4
          %s281 = int_to_ptr.vmem [resolvable:$true] %s280
          %286 = dma.hbm_to_vmem [thread:$0]  %s279, 1024, %s281, %s270, 64, 64, 4
        $region44: #{tpu_custom_call.1} parent=39 // pred_fallthru
          _
      $region40: #{tpu_custom_call.1} parent=5 // pred_fallthru
        _
      %p287 = scmp.le.s32.totalorder 1, %s21
      %p288 = scmp.lt.s32.totalorder %s21, 3
      %p289 = pnand %p287, %p288
      %p290 = pneg %p289
      // Predicated region
      $region45: #{tpu_custom_call.1} parent=5 // pred_check
        _
      $region46: #{tpu_custom_call.1} parent=5 // pred_check_branch
        %292 = sbr.rel (%p289) target = $region48
      $region47: #{tpu_custom_call.1} parent=5 // pred_region
        %s293 = ssub.s32 %s21, 1
        %s294 = sand.u32 %s34, 1
        %s295 = scalar_lea.sflag [#allocation3], %s294
        %s296 = sand.u32 %s34, 1
        %s297 = smul.addr %s296, 64
        %s298 = scalar_lea.vmem [#allocation2], %s297
        // Predicated region
        $region49: #{tpu_custom_call.1} parent=47 // pred_check
          %p299 = pneg %p47
        $region50: #{tpu_custom_call.1} parent=47 // pred_check_branch
          %301 = sbr.rel (%p299) target = $region52
        $region51: #{tpu_custom_call.1} parent=47 // pred_region
          %302 = dma.done %s295, 1024
        $region52: #{tpu_custom_call.1} parent=47 // pred_fallthru
          _
        // Predicated region
        $region53: #{tpu_custom_call.1} parent=47 // pred_check
          %p303 = pneg %p68
        $region54: #{tpu_custom_call.1} parent=47 // pred_check_branch
          %305 = sbr.rel (%p303) target = $region56
        $region55: #{tpu_custom_call.1} parent=47 // pred_region
          %306 = dma.done [#allocation6], 2048
        $region56: #{tpu_custom_call.1} parent=47 // pred_fallthru
          _
        // Predicated region
        $region57: #{tpu_custom_call.1} parent=47 // pred_check
          %p307 = pneg %p110
        $region58: #{tpu_custom_call.1} parent=47 // pred_check_branch
          %309 = sbr.rel (%p307) target = $region60
        $region59: #{tpu_custom_call.1} parent=47 // pred_region
          %310 = dma.done [#allocation6], 4096
        $region60: #{tpu_custom_call.1} parent=47 // pred_fallthru
          _
        // Predicated region
        $region61: #{tpu_custom_call.1} parent=47 // pred_check
          %p311 = pneg %p152
        $region62: #{tpu_custom_call.1} parent=47 // pred_check_branch
          %313 = sbr.rel (%p311) target = $region64
        $region63: #{tpu_custom_call.1} parent=47 // pred_region
          %314 = dma.done [#allocation9], 2048
        $region64: #{tpu_custom_call.1} parent=47 // pred_fallthru
          _
        %s315 = sand.u32 %s34, 1
        %s316 = scalar_lea.sflag [#allocation3], %s315
        %s317 = sand.u32 %s34, 1
        %s318 = smul.addr %s317, 64
        %s319 = scalar_lea.vmem [#allocation2], %s318
        %p320 = pneg %p47
        %p321 = pneg %p44
        %p322 = pneg %p68
        %p323 = pneg %p65
        %p324 = pneg %p89
        %p325 = pneg %p86
        %p326 = pneg %p110
        %p327 = pneg %p107
        %p328 = pneg %p131
        %p329 = pneg %p128
        %p330 = pneg %p152
        %p331 = pneg %p149
        %p332 = pneg %p173
        %p333 = pneg %p170
        %p334 = pneg %p199
        %p335 = pneg %p196
        %s336 = sand.u32 %s186, 1
        %s337 = scalar_lea.sflag [#allocation4], %s336
        %s338 = sand.u32 %s186, 1
        %s339 = smul.addr %s338, 64
        %s340 = scalar_lea.vmem [#allocation10], %s339
        %s341 = smul.u32 16, %s26
        %s342 = smul.u32 16, %s26
        %v344 = vld [vmem:[%s298] sm:$0xf]
        %v345 = vld [vmem:[%s298 + $0x4] sm:$0xf]
        %v346 = vld [vmem:[%s298 + $0x8] sm:$0xf]
        %v347 = vld [vmem:[%s298 + $0xc] sm:$0xf]
        %v348 = vld [vmem:[%s298 + $0x10] sm:$0xf]
        %v349 = vld [vmem:[%s298 + $0x14] sm:$0xf]
        %v350 = vld [vmem:[%s298 + $0x18] sm:$0xf]
        %v351 = vld [vmem:[%s298 + $0x1c] sm:$0xf]
        %v352 = vld [vmem:[%s298 + $0x20] sm:$0xf]
        %v353 = vld [vmem:[%s298 + $0x24] sm:$0xf]
        %v354 = vld [vmem:[%s298 + $0x28] sm:$0xf]
        %v355 = vld [vmem:[%s298 + $0x2c] sm:$0xf]
        %v356 = vld [vmem:[%s298 + $0x30] sm:$0xf]
        %v357 = vld [vmem:[%s298 + $0x34] sm:$0xf]
        %v358 = vld [vmem:[%s298 + $0x38] sm:$0xf]
        %v359 = vld [vmem:[%s298 + $0x3c] sm:$0xf]
        %v360 = vld [vmem:[#allocation5] sm:$0xff]
        %v361 = vld [vmem:[#allocation5 + $0x8] sm:$0xff]
        %v362 = vld [vmem:[#allocation5 + $0x10] sm:$0xff]
        %v363 = vld [vmem:[#allocation5 + $0x18] sm:$0xff]
        %v364 = vld [vmem:[#allocation5 + $0x20] sm:$0xff]
        %v365 = vld [vmem:[#allocation5 + $0x28] sm:$0xff]
        %v366 = vld [vmem:[#allocation5 + $0x30] sm:$0xff]
        %v367 = vld [vmem:[#allocation5 + $0x38] sm:$0xff]
        %v368 = vld [vmem:[#allocation5 + $0x40] sm:$0xff]
        %v369 = vld [vmem:[#allocation5 + $0x48] sm:$0xff]
        %v370 = vld [vmem:[#allocation5 + $0x50] sm:$0xff]
        %v371 = vld [vmem:[#allocation5 + $0x58] sm:$0xff]
        %v372 = vld [vmem:[#allocation5 + $0x60] sm:$0xff]
        %v373 = vld [vmem:[#allocation5 + $0x68] sm:$0xff]
        %v374 = vld [vmem:[#allocation5 + $0x70] sm:$0xff]
        %v375 = vld [vmem:[#allocation5 + $0x78] sm:$0xff]
        %v376 = vld [vmem:[%s2] sm:$0x3]
        %v378 = vlaneseq
        %v379 = vshrl.u32 %v378, 7
        %v380 = vsub.s32 0, %v379
        %v381 = vrot.slane %v376, %v380
        %v382 = vlaneseq
        %v383 = vshrl.u32 %v382, 7
        %v384 = vsub.s32 1, %v383
        %v385 = vrot.slane %v376, %v384
        %v404 = vunpack.c.l.b16 %v344
        %v405 = vunpack.c.l.b16 %v345
        %v406 = vunpack.c.l.b16 %v346
        %v407 = vunpack.c.l.b16 %v347
        %v408 = vunpack.c.l.b16 %v348
        %v409 = vunpack.c.l.b16 %v349
        %v410 = vunpack.c.l.b16 %v350
        %v411 = vunpack.c.l.b16 %v351
        %v412 = vunpack.c.l.b16 %v352
        %v413 = vunpack.c.l.b16 %v353
        %v414 = vunpack.c.l.b16 %v354
        %v415 = vunpack.c.l.b16 %v355
        %v416 = vunpack.c.l.b16 %v356
        %v417 = vunpack.c.l.b16 %v357
        %v418 = vunpack.c.l.b16 %v358
        %v419 = vunpack.c.l.b16 %v359
        %v420 = vpack.c.b16 %v405, %v404
        %v421 = vpack.c.b16 %v407, %v406
        %v422 = vpack.c.b16 %v409, %v408
        %v423 = vpack.c.b16 %v411, %v410
        %v424 = vpack.c.b16 %v413, %v412
        %v425 = vpack.c.b16 %v415, %v414
        %v426 = vpack.c.b16 %v417, %v416
        %v427 = vpack.c.b16 %v419, %v418
        %v452 = vunpack.c.l.b16 %v360
        %v453 = vunpack.c.h.b16 %v360
        %v454 = vunpack.c.l.b16 %v361
        %v455 = vunpack.c.h.b16 %v361
        %v456 = vunpack.c.l.b16 %v362
        %v457 = vunpack.c.h.b16 %v362
        %v458 = vunpack.c.l.b16 %v363
        %v459 = vunpack.c.h.b16 %v363
        %v460 = vunpack.c.l.b16 %v364
        %v461 = vunpack.c.h.b16 %v364
        %v462 = vunpack.c.l.b16 %v365
        %v463 = vunpack.c.h.b16 %v365
        %v464 = vunpack.c.l.b16 %v366
        %v465 = vunpack.c.h.b16 %v366
        %v466 = vunpack.c.l.b16 %v367
        %v467 = vunpack.c.h.b16 %v367
        %v468 = vunpack.c.l.b16 %v368
        %v469 = vunpack.c.h.b16 %v368
        %v470 = vunpack.c.l.b16 %v369
        %v471 = vunpack.c.h.b16 %v369
        %v472 = vunpack.c.l.b16 %v370
        %v473 = vunpack.c.h.b16 %v370
        %v474 = vunpack.c.l.b16 %v371
        %v475 = vunpack.c.h.b16 %v371
        %v476 = vunpack.c.l.b16 %v372
        %v477 = vunpack.c.h.b16 %v372
        %v478 = vunpack.c.l.b16 %v373
        %v479 = vunpack.c.h.b16 %v373
        %v480 = vunpack.c.l.b16 %v374
        %v481 = vunpack.c.h.b16 %v374
        %v482 = vunpack.c.l.b16 %v375
        %v483 = vunpack.c.h.b16 %v375
        %v484 = vpack.c.b16 %v454, %v452
        %v485 = vpack.c.b16 %v455, %v453
        %v486 = vpack.c.b16 %v458, %v456
        %v487 = vpack.c.b16 %v459, %v457
        %v488 = vpack.c.b16 %v462, %v460
        %v489 = vpack.c.b16 %v463, %v461
        %v490 = vpack.c.b16 %v466, %v464
        %v491 = vpack.c.b16 %v467, %v465
        %v492 = vpack.c.b16 %v470, %v468
        %v493 = vpack.c.b16 %v471, %v469
        %v494 = vpack.c.b16 %v474, %v472
        %v495 = vpack.c.b16 %v475, %v473
        %v496 = vpack.c.b16 %v478, %v476
        %v497 = vpack.c.b16 %v479, %v477
        %v498 = vpack.c.b16 %v482, %v480
        %v499 = vpack.c.b16 %v483, %v481
        %516 = vmatprep.subr.bf16.mxu0 %v499
        %517 = vmatpush1.bf16.msra.mxu0 %v498
        %518 = vmatprep.subr.bf16.mxu0 %v497
        %519 = vmatpush1.bf16.msra.mxu0 %v496
        %520 = vmatprep.subr.bf16.mxu0 %v495
        %521 = vmatpush1.bf16.msra.mxu0 %v494
        %522 = vmatprep.subr.bf16.mxu0 %v493
        %523 = vmatpush1.bf16.msra.mxu0 %v492
        %524 = vmatprep.subr.bf16.mxu0 %v491
        %525 = vmatpush1.bf16.msra.mxu0 %v490
        %526 = vmatprep.subr.bf16.mxu0 %v489
        %527 = vmatpush1.bf16.msra.mxu0 %v488
        %528 = vmatprep.subr.bf16.mxu0 %v487
        %529 = vmatpush1.bf16.msra.mxu0 %v486
        %530 = vmatprep.subr.bf16.mxu0 %v485
        %531 = vmatpush1.bf16.msra.mxu0 %v484
        %532 = vmatprep.subr.bf16.mxu0 0
        %533 = vmatpush2.bf16.msra.mxu0 0
        %534 = vmatprep.subr.bf16.mxu0 0
        %535 = vmatpush2.bf16.msra.mxu0 0
        %536 = vmatprep.subr.bf16.mxu0 0
        %537 = vmatpush2.bf16.msra.mxu0 0
        %538 = vmatprep.subr.bf16.mxu0 0
        %539 = vmatpush2.bf16.msra.mxu0 0
        %540 = vmatprep.subr.bf16.mxu0 0
        %541 = vmatpush2.bf16.msra.mxu0 0
        %542 = vmatprep.subr.bf16.mxu0 0
        %543 = vmatpush2.bf16.msra.mxu0 0
        %544 = vmatprep.subr.bf16.mxu0 0
        %545 = vmatpush2.bf16.msra.mxu0 0
        %546 = vmatprep.subr.bf16.mxu0 0
        %547 = vmatpush2.bf16.msra.mxu0 0
        %548 = vmatprep.mubr.bf16.mxu0 0
        %549 = vmatmul.mubr.bf16.gmra.mxu0 %v420
        %v550 = vpop.f32.mrf.mxu0
        %v551 = vadd.f32 %v381, %v550
        %v552 = vpop.f32.mrf.mxu0
        %v553 = vadd.f32 %v385, %v552
        %v554 = vpop.f32.mrf.mxu0
        %v555 = vadd.f32 %v381, %v554
        %v556 = vpop.f32.mrf.mxu0
        %v557 = vadd.f32 %v385, %v556
        %558 = vmatprep.mubr.bf16.mxu0 0
        %559 = vmatmul.mubr.bf16.gmra.mxu0 %v421
        %v560 = vpop.f32.mrf.mxu0
        %v561 = vadd.f32 %v381, %v560
        %v562 = vpop.f32.mrf.mxu0
        %v563 = vadd.f32 %v385, %v562
        %v564 = vpop.f32.mrf.mxu0
        %v565 = vadd.f32 %v381, %v564
        %v566 = vpop.f32.mrf.mxu0
        %v567 = vadd.f32 %v385, %v566
        %568 = vmatprep.mubr.bf16.mxu0 0
        %569 = vmatmul.mubr.bf16.gmra.mxu0 %v422
        %v570 = vpop.f32.mrf.mxu0
        %v571 = vadd.f32 %v381, %v570
        %v572 = vpop.f32.mrf.mxu0
        %v573 = vadd.f32 %v385, %v572
        %v574 = vpop.f32.mrf.mxu0
        %v575 = vadd.f32 %v381, %v574
        %v576 = vpop.f32.mrf.mxu0
        %v577 = vadd.f32 %v385, %v576
        %578 = vmatprep.mubr.bf16.mxu0 0
        %579 = vmatmul.mubr.bf16.gmra.mxu0 %v423
        %v580 = vpop.f32.mrf.mxu0
        %v581 = vadd.f32 %v381, %v580
        %v582 = vpop.f32.mrf.mxu0
        %v583 = vadd.f32 %v385, %v582
        %v584 = vpop.f32.mrf.mxu0
        %v585 = vadd.f32 %v381, %v584
        %v586 = vpop.f32.mrf.mxu0
        %v587 = vadd.f32 %v385, %v586
        %588 = vmatprep.mubr.bf16.mxu0 0
        %589 = vmatmul.mubr.bf16.gmra.mxu0 %v424
        %v590 = vpop.f32.mrf.mxu0
        %v591 = vadd.f32 %v381, %v590
        %v592 = vpop.f32.mrf.mxu0
        %v593 = vadd.f32 %v385, %v592
        %v594 = vpop.f32.mrf.mxu0
        %v595 = vadd.f32 %v381, %v594
        %v596 = vpop.f32.mrf.mxu0
        %v597 = vadd.f32 %v385, %v596
        %598 = vmatprep.mubr.bf16.mxu0 0
        %599 = vmatmul.mubr.bf16.gmra.mxu0 %v425
        %v600 = vpop.f32.mrf.mxu0
        %v601 = vadd.f32 %v381, %v600
        %v602 = vpop.f32.mrf.mxu0
        %v603 = vadd.f32 %v385, %v602
        %v604 = vpop.f32.mrf.mxu0
        %v605 = vadd.f32 %v381, %v604
        %v606 = vpop.f32.mrf.mxu0
        %v607 = vadd.f32 %v385, %v606
        %608 = vmatprep.mubr.bf16.mxu0 0
        %609 = vmatmul.mubr.bf16.gmra.mxu0 %v426
        %v610 = vpop.f32.mrf.mxu0
        %v611 = vadd.f32 %v381, %v610
        %v612 = vpop.f32.mrf.mxu0
        %v613 = vadd.f32 %v385, %v612
        %v614 = vpop.f32.mrf.mxu0
        %v615 = vadd.f32 %v381, %v614
        %v616 = vpop.f32.mrf.mxu0
        %v617 = vadd.f32 %v385, %v616
        %618 = vmatprep.mubr.bf16.mxu0 0
        %619 = vmatmul.mubr.bf16.gmra.mxu0 %v427
        %v620 = vpop.f32.mrf.mxu0
        %v621 = vadd.f32 %v381, %v620
        %v622 = vpop.f32.mrf.mxu0
        %v623 = vadd.f32 %v385, %v622
        %v624 = vpop.f32.mrf.mxu0
        %v625 = vadd.f32 %v381, %v624
        %v626 = vpop.f32.mrf.mxu0
        %v627 = vadd.f32 %v385, %v626
        %628 = vdwg.mxu0
        %v629 = vmul.f32 %v551, %v551
        %v630 = vmul.f32 %v553, %v553
        %v631 = vmul.f32 %v555, %v555
        %v632 = vmul.f32 %v557, %v557
        %v633 = vmul.f32 %v561, %v561
        %v634 = vmul.f32 %v563, %v563
        %v635 = vmul.f32 %v565, %v565
        %v636 = vmul.f32 %v567, %v567
        %v637 = vmul.f32 %v571, %v571
        %v638 = vmul.f32 %v573, %v573
        %v639 = vmul.f32 %v575, %v575
        %v640 = vmul.f32 %v577, %v577
        %v641 = vmul.f32 %v581, %v581
        %v642 = vmul.f32 %v583, %v583
        %v643 = vmul.f32 %v585, %v585
        %v644 = vmul.f32 %v587, %v587
        %v645 = vmul.f32 %v591, %v591
        %v646 = vmul.f32 %v593, %v593
        %v647 = vmul.f32 %v595, %v595
        %v648 = vmul.f32 %v597, %v597
        %v649 = vmul.f32 %v601, %v601
        %v650 = vmul.f32 %v603, %v603
        %v651 = vmul.f32 %v605, %v605
        %v652 = vmul.f32 %v607, %v607
        %v653 = vmul.f32 %v611, %v611
        %v654 = vmul.f32 %v613, %v613
        %v655 = vmul.f32 %v615, %v615
        %v656 = vmul.f32 %v617, %v617
        %v657 = vmul.f32 %v621, %v621
        %v658 = vmul.f32 %v623, %v623
        %v659 = vmul.f32 %v625, %v625
        %v660 = vmul.f32 %v627, %v627
        %v661 = vmul.f32 %v551, %v629
        %v662 = vmul.f32 %v553, %v630
        %v663 = vmul.f32 %v555, %v631
        %v664 = vmul.f32 %v557, %v632
        %v665 = vmul.f32 %v561, %v633
        %v666 = vmul.f32 %v563, %v634
        %v667 = vmul.f32 %v565, %v635
        %v668 = vmul.f32 %v567, %v636
        %v669 = vmul.f32 %v571, %v637
        %v670 = vmul.f32 %v573, %v638
        %v671 = vmul.f32 %v575, %v639
        %v672 = vmul.f32 %v577, %v640
        %v673 = vmul.f32 %v581, %v641
        %v674 = vmul.f32 %v583, %v642
        %v675 = vmul.f32 %v585, %v643
        %v676 = vmul.f32 %v587, %v644
        %v677 = vmul.f32 %v591, %v645
        %v678 = vmul.f32 %v593, %v646
        %v679 = vmul.f32 %v595, %v647
        %v680 = vmul.f32 %v597, %v648
        %v681 = vmul.f32 %v601, %v649
        %v682 = vmul.f32 %v603, %v650
        %v683 = vmul.f32 %v605, %v651
        %v684 = vmul.f32 %v607, %v652
        %v685 = vmul.f32 %v611, %v653
        %v686 = vmul.f32 %v613, %v654
        %v687 = vmul.f32 %v615, %v655
        %v688 = vmul.f32 %v617, %v656
        %v689 = vmul.f32 %v621, %v657
        %v690 = vmul.f32 %v623, %v658
        %v691 = vmul.f32 %v625, %v659
        %v692 = vmul.f32 %v627, %v660
        %v693 = vmul.f32 %v661, 0.044715
        %v694 = vmul.f32 %v662, 0.044715
        %v695 = vmul.f32 %v663, 0.044715
        %v696 = vmul.f32 %v664, 0.044715
        %v697 = vmul.f32 %v665, 0.044715
        %v698 = vmul.f32 %v666, 0.044715
        %v699 = vmul.f32 %v667, 0.044715
        %v700 = vmul.f32 %v668, 0.044715
        %v701 = vmul.f32 %v669, 0.044715
        %v702 = vmul.f32 %v670, 0.044715
        %v703 = vmul.f32 %v671, 0.044715
        %v704 = vmul.f32 %v672, 0.044715
        %v705 = vmul.f32 %v673, 0.044715
        %v706 = vmul.f32 %v674, 0.044715
        %v707 = vmul.f32 %v675, 0.044715
        %v708 = vmul.f32 %v676, 0.044715
        %v709 = vmul.f32 %v677, 0.044715
        %v710 = vmul.f32 %v678, 0.044715
        %v711 = vmul.f32 %v679, 0.044715
        %v712 = vmul.f32 %v680, 0.044715
        %v713 = vmul.f32 %v681, 0.044715
        %v714 = vmul.f32 %v682, 0.044715
        %v715 = vmul.f32 %v683, 0.044715
        %v716 = vmul.f32 %v684, 0.044715
        %v717 = vmul.f32 %v685, 0.044715
        %v718 = vmul.f32 %v686, 0.044715
        %v719 = vmul.f32 %v687, 0.044715
        %v720 = vmul.f32 %v688, 0.044715
        %v721 = vmul.f32 %v689, 0.044715
        %v722 = vmul.f32 %v690, 0.044715
        %v723 = vmul.f32 %v691, 0.044715
        %v724 = vmul.f32 %v692, 0.044715
        %v725 = vadd.f32 %v551, %v693
        %v726 = vadd.f32 %v553, %v694
        %v727 = vadd.f32 %v555, %v695
        %v728 = vadd.f32 %v557, %v696
        %v729 = vadd.f32 %v561, %v697
        %v730 = vadd.f32 %v563, %v698
        %v731 = vadd.f32 %v565, %v699
        %v732 = vadd.f32 %v567, %v700
        %v733 = vadd.f32 %v571, %v701
        %v734 = vadd.f32 %v573, %v702
        %v735 = vadd.f32 %v575, %v703
        %v736 = vadd.f32 %v577, %v704
        %v737 = vadd.f32 %v581, %v705
        %v738 = vadd.f32 %v583, %v706
        %v739 = vadd.f32 %v585, %v707
        %v740 = vadd.f32 %v587, %v708
        %v741 = vadd.f32 %v591, %v709
        %v742 = vadd.f32 %v593, %v710
        %v743 = vadd.f32 %v595, %v711
        %v744 = vadd.f32 %v597, %v712
        %v745 = vadd.f32 %v601, %v713
        %v746 = vadd.f32 %v603, %v714
        %v747 = vadd.f32 %v605, %v715
        %v748 = vadd.f32 %v607, %v716
        %v749 = vadd.f32 %v611, %v717
        %v750 = vadd.f32 %v613, %v718
        %v751 = vadd.f32 %v615, %v719
        %v752 = vadd.f32 %v617, %v720
        %v753 = vadd.f32 %v621, %v721
        %v754 = vadd.f32 %v623, %v722
        %v755 = vadd.f32 %v625, %v723
        %v756 = vadd.f32 %v627, %v724
        %v757 = vmul.f32 %v725, 0.7978846
        %v758 = vmul.f32 %v726, 0.7978846
        %v759 = vmul.f32 %v727, 0.7978846
        %v760 = vmul.f32 %v728, 0.7978846
        %v761 = vmul.f32 %v729, 0.7978846
        %v762 = vmul.f32 %v730, 0.7978846
        %v763 = vmul.f32 %v731, 0.7978846
        %v764 = vmul.f32 %v732, 0.7978846
        %v765 = vmul.f32 %v733, 0.7978846
        %v766 = vmul.f32 %v734, 0.7978846
        %v767 = vmul.f32 %v735, 0.7978846
        %v768 = vmul.f32 %v736, 0.7978846
        %v769 = vmul.f32 %v737, 0.7978846
        %v770 = vmul.f32 %v738, 0.7978846
        %v771 = vmul.f32 %v739, 0.7978846
        %v772 = vmul.f32 %v740, 0.7978846
        %v773 = vmul.f32 %v741, 0.7978846
        %v774 = vmul.f32 %v742, 0.7978846
        %v775 = vmul.f32 %v743, 0.7978846
        %v776 = vmul.f32 %v744, 0.7978846
        %v777 = vmul.f32 %v745, 0.7978846
        %v778 = vmul.f32 %v746, 0.7978846
        %v779 = vmul.f32 %v747, 0.7978846
        %v780 = vmul.f32 %v748, 0.7978846
        %v781 = vmul.f32 %v749, 0.7978846
        %v782 = vmul.f32 %v750, 0.7978846
        %v783 = vmul.f32 %v751, 0.7978846
        %v784 = vmul.f32 %v752, 0.7978846
        %v785 = vmul.f32 %v753, 0.7978846
        %v786 = vmul.f32 %v754, 0.7978846
        %v787 = vmul.f32 %v755, 0.7978846
        %v788 = vmul.f32 %v756, 0.7978846
        %v789 = vtanh.pop %v757
        %v790 = vtanh.pop %v758
        %v791 = vtanh.pop %v759
        %v792 = vtanh.pop %v760
        %v793 = vtanh.pop %v761
        %v794 = vtanh.pop %v762
        %v795 = vtanh.pop %v763
        %v796 = vtanh.pop %v764
        %v797 = vtanh.pop %v765
        %v798 = vtanh.pop %v766
        %v799 = vtanh.pop %v767
        %v800 = vtanh.pop %v768
        %v801 = vtanh.pop %v769
        %v802 = vtanh.pop %v770
        %v803 = vtanh.pop %v771
        %v804 = vtanh.pop %v772
        %v805 = vtanh.pop %v773
        %v806 = vtanh.pop %v774
        %v807 = vtanh.pop %v775
        %v808 = vtanh.pop %v776
        %v809 = vtanh.pop %v777
        %v810 = vtanh.pop %v778
        %v811 = vtanh.pop %v779
        %v812 = vtanh.pop %v780
        %v813 = vtanh.pop %v781
        %v814 = vtanh.pop %v782
        %v815 = vtanh.pop %v783
        %v816 = vtanh.pop %v784
        %v817 = vtanh.pop %v785
        %v818 = vtanh.pop %v786
        %v819 = vtanh.pop %v787
        %v820 = vtanh.pop %v788
        %v821 = vadd.f32 %v789, 1.0
        %v822 = vadd.f32 %v790, 1.0
        %v823 = vadd.f32 %v791, 1.0
        %v824 = vadd.f32 %v792, 1.0
        %v825 = vadd.f32 %v793, 1.0
        %v826 = vadd.f32 %v794, 1.0
        %v827 = vadd.f32 %v795, 1.0
        %v828 = vadd.f32 %v796, 1.0
        %v829 = vadd.f32 %v797, 1.0
        %v830 = vadd.f32 %v798, 1.0
        %v831 = vadd.f32 %v799, 1.0
        %v832 = vadd.f32 %v800, 1.0
        %v833 = vadd.f32 %v801, 1.0
        %v834 = vadd.f32 %v802, 1.0
        %v835 = vadd.f32 %v803, 1.0
        %v836 = vadd.f32 %v804, 1.0
        %v837 = vadd.f32 %v805, 1.0
        %v838 = vadd.f32 %v806, 1.0
        %v839 = vadd.f32 %v807, 1.0
        %v840 = vadd.f32 %v808, 1.0
        %v841 = vadd.f32 %v809, 1.0
        %v842 = vadd.f32 %v810, 1.0
        %v843 = vadd.f32 %v811, 1.0
        %v844 = vadd.f32 %v812, 1.0
        %v845 = vadd.f32 %v813, 1.0
        %v846 = vadd.f32 %v814, 1.0
        %v847 = vadd.f32 %v815, 1.0
        %v848 = vadd.f32 %v816, 1.0
        %v849 = vadd.f32 %v817, 1.0
        %v850 = vadd.f32 %v818, 1.0
        %v851 = vadd.f32 %v819, 1.0
        %v852 = vadd.f32 %v820, 1.0
        %v853 = vmul.f32 %v821, 0.5
        %v854 = vmul.f32 %v822, 0.5
        %v855 = vmul.f32 %v823, 0.5
        %v856 = vmul.f32 %v824, 0.5
        %v857 = vmul.f32 %v825, 0.5
        %v858 = vmul.f32 %v826, 0.5
        %v859 = vmul.f32 %v827, 0.5
        %v860 = vmul.f32 %v828, 0.5
        %v861 = vmul.f32 %v829, 0.5
        %v862 = vmul.f32 %v830, 0.5
        %v863 = vmul.f32 %v831, 0.5
        %v864 = vmul.f32 %v832, 0.5
        %v865 = vmul.f32 %v833, 0.5
        %v866 = vmul.f32 %v834, 0.5
        %v867 = vmul.f32 %v835, 0.5
        %v868 = vmul.f32 %v836, 0.5
        %v869 = vmul.f32 %v837, 0.5
        %v870 = vmul.f32 %v838, 0.5
        %v871 = vmul.f32 %v839, 0.5
        %v872 = vmul.f32 %v840, 0.5
        %v873 = vmul.f32 %v841, 0.5
        %v874 = vmul.f32 %v842, 0.5
        %v875 = vmul.f32 %v843, 0.5
        %v876 = vmul.f32 %v844, 0.5
        %v877 = vmul.f32 %v845, 0.5
        %v878 = vmul.f32 %v846, 0.5
        %v879 = vmul.f32 %v847, 0.5
        %v880 = vmul.f32 %v848, 0.5
        %v881 = vmul.f32 %v849, 0.5
        %v882 = vmul.f32 %v850, 0.5
        %v883 = vmul.f32 %v851, 0.5
        %v884 = vmul.f32 %v852, 0.5
        %v885 = vmul.f32 %v551, %v853
        %v886 = vmul.f32 %v553, %v854
        %v887 = vmul.f32 %v555, %v855
        %v888 = vmul.f32 %v557, %v856
        %v889 = vmul.f32 %v561, %v857
        %v890 = vmul.f32 %v563, %v858
        %v891 = vmul.f32 %v565, %v859
        %v892 = vmul.f32 %v567, %v860
        %v893 = vmul.f32 %v571, %v861
        %v894 = vmul.f32 %v573, %v862
        %v895 = vmul.f32 %v575, %v863
        %v896 = vmul.f32 %v577, %v864
        %v897 = vmul.f32 %v581, %v865
        %v898 = vmul.f32 %v583, %v866
        %v899 = vmul.f32 %v585, %v867
        %v900 = vmul.f32 %v587, %v868
        %v901 = vmul.f32 %v591, %v869
        %v902 = vmul.f32 %v593, %v870
        %v903 = vmul.f32 %v595, %v871
        %v904 = vmul.f32 %v597, %v872
        %v905 = vmul.f32 %v601, %v873
        %v906 = vmul.f32 %v603, %v874
        %v907 = vmul.f32 %v605, %v875
        %v908 = vmul.f32 %v607, %v876
        %v909 = vmul.f32 %v611, %v877
        %v910 = vmul.f32 %v613, %v878
        %v911 = vmul.f32 %v615, %v879
        %v912 = vmul.f32 %v617, %v880
        %v913 = vmul.f32 %v621, %v881
        %v914 = vmul.f32 %v623, %v882
        %v915 = vmul.f32 %v625, %v883
        %v916 = vmul.f32 %v627, %v884
        %v917 = vpack.c.bf16 %v887, %v885
        %v918 = vpack.c.bf16 %v888, %v886
        %v919 = vpack.c.bf16 %v891, %v889
        %v920 = vpack.c.bf16 %v892, %v890
        %v921 = vpack.c.bf16 %v895, %v893
        %v922 = vpack.c.bf16 %v896, %v894
        %v923 = vpack.c.bf16 %v899, %v897
        %v924 = vpack.c.bf16 %v900, %v898
        %v925 = vpack.c.bf16 %v903, %v901
        %v926 = vpack.c.bf16 %v904, %v902
        %v927 = vpack.c.bf16 %v907, %v905
        %v928 = vpack.c.bf16 %v908, %v906
        %v929 = vpack.c.bf16 %v911, %v909
        %v930 = vpack.c.bf16 %v912, %v910
        %v931 = vpack.c.bf16 %v915, %v913
        %v932 = vpack.c.bf16 %v916, %v914
        %v933 = vld [vmem:[#allocation7] sm:$0xff]
        %v934 = vld [vmem:[#allocation7 + $0x8] sm:$0xff]
        %v935 = vld [vmem:[#allocation7 + $0x10] sm:$0xff]
        %v936 = vld [vmem:[#allocation7 + $0x18] sm:$0xff]
        %v937 = vld [vmem:[#allocation7 + $0x20] sm:$0xff]
        %v938 = vld [vmem:[#allocation7 + $0x28] sm:$0xff]
        %v939 = vld [vmem:[#allocation7 + $0x30] sm:$0xff]
        %v940 = vld [vmem:[#allocation7 + $0x38] sm:$0xff]
        %v941 = vld [vmem:[#allocation7 + $0x40] sm:$0xff]
        %v942 = vld [vmem:[#allocation7 + $0x48] sm:$0xff]
        %v943 = vld [vmem:[#allocation7 + $0x50] sm:$0xff]
        %v944 = vld [vmem:[#allocation7 + $0x58] sm:$0xff]
        %v945 = vld [vmem:[#allocation7 + $0x60] sm:$0xff]
        %v946 = vld [vmem:[#allocation7 + $0x68] sm:$0xff]
        %v947 = vld [vmem:[#allocation7 + $0x70] sm:$0xff]
        %v948 = vld [vmem:[#allocation7 + $0x78] sm:$0xff]
        %v949 = vld [vmem:[#allocation7 + $0x80] sm:$0xff]
        %v950 = vld [vmem:[#allocation7 + $0x88] sm:$0xff]
        %v951 = vld [vmem:[#allocation7 + $0x90] sm:$0xff]
        %v952 = vld [vmem:[#allocation7 + $0x98] sm:$0xff]
        %v953 = vld [vmem:[#allocation7 + $0xa0] sm:$0xff]
        %v954 = vld [vmem:[#allocation7 + $0xa8] sm:$0xff]
        %v955 = vld [vmem:[#allocation7 + $0xb0] sm:$0xff]
        %v956 = vld [vmem:[#allocation7 + $0xb8] sm:$0xff]
        %v957 = vld [vmem:[#allocation7 + $0xc0] sm:$0xff]
        %v958 = vld [vmem:[#allocation7 + $0xc8] sm:$0xff]
        %v959 = vld [vmem:[#allocation7 + $0xd0] sm:$0xff]
        %v960 = vld [vmem:[#allocation7 + $0xd8] sm:$0xff]
        %v961 = vld [vmem:[#allocation7 + $0xe0] sm:$0xff]
        %v962 = vld [vmem:[#allocation7 + $0xe8] sm:$0xff]
        %v963 = vld [vmem:[#allocation7 + $0xf0] sm:$0xff]
        %v964 = vld [vmem:[#allocation7 + $0xf8] sm:$0xff]
        %v965 = vld [vmem:[%s4] sm:$0x3]
        %v967 = vlaneseq
        %v968 = vshrl.u32 %v967, 7
        %v969 = vsub.s32 0, %v968
        %v970 = vrot.slane %v965, %v969
        %v971 = vlaneseq
        %v972 = vshrl.u32 %v971, 7
        %v973 = vsub.s32 1, %v972
        %v974 = vrot.slane %v965, %v973
        %v1009 = vunpack.c.l.b16 %v933
        %v1010 = vunpack.c.h.b16 %v933
        %v1011 = vunpack.c.l.b16 %v934
        %v1012 = vunpack.c.h.b16 %v934
        %v1013 = vunpack.c.l.b16 %v935
        %v1014 = vunpack.c.h.b16 %v935
        %v1015 = vunpack.c.l.b16 %v936
        %v1016 = vunpack.c.h.b16 %v936
        %v1017 = vunpack.c.l.b16 %v937
        %v1018 = vunpack.c.h.b16 %v937
        %v1019 = vunpack.c.l.b16 %v938
        %v1020 = vunpack.c.h.b16 %v938
        %v1021 = vunpack.c.l.b16 %v939
        %v1022 = vunpack.c.h.b16 %v939
        %v1023 = vunpack.c.l.b16 %v940
        %v1024 = vunpack.c.h.b16 %v940
        %v1025 = vunpack.c.l.b16 %v941
        %v1026 = vunpack.c.h.b16 %v941
        %v1027 = vunpack.c.l.b16 %v942
        %v1028 = vunpack.c.h.b16 %v942
        %v1029 = vunpack.c.l.b16 %v943
        %v1030 = vunpack.c.h.b16 %v943
        %v1031 = vunpack.c.l.b16 %v944
        %v1032 = vunpack.c.h.b16 %v944
        %v1033 = vunpack.c.l.b16 %v945
        %v1034 = vunpack.c.h.b16 %v945
        %v1035 = vunpack.c.l.b16 %v946
        %v1036 = vunpack.c.h.b16 %v946
        %v1037 = vunpack.c.l.b16 %v947
        %v1038 = vunpack.c.h.b16 %v947
        %v1039 = vunpack.c.l.b16 %v948
        %v1040 = vunpack.c.h.b16 %v948
        %v1041 = vunpack.c.l.b16 %v949
        %v1042 = vunpack.c.h.b16 %v949
        %v1043 = vunpack.c.l.b16 %v950
        %v1044 = vunpack.c.h.b16 %v950
        %v1045 = vunpack.c.l.b16 %v951
        %v1046 = vunpack.c.h.b16 %v951
        %v1047 = vunpack.c.l.b16 %v952
        %v1048 = vunpack.c.h.b16 %v952
        %v1049 = vunpack.c.l.b16 %v953
        %v1050 = vunpack.c.h.b16 %v953
        %v1051 = vunpack.c.l.b16 %v954
        %v1052 = vunpack.c.h.b16 %v954
        %v1053 = vunpack.c.l.b16 %v955
        %v1054 = vunpack.c.h.b16 %v955
        %v1055 = vunpack.c.l.b16 %v956
        %v1056 = vunpack.c.h.b16 %v956
        %v1057 = vunpack.c.l.b16 %v957
        %v1058 = vunpack.c.h.b16 %v957
        %v1059 = vunpack.c.l.b16 %v958
        %v1060 = vunpack.c.h.b16 %v958
        %v1061 = vunpack.c.l.b16 %v959
        %v1062 = vunpack.c.h.b16 %v959
        %v1063 = vunpack.c.l.b16 %v960
        %v1064 = vunpack.c.h.b16 %v960
        %v1065 = vunpack.c.l.b16 %v961
        %v1066 = vunpack.c.h.b16 %v961
        %v1067 = vunpack.c.l.b16 %v962
        %v1068 = vunpack.c.h.b16 %v962
        %v1069 = vunpack.c.l.b16 %v963
        %v1070 = vunpack.c.h.b16 %v963
        %v1071 = vunpack.c.l.b16 %v964
        %v1072 = vunpack.c.h.b16 %v964
        %v1073 = vpack.c.b16 %v1011, %v1009
        %v1074 = vpack.c.b16 %v1012, %v1010
        %v1075 = vpack.c.b16 %v1015, %v1013
        %v1076 = vpack.c.b16 %v1016, %v1014
        %v1077 = vpack.c.b16 %v1019, %v1017
        %v1078 = vpack.c.b16 %v1020, %v1018
        %v1079 = vpack.c.b16 %v1023, %v1021
        %v1080 = vpack.c.b16 %v1024, %v1022
        %v1081 = vpack.c.b16 %v1027, %v1025
        %v1082 = vpack.c.b16 %v1028, %v1026
        %v1083 = vpack.c.b16 %v1031, %v1029
        %v1084 = vpack.c.b16 %v1032, %v1030
        %v1085 = vpack.c.b16 %v1035, %v1033
        %v1086 = vpack.c.b16 %v1036, %v1034
        %v1087 = vpack.c.b16 %v1039, %v1037
        %v1088 = vpack.c.b16 %v1040, %v1038
        %v1089 = vpack.c.b16 %v1043, %v1041
        %v1090 = vpack.c.b16 %v1044, %v1042
        %v1091 = vpack.c.b16 %v1047, %v1045
        %v1092 = vpack.c.b16 %v1048, %v1046
        %v1093 = vpack.c.b16 %v1051, %v1049
        %v1094 = vpack.c.b16 %v1052, %v1050
        %v1095 = vpack.c.b16 %v1055, %v1053
        %v1096 = vpack.c.b16 %v1056, %v1054
        %v1097 = vpack.c.b16 %v1059, %v1057
        %v1098 = vpack.c.b16 %v1060, %v1058
        %v1099 = vpack.c.b16 %v1063, %v1061
        %v1100 = vpack.c.b16 %v1064, %v1062
        %v1101 = vpack.c.b16 %v1067, %v1065
        %v1102 = vpack.c.b16 %v1068, %v1066
        %v1103 = vpack.c.b16 %v1071, %v1069
        %v1104 = vpack.c.b16 %v1072, %v1070
        %1137 = vmatprep.subr.bf16.mxu0 %v1088
        %1138 = vmatpush1.bf16.msra.mxu0 %v1087
        %1139 = vmatprep.subr.bf16.mxu0 %v1086
        %1140 = vmatpush1.bf16.msra.mxu0 %v1085
        %1141 = vmatprep.subr.bf16.mxu0 %v1084
        %1142 = vmatpush1.bf16.msra.mxu0 %v1083
        %1143 = vmatprep.subr.bf16.mxu0 %v1082
        %1144 = vmatpush1.bf16.msra.mxu0 %v1081
        %1145 = vmatprep.subr.bf16.mxu0 %v1080
        %1146 = vmatpush1.bf16.msra.mxu0 %v1079
        %1147 = vmatprep.subr.bf16.mxu0 %v1078
        %1148 = vmatpush1.bf16.msra.mxu0 %v1077
        %1149 = vmatprep.subr.bf16.mxu0 %v1076
        %1150 = vmatpush1.bf16.msra.mxu0 %v1075
        %1151 = vmatprep.subr.bf16.mxu0 %v1074
        %1152 = vmatpush1.bf16.msra.mxu0 %v1073
        %1153 = vmatprep.subr.bf16.mxu0 %v1104
        %1154 = vmatpush2.bf16.msra.mxu0 %v1103
        %1155 = vmatprep.subr.bf16.mxu0 %v1102
        %1156 = vmatpush2.bf16.msra.mxu0 %v1101
        %1157 = vmatprep.subr.bf16.mxu0 %v1100
        %1158 = vmatpush2.bf16.msra.mxu0 %v1099
        %1159 = vmatprep.subr.bf16.mxu0 %v1098
        %1160 = vmatpush2.bf16.msra.mxu0 %v1097
        %1161 = vmatprep.subr.bf16.mxu0 %v1096
        %1162 = vmatpush2.bf16.msra.mxu0 %v1095
        %1163 = vmatprep.subr.bf16.mxu0 %v1094
        %1164 = vmatpush2.bf16.msra.mxu0 %v1093
        %1165 = vmatprep.subr.bf16.mxu0 %v1092
        %1166 = vmatpush2.bf16.msra.mxu0 %v1091
        %1167 = vmatprep.subr.bf16.mxu0 %v1090
        %1168 = vmatpush2.bf16.msra.mxu0 %v1089
        %1169 = vmatprep.mubr.bf16.mxu0 %v918
        %1170 = vmatmul.mubr.bf16.gmra.mxu0 %v917
        %v1171 = vpop.f32.mrf.mxu0
        %v1172 = vadd.f32 %v970, %v1171
        %v1173 = vpop.f32.mrf.mxu0
        %v1174 = vadd.f32 %v974, %v1173
        %v1175 = vpop.f32.mrf.mxu0
        %v1176 = vadd.f32 %v970, %v1175
        %v1177 = vpop.f32.mrf.mxu0
        %v1178 = vadd.f32 %v974, %v1177
        %1179 = vmatprep.mubr.bf16.mxu0 %v920
        %1180 = vmatmul.mubr.bf16.gmra.mxu0 %v919
        %v1181 = vpop.f32.mrf.mxu0
        %v1182 = vadd.f32 %v970, %v1181
        %v1183 = vpop.f32.mrf.mxu0
        %v1184 = vadd.f32 %v974, %v1183
        %v1185 = vpop.f32.mrf.mxu0
        %v1186 = vadd.f32 %v970, %v1185
        %v1187 = vpop.f32.mrf.mxu0
        %v1188 = vadd.f32 %v974, %v1187
        %1189 = vmatprep.mubr.bf16.mxu0 %v922
        %1190 = vmatmul.mubr.bf16.gmra.mxu0 %v921
        %v1191 = vpop.f32.mrf.mxu0
        %v1192 = vadd.f32 %v970, %v1191
        %v1193 = vpop.f32.mrf.mxu0
        %v1194 = vadd.f32 %v974, %v1193
        %v1195 = vpop.f32.mrf.mxu0
        %v1196 = vadd.f32 %v970, %v1195
        %v1197 = vpop.f32.mrf.mxu0
        %v1198 = vadd.f32 %v974, %v1197
        %1199 = vmatprep.mubr.bf16.mxu0 %v924
        %1200 = vmatmul.mubr.bf16.gmra.mxu0 %v923
        %v1201 = vpop.f32.mrf.mxu0
        %v1202 = vadd.f32 %v970, %v1201
        %v1203 = vpop.f32.mrf.mxu0
        %v1204 = vadd.f32 %v974, %v1203
        %v1205 = vpop.f32.mrf.mxu0
        %v1206 = vadd.f32 %v970, %v1205
        %v1207 = vpop.f32.mrf.mxu0
        %v1208 = vadd.f32 %v974, %v1207
        %1209 = vmatprep.mubr.bf16.mxu0 %v926
        %1210 = vmatmul.mubr.bf16.gmra.mxu0 %v925
        %v1211 = vpop.f32.mrf.mxu0
        %v1212 = vadd.f32 %v970, %v1211
        %v1213 = vpop.f32.mrf.mxu0
        %v1214 = vadd.f32 %v974, %v1213
        %v1215 = vpop.f32.mrf.mxu0
        %v1216 = vadd.f32 %v970, %v1215
        %v1217 = vpop.f32.mrf.mxu0
        %v1218 = vadd.f32 %v974, %v1217
        %1219 = vmatprep.mubr.bf16.mxu0 %v928
        %1220 = vmatmul.mubr.bf16.gmra.mxu0 %v927
        %v1221 = vpop.f32.mrf.mxu0
        %v1222 = vadd.f32 %v970, %v1221
        %v1223 = vpop.f32.mrf.mxu0
        %v1224 = vadd.f32 %v974, %v1223
        %v1225 = vpop.f32.mrf.mxu0
        %v1226 = vadd.f32 %v970, %v1225
        %v1227 = vpop.f32.mrf.mxu0
        %v1228 = vadd.f32 %v974, %v1227
        %1229 = vmatprep.mubr.bf16.mxu0 %v930
        %1230 = vmatmul.mubr.bf16.gmra.mxu0 %v929
        %v1231 = vpop.f32.mrf.mxu0
        %v1232 = vadd.f32 %v970, %v1231
        %v1233 = vpop.f32.mrf.mxu0
        %v1234 = vadd.f32 %v974, %v1233
        %v1235 = vpop.f32.mrf.mxu0
        %v1236 = vadd.f32 %v970, %v1235
        %v1237 = vpop.f32.mrf.mxu0
        %v1238 = vadd.f32 %v974, %v1237
        %1239 = vmatprep.mubr.bf16.mxu0 %v932
        %1240 = vmatmul.mubr.bf16.gmra.mxu0 %v931
        %v1241 = vpop.f32.mrf.mxu0
        %v1242 = vadd.f32 %v970, %v1241
        %v1243 = vpop.f32.mrf.mxu0
        %v1244 = vadd.f32 %v974, %v1243
        %v1245 = vpop.f32.mrf.mxu0
        %v1246 = vadd.f32 %v970, %v1245
        %v1247 = vpop.f32.mrf.mxu0
        %v1248 = vadd.f32 %v974, %v1247
        %1249 = vdwg.mxu0
        %v1250 = vmul.f32 %v1172, %v1172
        %v1251 = vmul.f32 %v1174, %v1174
        %v1252 = vmul.f32 %v1176, %v1176
        %v1253 = vmul.f32 %v1178, %v1178
        %v1254 = vmul.f32 %v1182, %v1182
        %v1255 = vmul.f32 %v1184, %v1184
        %v1256 = vmul.f32 %v1186, %v1186
        %v1257 = vmul.f32 %v1188, %v1188
        %v1258 = vmul.f32 %v1192, %v1192
        %v1259 = vmul.f32 %v1194, %v1194
        %v1260 = vmul.f32 %v1196, %v1196
        %v1261 = vmul.f32 %v1198, %v1198
        %v1262 = vmul.f32 %v1202, %v1202
        %v1263 = vmul.f32 %v1204, %v1204
        %v1264 = vmul.f32 %v1206, %v1206
        %v1265 = vmul.f32 %v1208, %v1208
        %v1266 = vmul.f32 %v1212, %v1212
        %v1267 = vmul.f32 %v1214, %v1214
        %v1268 = vmul.f32 %v1216, %v1216
        %v1269 = vmul.f32 %v1218, %v1218
        %v1270 = vmul.f32 %v1222, %v1222
        %v1271 = vmul.f32 %v1224, %v1224
        %v1272 = vmul.f32 %v1226, %v1226
        %v1273 = vmul.f32 %v1228, %v1228
        %v1274 = vmul.f32 %v1232, %v1232
        %v1275 = vmul.f32 %v1234, %v1234
        %v1276 = vmul.f32 %v1236, %v1236
        %v1277 = vmul.f32 %v1238, %v1238
        %v1278 = vmul.f32 %v1242, %v1242
        %v1279 = vmul.f32 %v1244, %v1244
        %v1280 = vmul.f32 %v1246, %v1246
        %v1281 = vmul.f32 %v1248, %v1248
        %v1282 = vmul.f32 %v1172, %v1250
        %v1283 = vmul.f32 %v1174, %v1251
        %v1284 = vmul.f32 %v1176, %v1252
        %v1285 = vmul.f32 %v1178, %v1253
        %v1286 = vmul.f32 %v1182, %v1254
        %v1287 = vmul.f32 %v1184, %v1255
        %v1288 = vmul.f32 %v1186, %v1256
        %v1289 = vmul.f32 %v1188, %v1257
        %v1290 = vmul.f32 %v1192, %v1258
        %v1291 = vmul.f32 %v1194, %v1259
        %v1292 = vmul.f32 %v1196, %v1260
        %v1293 = vmul.f32 %v1198, %v1261
        %v1294 = vmul.f32 %v1202, %v1262
        %v1295 = vmul.f32 %v1204, %v1263
        %v1296 = vmul.f32 %v1206, %v1264
        %v1297 = vmul.f32 %v1208, %v1265
        %v1298 = vmul.f32 %v1212, %v1266
        %v1299 = vmul.f32 %v1214, %v1267
        %v1300 = vmul.f32 %v1216, %v1268
        %v1301 = vmul.f32 %v1218, %v1269
        %v1302 = vmul.f32 %v1222, %v1270
        %v1303 = vmul.f32 %v1224, %v1271
        %v1304 = vmul.f32 %v1226, %v1272
        %v1305 = vmul.f32 %v1228, %v1273
        %v1306 = vmul.f32 %v1232, %v1274
        %v1307 = vmul.f32 %v1234, %v1275
        %v1308 = vmul.f32 %v1236, %v1276
        %v1309 = vmul.f32 %v1238, %v1277
        %v1310 = vmul.f32 %v1242, %v1278
        %v1311 = vmul.f32 %v1244, %v1279
        %v1312 = vmul.f32 %v1246, %v1280
        %v1313 = vmul.f32 %v1248, %v1281
        %v1314 = vmul.f32 %v1282, 0.044715
        %v1315 = vmul.f32 %v1283, 0.044715
        %v1316 = vmul.f32 %v1284, 0.044715
        %v1317 = vmul.f32 %v1285, 0.044715
        %v1318 = vmul.f32 %v1286, 0.044715
        %v1319 = vmul.f32 %v1287, 0.044715
        %v1320 = vmul.f32 %v1288, 0.044715
        %v1321 = vmul.f32 %v1289, 0.044715
        %v1322 = vmul.f32 %v1290, 0.044715
        %v1323 = vmul.f32 %v1291, 0.044715
        %v1324 = vmul.f32 %v1292, 0.044715
        %v1325 = vmul.f32 %v1293, 0.044715
        %v1326 = vmul.f32 %v1294, 0.044715
        %v1327 = vmul.f32 %v1295, 0.044715
        %v1328 = vmul.f32 %v1296, 0.044715
        %v1329 = vmul.f32 %v1297, 0.044715
        %v1330 = vmul.f32 %v1298, 0.044715
        %v1331 = vmul.f32 %v1299, 0.044715
        %v1332 = vmul.f32 %v1300, 0.044715
        %v1333 = vmul.f32 %v1301, 0.044715
        %v1334 = vmul.f32 %v1302, 0.044715
        %v1335 = vmul.f32 %v1303, 0.044715
        %v1336 = vmul.f32 %v1304, 0.044715
        %v1337 = vmul.f32 %v1305, 0.044715
        %v1338 = vmul.f32 %v1306, 0.044715
        %v1339 = vmul.f32 %v1307, 0.044715
        %v1340 = vmul.f32 %v1308, 0.044715
        %v1341 = vmul.f32 %v1309, 0.044715
        %v1342 = vmul.f32 %v1310, 0.044715
        %v1343 = vmul.f32 %v1311, 0.044715
        %v1344 = vmul.f32 %v1312, 0.044715
        %v1345 = vmul.f32 %v1313, 0.044715
        %v1346 = vadd.f32 %v1172, %v1314
        %v1347 = vadd.f32 %v1174, %v1315
        %v1348 = vadd.f32 %v1176, %v1316
        %v1349 = vadd.f32 %v1178, %v1317
        %v1350 = vadd.f32 %v1182, %v1318
        %v1351 = vadd.f32 %v1184, %v1319
        %v1352 = vadd.f32 %v1186, %v1320
        %v1353 = vadd.f32 %v1188, %v1321
        %v1354 = vadd.f32 %v1192, %v1322
        %v1355 = vadd.f32 %v1194, %v1323
        %v1356 = vadd.f32 %v1196, %v1324
        %v1357 = vadd.f32 %v1198, %v1325
        %v1358 = vadd.f32 %v1202, %v1326
        %v1359 = vadd.f32 %v1204, %v1327
        %v1360 = vadd.f32 %v1206, %v1328
        %v1361 = vadd.f32 %v1208, %v1329
        %v1362 = vadd.f32 %v1212, %v1330
        %v1363 = vadd.f32 %v1214, %v1331
        %v1364 = vadd.f32 %v1216, %v1332
        %v1365 = vadd.f32 %v1218, %v1333
        %v1366 = vadd.f32 %v1222, %v1334
        %v1367 = vadd.f32 %v1224, %v1335
        %v1368 = vadd.f32 %v1226, %v1336
        %v1369 = vadd.f32 %v1228, %v1337
        %v1370 = vadd.f32 %v1232, %v1338
        %v1371 = vadd.f32 %v1234, %v1339
        %v1372 = vadd.f32 %v1236, %v1340
        %v1373 = vadd.f32 %v1238, %v1341
        %v1374 = vadd.f32 %v1242, %v1342
        %v1375 = vadd.f32 %v1244, %v1343
        %v1376 = vadd.f32 %v1246, %v1344
        %v1377 = vadd.f32 %v1248, %v1345
        %v1378 = vmul.f32 %v1346, 0.7978846
        %v1379 = vmul.f32 %v1347, 0.7978846
        %v1380 = vmul.f32 %v1348, 0.7978846
        %v1381 = vmul.f32 %v1349, 0.7978846
        %v1382 = vmul.f32 %v1350, 0.7978846
        %v1383 = vmul.f32 %v1351, 0.7978846
        %v1384 = vmul.f32 %v1352, 0.7978846
        %v1385 = vmul.f32 %v1353, 0.7978846
        %v1386 = vmul.f32 %v1354, 0.7978846
        %v1387 = vmul.f32 %v1355, 0.7978846
        %v1388 = vmul.f32 %v1356, 0.7978846
        %v1389 = vmul.f32 %v1357, 0.7978846
        %v1390 = vmul.f32 %v1358, 0.7978846
        %v1391 = vmul.f32 %v1359, 0.7978846
        %v1392 = vmul.f32 %v1360, 0.7978846
        %v1393 = vmul.f32 %v1361, 0.7978846
        %v1394 = vmul.f32 %v1362, 0.7978846
        %v1395 = vmul.f32 %v1363, 0.7978846
        %v1396 = vmul.f32 %v1364, 0.7978846
        %v1397 = vmul.f32 %v1365, 0.7978846
        %v1398 = vmul.f32 %v1366, 0.7978846
        %v1399 = vmul.f32 %v1367, 0.7978846
        %v1400 = vmul.f32 %v1368, 0.7978846
        %v1401 = vmul.f32 %v1369, 0.7978846
        %v1402 = vmul.f32 %v1370, 0.7978846
        %v1403 = vmul.f32 %v1371, 0.7978846
        %v1404 = vmul.f32 %v1372, 0.7978846
        %v1405 = vmul.f32 %v1373, 0.7978846
        %v1406 = vmul.f32 %v1374, 0.7978846
        %v1407 = vmul.f32 %v1375, 0.7978846
        %v1408 = vmul.f32 %v1376, 0.7978846
        %v1409 = vmul.f32 %v1377, 0.7978846
        %v1410 = vtanh.pop %v1378
        %v1411 = vtanh.pop %v1379
        %v1412 = vtanh.pop %v1380
        %v1413 = vtanh.pop %v1381
        %v1414 = vtanh.pop %v1382
        %v1415 = vtanh.pop %v1383
        %v1416 = vtanh.pop %v1384
        %v1417 = vtanh.pop %v1385
        %v1418 = vtanh.pop %v1386
        %v1419 = vtanh.pop %v1387
        %v1420 = vtanh.pop %v1388
        %v1421 = vtanh.pop %v1389
        %v1422 = vtanh.pop %v1390
        %v1423 = vtanh.pop %v1391
        %v1424 = vtanh.pop %v1392
        %v1425 = vtanh.pop %v1393
        %v1426 = vtanh.pop %v1394
        %v1427 = vtanh.pop %v1395
        %v1428 = vtanh.pop %v1396
        %v1429 = vtanh.pop %v1397
        %v1430 = vtanh.pop %v1398
        %v1431 = vtanh.pop %v1399
        %v1432 = vtanh.pop %v1400
        %v1433 = vtanh.pop %v1401
        %v1434 = vtanh.pop %v1402
        %v1435 = vtanh.pop %v1403
        %v1436 = vtanh.pop %v1404
        %v1437 = vtanh.pop %v1405
        %v1438 = vtanh.pop %v1406
        %v1439 = vtanh.pop %v1407
        %v1440 = vtanh.pop %v1408
        %v1441 = vtanh.pop %v1409
        %v1442 = vadd.f32 %v1410, 1.0
        %v1443 = vadd.f32 %v1411, 1.0
        %v1444 = vadd.f32 %v1412, 1.0
        %v1445 = vadd.f32 %v1413, 1.0
        %v1446 = vadd.f32 %v1414, 1.0
        %v1447 = vadd.f32 %v1415, 1.0
        %v1448 = vadd.f32 %v1416, 1.0
        %v1449 = vadd.f32 %v1417, 1.0
        %v1450 = vadd.f32 %v1418, 1.0
        %v1451 = vadd.f32 %v1419, 1.0
        %v1452 = vadd.f32 %v1420, 1.0
        %v1453 = vadd.f32 %v1421, 1.0
        %v1454 = vadd.f32 %v1422, 1.0
        %v1455 = vadd.f32 %v1423, 1.0
        %v1456 = vadd.f32 %v1424, 1.0
        %v1457 = vadd.f32 %v1425, 1.0
        %v1458 = vadd.f32 %v1426, 1.0
        %v1459 = vadd.f32 %v1427, 1.0
        %v1460 = vadd.f32 %v1428, 1.0
        %v1461 = vadd.f32 %v1429, 1.0
        %v1462 = vadd.f32 %v1430, 1.0
        %v1463 = vadd.f32 %v1431, 1.0
        %v1464 = vadd.f32 %v1432, 1.0
        %v1465 = vadd.f32 %v1433, 1.0
        %v1466 = vadd.f32 %v1434, 1.0
        %v1467 = vadd.f32 %v1435, 1.0
        %v1468 = vadd.f32 %v1436, 1.0
        %v1469 = vadd.f32 %v1437, 1.0
        %v1470 = vadd.f32 %v1438, 1.0
        %v1471 = vadd.f32 %v1439, 1.0
        %v1472 = vadd.f32 %v1440, 1.0
        %v1473 = vadd.f32 %v1441, 1.0
        %v1474 = vmul.f32 %v1442, 0.5
        %v1475 = vmul.f32 %v1443, 0.5
        %v1476 = vmul.f32 %v1444, 0.5
        %v1477 = vmul.f32 %v1445, 0.5
        %v1478 = vmul.f32 %v1446, 0.5
        %v1479 = vmul.f32 %v1447, 0.5
        %v1480 = vmul.f32 %v1448, 0.5
        %v1481 = vmul.f32 %v1449, 0.5
        %v1482 = vmul.f32 %v1450, 0.5
        %v1483 = vmul.f32 %v1451, 0.5
        %v1484 = vmul.f32 %v1452, 0.5
        %v1485 = vmul.f32 %v1453, 0.5
        %v1486 = vmul.f32 %v1454, 0.5
        %v1487 = vmul.f32 %v1455, 0.5
        %v1488 = vmul.f32 %v1456, 0.5
        %v1489 = vmul.f32 %v1457, 0.5
        %v1490 = vmul.f32 %v1458, 0.5
        %v1491 = vmul.f32 %v1459, 0.5
        %v1492 = vmul.f32 %v1460, 0.5
        %v1493 = vmul.f32 %v1461, 0.5
        %v1494 = vmul.f32 %v1462, 0.5
        %v1495 = vmul.f32 %v1463, 0.5
        %v1496 = vmul.f32 %v1464, 0.5
        %v1497 = vmul.f32 %v1465, 0.5
        %v1498 = vmul.f32 %v1466, 0.5
        %v1499 = vmul.f32 %v1467, 0.5
        %v1500 = vmul.f32 %v1468, 0.5
        %v1501 = vmul.f32 %v1469, 0.5
        %v1502 = vmul.f32 %v1470, 0.5
        %v1503 = vmul.f32 %v1471, 0.5
        %v1504 = vmul.f32 %v1472, 0.5
        %v1505 = vmul.f32 %v1473, 0.5
        %v1506 = vmul.f32 %v1172, %v1474
        %v1507 = vmul.f32 %v1174, %v1475
        %v1508 = vmul.f32 %v1176, %v1476
        %v1509 = vmul.f32 %v1178, %v1477
        %v1510 = vmul.f32 %v1182, %v1478
        %v1511 = vmul.f32 %v1184, %v1479
        %v1512 = vmul.f32 %v1186, %v1480
        %v1513 = vmul.f32 %v1188, %v1481
        %v1514 = vmul.f32 %v1192, %v1482
        %v1515 = vmul.f32 %v1194, %v1483
        %v1516 = vmul.f32 %v1196, %v1484
        %v1517 = vmul.f32 %v1198, %v1485
        %v1518 = vmul.f32 %v1202, %v1486
        %v1519 = vmul.f32 %v1204, %v1487
        %v1520 = vmul.f32 %v1206, %v1488
        %v1521 = vmul.f32 %v1208, %v1489
        %v1522 = vmul.f32 %v1212, %v1490
        %v1523 = vmul.f32 %v1214, %v1491
        %v1524 = vmul.f32 %v1216, %v1492
        %v1525 = vmul.f32 %v1218, %v1493
        %v1526 = vmul.f32 %v1222, %v1494
        %v1527 = vmul.f32 %v1224, %v1495
        %v1528 = vmul.f32 %v1226, %v1496
        %v1529 = vmul.f32 %v1228, %v1497
        %v1530 = vmul.f32 %v1232, %v1498
        %v1531 = vmul.f32 %v1234, %v1499
        %v1532 = vmul.f32 %v1236, %v1500
        %v1533 = vmul.f32 %v1238, %v1501
        %v1534 = vmul.f32 %v1242, %v1502
        %v1535 = vmul.f32 %v1244, %v1503
        %v1536 = vmul.f32 %v1246, %v1504
        %v1537 = vmul.f32 %v1248, %v1505
        %v1538 = vpack.c.bf16 %v1508, %v1506
        %v1539 = vpack.c.bf16 %v1509, %v1507
        %v1540 = vpack.c.bf16 %v1512, %v1510
        %v1541 = vpack.c.bf16 %v1513, %v1511
        %v1542 = vpack.c.bf16 %v1516, %v1514
        %v1543 = vpack.c.bf16 %v1517, %v1515
        %v1544 = vpack.c.bf16 %v1520, %v1518
        %v1545 = vpack.c.bf16 %v1521, %v1519
        %v1546 = vpack.c.bf16 %v1524, %v1522
        %v1547 = vpack.c.bf16 %v1525, %v1523
        %v1548 = vpack.c.bf16 %v1528, %v1526
        %v1549 = vpack.c.bf16 %v1529, %v1527
        %v1550 = vpack.c.bf16 %v1532, %v1530
        %v1551 = vpack.c.bf16 %v1533, %v1531
        %v1552 = vpack.c.bf16 %v1536, %v1534
        %v1553 = vpack.c.bf16 %v1537, %v1535
        %v1554 = vld [vmem:[#allocation8] sm:$0xf]
        %v1555 = vld [vmem:[#allocation8 + $0x4] sm:$0xf]
        %v1556 = vld [vmem:[#allocation8 + $0x8] sm:$0xf]
        %v1557 = vld [vmem:[#allocation8 + $0xc] sm:$0xf]
        %v1558 = vld [vmem:[#allocation8 + $0x10] sm:$0xf]
        %v1559 = vld [vmem:[#allocation8 + $0x14] sm:$0xf]
        %v1560 = vld [vmem:[#allocation8 + $0x18] sm:$0xf]
        %v1561 = vld [vmem:[#allocation8 + $0x1c] sm:$0xf]
        %v1562 = vld [vmem:[#allocation8 + $0x20] sm:$0xf]
        %v1563 = vld [vmem:[#allocation8 + $0x24] sm:$0xf]
        %v1564 = vld [vmem:[#allocation8 + $0x28] sm:$0xf]
        %v1565 = vld [vmem:[#allocation8 + $0x2c] sm:$0xf]
        %v1566 = vld [vmem:[#allocation8 + $0x30] sm:$0xf]
        %v1567 = vld [vmem:[#allocation8 + $0x34] sm:$0xf]
        %v1568 = vld [vmem:[#allocation8 + $0x38] sm:$0xf]
        %v1569 = vld [vmem:[#allocation8 + $0x3c] sm:$0xf]
        %v1570 = vld [vmem:[#allocation8 + $0x40] sm:$0xf]
        %v1571 = vld [vmem:[#allocation8 + $0x44] sm:$0xf]
        %v1572 = vld [vmem:[#allocation8 + $0x48] sm:$0xf]
        %v1573 = vld [vmem:[#allocation8 + $0x4c] sm:$0xf]
        %v1574 = vld [vmem:[#allocation8 + $0x50] sm:$0xf]
        %v1575 = vld [vmem:[#allocation8 + $0x54] sm:$0xf]
        %v1576 = vld [vmem:[#allocation8 + $0x58] sm:$0xf]
        %v1577 = vld [vmem:[#allocation8 + $0x5c] sm:$0xf]
        %v1578 = vld [vmem:[#allocation8 + $0x60] sm:$0xf]
        %v1579 = vld [vmem:[#allocation8 + $0x64] sm:$0xf]
        %v1580 = vld [vmem:[#allocation8 + $0x68] sm:$0xf]
        %v1581 = vld [vmem:[#allocation8 + $0x6c] sm:$0xf]
        %v1582 = vld [vmem:[#allocation8 + $0x70] sm:$0xf]
        %v1583 = vld [vmem:[#allocation8 + $0x74] sm:$0xf]
        %v1584 = vld [vmem:[#allocation8 + $0x78] sm:$0xf]
        %v1585 = vld [vmem:[#allocation8 + $0x7c] sm:$0xf]
        %v1586 = vld [vmem:[%s6] sm:$0x1]
        %v1588 = vlaneseq
        %v1589 = vshrl.u32 %v1588, 7
        %v1590 = vsub.s32 0, %v1589
        %v1591 = vrot.slane %v1586, %v1590
        %v1625 = vunpack.c.l.b16 %v1554
        %v1626 = vunpack.c.l.b16 %v1555
        %v1627 = vunpack.c.l.b16 %v1556
        %v1628 = vunpack.c.l.b16 %v1557
        %v1629 = vunpack.c.l.b16 %v1558
        %v1630 = vunpack.c.l.b16 %v1559
        %v1631 = vunpack.c.l.b16 %v1560
        %v1632 = vunpack.c.l.b16 %v1561
        %v1633 = vunpack.c.l.b16 %v1562
        %v1634 = vunpack.c.l.b16 %v1563
        %v1635 = vunpack.c.l.b16 %v1564
        %v1636 = vunpack.c.l.b16 %v1565
        %v1637 = vunpack.c.l.b16 %v1566
        %v1638 = vunpack.c.l.b16 %v1567
        %v1639 = vunpack.c.l.b16 %v1568
        %v1640 = vunpack.c.l.b16 %v1569
        %v1641 = vunpack.c.l.b16 %v1570
        %v1642 = vunpack.c.l.b16 %v1571
        %v1643 = vunpack.c.l.b16 %v1572
        %v1644 = vunpack.c.l.b16 %v1573
        %v1645 = vunpack.c.l.b16 %v1574
        %v1646 = vunpack.c.l.b16 %v1575
        %v1647 = vunpack.c.l.b16 %v1576
        %v1648 = vunpack.c.l.b16 %v1577
        %v1649 = vunpack.c.l.b16 %v1578
        %v1650 = vunpack.c.l.b16 %v1579
        %v1651 = vunpack.c.l.b16 %v1580
        %v1652 = vunpack.c.l.b16 %v1581
        %v1653 = vunpack.c.l.b16 %v1582
        %v1654 = vunpack.c.l.b16 %v1583
        %v1655 = vunpack.c.l.b16 %v1584
        %v1656 = vunpack.c.l.b16 %v1585
        %v1657 = vpack.c.b16 %v1626, %v1625
        %v1658 = vpack.c.b16 %v1628, %v1627
        %v1659 = vpack.c.b16 %v1630, %v1629
        %v1660 = vpack.c.b16 %v1632, %v1631
        %v1661 = vpack.c.b16 %v1634, %v1633
        %v1662 = vpack.c.b16 %v1636, %v1635
        %v1663 = vpack.c.b16 %v1638, %v1637
        %v1664 = vpack.c.b16 %v1640, %v1639
        %v1665 = vpack.c.b16 %v1642, %v1641
        %v1666 = vpack.c.b16 %v1644, %v1643
        %v1667 = vpack.c.b16 %v1646, %v1645
        %v1668 = vpack.c.b16 %v1648, %v1647
        %v1669 = vpack.c.b16 %v1650, %v1649
        %v1670 = vpack.c.b16 %v1652, %v1651
        %v1671 = vpack.c.b16 %v1654, %v1653
        %v1672 = vpack.c.b16 %v1656, %v1655
        %1689 = vmatprep.subr.bf16.mxu0 0
        %1690 = vmatpush1.bf16.msra.mxu0 %v1664
        %1691 = vmatprep.subr.bf16.mxu0 0
        %1692 = vmatpush1.bf16.msra.mxu0 %v1663
        %1693 = vmatprep.subr.bf16.mxu0 0
        %1694 = vmatpush1.bf16.msra.mxu0 %v1662
        %1695 = vmatprep.subr.bf16.mxu0 0
        %1696 = vmatpush1.bf16.msra.mxu0 %v1661
        %1697 = vmatprep.subr.bf16.mxu0 0
        %1698 = vmatpush1.bf16.msra.mxu0 %v1660
        %1699 = vmatprep.subr.bf16.mxu0 0
        %1700 = vmatpush1.bf16.msra.mxu0 %v1659
        %1701 = vmatprep.subr.bf16.mxu0 0
        %1702 = vmatpush1.bf16.msra.mxu0 %v1658
        %1703 = vmatprep.subr.bf16.mxu0 0
        %1704 = vmatpush1.bf16.msra.mxu0 %v1657
        %1705 = vmatprep.subr.bf16.mxu0 0
        %1706 = vmatpush2.bf16.msra.mxu0 %v1672
        %1707 = vmatprep.subr.bf16.mxu0 0
        %1708 = vmatpush2.bf16.msra.mxu0 %v1671
        %1709 = vmatprep.subr.bf16.mxu0 0
        %1710 = vmatpush2.bf16.msra.mxu0 %v1670
        %1711 = vmatprep.subr.bf16.mxu0 0
        %1712 = vmatpush2.bf16.msra.mxu0 %v1669
        %1713 = vmatprep.subr.bf16.mxu0 0
        %1714 = vmatpush2.bf16.msra.mxu0 %v1668
        %1715 = vmatprep.subr.bf16.mxu0 0
        %1716 = vmatpush2.bf16.msra.mxu0 %v1667
        %1717 = vmatprep.subr.bf16.mxu0 0
        %1718 = vmatpush2.bf16.msra.mxu0 %v1666
        %1719 = vmatprep.subr.bf16.mxu0 0
        %1720 = vmatpush2.bf16.msra.mxu0 %v1665
        %1721 = vmatprep.mubr.bf16.mxu0 %v1539
        %1722 = vmatmul.mubr.bf16.gmra.mxu0 %v1538
        %v1723 = vpop.f32.mrf.mxu0
        %v1724 = vadd.f32 %v1591, %v1723
        %v1725 = vpop.f32.mrf.mxu0
        %v1726 = vpop.f32.mrf.mxu0
        %v1727 = vadd.f32 %v1591, %v1726
        %v1728 = vpop.f32.mrf.mxu0
        %1729 = vmatprep.mubr.bf16.mxu0 %v1541
        %1730 = vmatmul.mubr.bf16.gmra.mxu0 %v1540
        %v1731 = vpop.f32.mrf.mxu0
        %v1732 = vadd.f32 %v1591, %v1731
        %v1733 = vpop.f32.mrf.mxu0
        %v1734 = vpop.f32.mrf.mxu0
        %v1735 = vadd.f32 %v1591, %v1734
        %v1736 = vpop.f32.mrf.mxu0
        %1737 = vmatprep.mubr.bf16.mxu0 %v1543
        %1738 = vmatmul.mubr.bf16.gmra.mxu0 %v1542
        %v1739 = vpop.f32.mrf.mxu0
        %v1740 = vadd.f32 %v1591, %v1739
        %v1741 = vpop.f32.mrf.mxu0
        %v1742 = vpop.f32.mrf.mxu0
        %v1743 = vadd.f32 %v1591, %v1742
        %v1744 = vpop.f32.mrf.mxu0
        %1745 = vmatprep.mubr.bf16.mxu0 %v1545
        %1746 = vmatmul.mubr.bf16.gmra.mxu0 %v1544
        %v1747 = vpop.f32.mrf.mxu0
        %v1748 = vadd.f32 %v1591, %v1747
        %v1749 = vpop.f32.mrf.mxu0
        %v1750 = vpop.f32.mrf.mxu0
        %v1751 = vadd.f32 %v1591, %v1750
        %v1752 = vpop.f32.mrf.mxu0
        %1753 = vmatprep.mubr.bf16.mxu0 %v1547
        %1754 = vmatmul.mubr.bf16.gmra.mxu0 %v1546
        %v1755 = vpop.f32.mrf.mxu0
        %v1756 = vadd.f32 %v1591, %v1755
        %v1757 = vpop.f32.mrf.mxu0
        %v1758 = vpop.f32.mrf.mxu0
        %v1759 = vadd.f32 %v1591, %v1758
        %v1760 = vpop.f32.mrf.mxu0
        %1761 = vmatprep.mubr.bf16.mxu0 %v1549
        %1762 = vmatmul.mubr.bf16.gmra.mxu0 %v1548
        %v1763 = vpop.f32.mrf.mxu0
        %v1764 = vadd.f32 %v1591, %v1763
        %v1765 = vpop.f32.mrf.mxu0
        %v1766 = vpop.f32.mrf.mxu0
        %v1767 = vadd.f32 %v1591, %v1766
        %v1768 = vpop.f32.mrf.mxu0
        %1769 = vmatprep.mubr.bf16.mxu0 %v1551
        %1770 = vmatmul.mubr.bf16.gmra.mxu0 %v1550
        %v1771 = vpop.f32.mrf.mxu0
        %v1772 = vadd.f32 %v1591, %v1771
        %v1773 = vpop.f32.mrf.mxu0
        %v1774 = vpop.f32.mrf.mxu0
        %v1775 = vadd.f32 %v1591, %v1774
        %v1776 = vpop.f32.mrf.mxu0
        %1777 = vmatprep.mubr.bf16.mxu0 %v1553
        %1778 = vmatmul.mubr.bf16.gmra.mxu0 %v1552
        %v1779 = vpop.f32.mrf.mxu0
        %v1780 = vadd.f32 %v1591, %v1779
        %v1781 = vpop.f32.mrf.mxu0
        %v1782 = vpop.f32.mrf.mxu0
        %v1783 = vadd.f32 %v1591, %v1782
        %v1784 = vpop.f32.mrf.mxu0
        %1785 = vdwg.mxu0
        %v1786 = vmul.f32 %v1724, %v1724
        %v1787 = vmul.f32 %v1727, %v1727
        %v1788 = vmul.f32 %v1732, %v1732
        %v1789 = vmul.f32 %v1735, %v1735
        %v1790 = vmul.f32 %v1740, %v1740
        %v1791 = vmul.f32 %v1743, %v1743
        %v1792 = vmul.f32 %v1748, %v1748
        %v1793 = vmul.f32 %v1751, %v1751
        %v1794 = vmul.f32 %v1756, %v1756
        %v1795 = vmul.f32 %v1759, %v1759
        %v1796 = vmul.f32 %v1764, %v1764
        %v1797 = vmul.f32 %v1767, %v1767
        %v1798 = vmul.f32 %v1772, %v1772
        %v1799 = vmul.f32 %v1775, %v1775
        %v1800 = vmul.f32 %v1780, %v1780
        %v1801 = vmul.f32 %v1783, %v1783
        %1802 = vadd.xlane.f32.xlu0 %v1786
        %v1803 = vpop.xlane.xlu0 %1802
        %1804 = vadd.xlane.f32.xlu0 %v1787
        %v1805 = vpop.xlane.xlu0 %1804
        %1806 = vadd.xlane.f32.xlu0 %v1788
        %v1807 = vpop.xlane.xlu0 %1806
        %1808 = vadd.xlane.f32.xlu0 %v1789
        %v1809 = vpop.xlane.xlu0 %1808
        %1810 = vadd.xlane.f32.xlu0 %v1790
        %v1811 = vpop.xlane.xlu0 %1810
        %1812 = vadd.xlane.f32.xlu0 %v1791
        %v1813 = vpop.xlane.xlu0 %1812
        %1814 = vadd.xlane.f32.xlu0 %v1792
        %v1815 = vpop.xlane.xlu0 %1814
        %1816 = vadd.xlane.f32.xlu0 %v1793
        %v1817 = vpop.xlane.xlu0 %1816
        %1818 = vadd.xlane.f32.xlu0 %v1794
        %v1819 = vpop.xlane.xlu0 %1818
        %1820 = vadd.xlane.f32.xlu0 %v1795
        %v1821 = vpop.xlane.xlu0 %1820
        %1822 = vadd.xlane.f32.xlu0 %v1796
        %v1823 = vpop.xlane.xlu0 %1822
        %1824 = vadd.xlane.f32.xlu0 %v1797
        %v1825 = vpop.xlane.xlu0 %1824
        %1826 = vadd.xlane.f32.xlu0 %v1798
        %v1827 = vpop.xlane.xlu0 %1826
        %1828 = vadd.xlane.f32.xlu0 %v1799
        %v1829 = vpop.xlane.xlu0 %1828
        %1830 = vadd.xlane.f32.xlu0 %v1800
        %v1831 = vpop.xlane.xlu0 %1830
        %1832 = vadd.xlane.f32.xlu0 %v1801
        %v1833 = vpop.xlane.xlu0 %1832
        %v1834 = vmax.f32 %v1803, 1e-24
        %v1835 = vmax.f32 %v1805, 1e-24
        %v1836 = vmax.f32 %v1807, 1e-24
        %v1837 = vmax.f32 %v1809, 1e-24
        %v1838 = vmax.f32 %v1811, 1e-24
        %v1839 = vmax.f32 %v1813, 1e-24
        %v1840 = vmax.f32 %v1815, 1e-24
        %v1841 = vmax.f32 %v1817, 1e-24
        %v1842 = vmax.f32 %v1819, 1e-24
        %v1843 = vmax.f32 %v1821, 1e-24
        %v1844 = vmax.f32 %v1823, 1e-24
        %v1845 = vmax.f32 %v1825, 1e-24
        %v1846 = vmax.f32 %v1827, 1e-24
        %v1847 = vmax.f32 %v1829, 1e-24
        %v1848 = vmax.f32 %v1831, 1e-24
        %v1849 = vmax.f32 %v1833, 1e-24
        %v1850 = vrsqrt.pop %v1834
        %v1851 = vrsqrt.pop %v1835
        %v1852 = vrsqrt.pop %v1836
        %v1853 = vrsqrt.pop %v1837
        %v1854 = vrsqrt.pop %v1838
        %v1855 = vrsqrt.pop %v1839
        %v1856 = vrsqrt.pop %v1840
        %v1857 = vrsqrt.pop %v1841
        %v1858 = vrsqrt.pop %v1842
        %v1859 = vrsqrt.pop %v1843
        %v1860 = vrsqrt.pop %v1844
        %v1861 = vrsqrt.pop %v1845
        %v1862 = vrsqrt.pop %v1846
        %v1863 = vrsqrt.pop %v1847
        %v1864 = vrsqrt.pop %v1848
        %v1865 = vrsqrt.pop %v1849
        %v1866 = vmul.f32 %v1724, %v1850
        %v1867 = vmul.f32 %v1727, %v1851
        %v1868 = vmul.f32 %v1732, %v1852
        %v1869 = vmul.f32 %v1735, %v1853
        %v1870 = vmul.f32 %v1740, %v1854
        %v1871 = vmul.f32 %v1743, %v1855
        %v1872 = vmul.f32 %v1748, %v1856
        %v1873 = vmul.f32 %v1751, %v1857
        %v1874 = vmul.f32 %v1756, %v1858
        %v1875 = vmul.f32 %v1759, %v1859
        %v1876 = vmul.f32 %v1764, %v1860
        %v1877 = vmul.f32 %v1767, %v1861
        %v1878 = vmul.f32 %v1772, %v1862
        %v1879 = vmul.f32 %v1775, %v1863
        %v1880 = vmul.f32 %v1780, %v1864
        %v1881 = vmul.f32 %v1783, %v1865
        %v1882 = vpack.c.bf16 %v1867, %v1866
        %v1883 = vpack.c.bf16 %v1869, %v1868
        %v1884 = vpack.c.bf16 %v1871, %v1870
        %v1885 = vpack.c.bf16 %v1873, %v1872
        %v1886 = vpack.c.bf16 %v1875, %v1874
        %v1887 = vpack.c.bf16 %v1877, %v1876
        %v1888 = vpack.c.bf16 %v1879, %v1878
        %v1889 = vpack.c.bf16 %v1881, %v1880
        %v1898 = vunpack.c.l.b16 %v1882
        %v1899 = vunpack.c.h.b16 %v1882
        %v1900 = vunpack.c.l.b16 %v1883
        %v1901 = vunpack.c.h.b16 %v1883
        %v1902 = vunpack.c.l.b16 %v1884
        %v1903 = vunpack.c.h.b16 %v1884
        %v1904 = vunpack.c.l.b16 %v1885
        %v1905 = vunpack.c.h.b16 %v1885
        %v1906 = vunpack.c.l.b16 %v1886
        %v1907 = vunpack.c.h.b16 %v1886
        %v1908 = vunpack.c.l.b16 %v1887
        %v1909 = vunpack.c.h.b16 %v1887
        %v1910 = vunpack.c.l.b16 %v1888
        %v1911 = vunpack.c.h.b16 %v1888
        %v1912 = vunpack.c.l.b16 %v1889
        %v1913 = vunpack.c.h.b16 %v1889
        %v1914 = vpack.c.b16 %v1898, %v1898
        %v1915 = vpack.c.b16 %v1899, %v1899
        %v1916 = vpack.c.b16 %v1900, %v1900
        %v1917 = vpack.c.b16 %v1901, %v1901
        %v1918 = vpack.c.b16 %v1902, %v1902
        %v1919 = vpack.c.b16 %v1903, %v1903
        %v1920 = vpack.c.b16 %v1904, %v1904
        %v1921 = vpack.c.b16 %v1905, %v1905
        %v1922 = vpack.c.b16 %v1906, %v1906
        %v1923 = vpack.c.b16 %v1907, %v1907
        %v1924 = vpack.c.b16 %v1908, %v1908
        %v1925 = vpack.c.b16 %v1909, %v1909
        %v1926 = vpack.c.b16 %v1910, %v1910
        %v1927 = vpack.c.b16 %v1911, %v1911
        %v1928 = vpack.c.b16 %v1912, %v1912
        %v1929 = vpack.c.b16 %v1913, %v1913
        %1946 = vst [vmem:[%s340] sm:$0xf] %v1914
        %1947 = vst [vmem:[%s340 + $0x4] sm:$0xf] %v1915
        %1948 = vst [vmem:[%s340 + $0x8] sm:$0xf] %v1916
        %1949 = vst [vmem:[%s340 + $0xc] sm:$0xf] %v1917
        %1950 = vst [vmem:[%s340 + $0x10] sm:$0xf] %v1918
        %1951 = vst [vmem:[%s340 + $0x14] sm:$0xf] %v1919
        %1952 = vst [vmem:[%s340 + $0x18] sm:$0xf] %v1920
        %1953 = vst [vmem:[%s340 + $0x1c] sm:$0xf] %v1921
        %1954 = vst [vmem:[%s340 + $0x20] sm:$0xf] %v1922
        %1955 = vst [vmem:[%s340 + $0x24] sm:$0xf] %v1923
        %1956 = vst [vmem:[%s340 + $0x28] sm:$0xf] %v1924
        %1957 = vst [vmem:[%s340 + $0x2c] sm:$0xf] %v1925
        %1958 = vst [vmem:[%s340 + $0x30] sm:$0xf] %v1926
        %1959 = vst [vmem:[%s340 + $0x34] sm:$0xf] %v1927
        %1960 = vst [vmem:[%s340 + $0x38] sm:$0xf] %v1928
        %1961 = vst [vmem:[%s340 + $0x3c] sm:$0xf] %v1929
        %s1962 = sand.u32 %s186, 1
        %s1963 = scalar_lea.sflag [#allocation4], %s1962
        %s1964 = sand.u32 %s186, 1
        %s1965 = smul.addr %s1964, 64
        %s1966 = scalar_lea.vmem [#allocation10], %s1965
        // Predicated region
        $region65: #{tpu_custom_call.1} parent=47 // pred_check
          %p1967 = pneg %p196
        $region66: #{tpu_custom_call.1} parent=47 // pred_check_branch
          %1969 = sbr.rel (%p1967) target = $region68
        $region67: #{tpu_custom_call.1} parent=47 // pred_region
          %s1970 = smul.u32 16, %s26
          %s1972 = ssub.s32 1024, 1024
          %1973 = vsyncadd %s1963, %s1972
          %s1974 = smul.addr %s1970, 64
          %s1975 = scalar_lea.hbm %s7, %s1974
          %s1976 = sshll.u32 %s1966, 4
          %s1977 = int_to_ptr.vmem [resolvable:$true] %s1976
          %1982 = dma.vmem_to_hbm [thread:$0]  %s1977, 1024, %s1975, %s1963, 64, 64, 4
        $region68: #{tpu_custom_call.1} parent=47 // pred_fallthru
          _
      $region48: #{tpu_custom_call.1} parent=5 // pred_fallthru
        _
      %p1983 = scmp.le.s32.totalorder 2, %s21
      // Predicated region
      $region69: #{tpu_custom_call.1} parent=5 // pred_check
        %p1984 = pneg %p1983
      $region70: #{tpu_custom_call.1} parent=5 // pred_check_branch
        %1986 = sbr.rel (%p1984) target = $region72
      $region71: #{tpu_custom_call.1} parent=5 // pred_region
        %s1987 = ssub.s32 %s21, 2
        // Predicated region
        $region73: #{tpu_custom_call.1} parent=71 // pred_check
          %p1988 = pneg %p202
        $region74: #{tpu_custom_call.1} parent=71 // pred_check_branch
          %1990 = sbr.rel (%p1988) target = $region76
        $region75: #{tpu_custom_call.1} parent=71 // pred_region
          %s1991 = sand.u32 %s187, 1
          %s1992 = scalar_lea.sflag [#allocation4], %s1991
          %s1993 = sand.u32 %s187, 1
          %s1994 = smul.addr %s1993, 64
          %s1995 = scalar_lea.vmem [#allocation10], %s1994
          %1996 = dma.done %s1992, 1024
        $region76: #{tpu_custom_call.1} parent=71 // pred_fallthru
          _
      $region72: #{tpu_custom_call.1} parent=5 // pred_fallthru
        _
    $region6: #{tpu_custom_call.1} parent=1 // loop_footer
      %s25 = sadd.s32 1, %s21
    $region7: #{tpu_custom_call.1} parent=1 // loop_footer_branch
      %20 = sbr.rel target = $region3
    $region8: #{tpu_custom_call.1} parent=1 // loop_exit
      _
    %1997 = vsyncpa [#allocation3], 1
    %s1998 = scalar_lea.sflag [#allocation3], 1
    %1999 = vsyncpa %s1998, 1
    %2000 = vsyncpa [#allocation6], 1
    %2001 = vsyncpa [#allocation9], 1
    %2002 = vsyncpa [#allocation4], 1
    %s2003 = scalar_lea.sflag [#allocation4], 1
    %2004 = vsyncpa %s2003, 1

</llo_original>
